<compile_context>
chip_gen: v6e
topology: v6e:2x2x1
jax: 0.10.0
libtpu: 0.0.40
codegen_flags: <defaults>
</compile_context>

<pallas_src>
import functools

import jax
import jax.numpy as jnp
from jax.experimental import pallas as pl
from jax.experimental.pallas import tpu as pltpu

INPUT_DIM = 832
HIDDEN1 = 256
HIDDEN2 = 32


def nnue_kernel(x_ref, w1_ref, b1_ref, w2_ref, b2_ref, w3_ref, b3_ref, o_ref):
    """One batch tile of the fused 3-layer NNUE MLP.

    x_ref : (TB, 832)  f32 or int8 -- batch tile of binary KP features
    w1_ref: (832, 256) bf16  -- VMEM-resident across the whole grid
    b1_ref: (1, 256)   f32
    w2_ref: (256, 32)  f32   -- VMEM-resident (fc2 kept in f32, ~free)
    b2_ref: (1, 32)    f32
    w3_ref: (1, 32)    f32   -- fc_out weights as a lane row (VPU path)
    b3_ref: (1, 1)     f32   -- SMEM scalar
    o_ref : (1, TB)    f32   -- lane-dense output (batch on the lane axis)
    """
    # In-kernel cast to bf16 (features are 0/1 -> exact).  The convert is VPU
    # work that hides under the x DMA / MXU stream; doing it here instead of
    # in the wrapper halves (f32) or quarters (int8) x's HBM traffic.
    x_bf = x_ref[...].astype(jnp.float32).astype(jnp.bfloat16)

    # fc1 + relu  (MXU, bf16 operands, f32 accumulation)
    h1 = jnp.dot(x_bf, w1_ref[...], preferred_element_type=jnp.float32)
    h1 = jnp.maximum(h1 + b1_ref[...], 0.0)                           # (TB, 256) f32

    # fc2 + relu  (MXU, f32 throughout -- negligible FLOPs, better accuracy)
    h2 = jnp.dot(h1, w2_ref[...], preferred_element_type=jnp.float32)
    h2 = jnp.maximum(h2 + b2_ref[...], 0.0)                           # (TB, 32) f32

    # fc_out: 32 -> 1 is degenerate for the MXU; do it on the VPU/XLU instead
    # (elementwise multiply by the weight row + cross-lane reduction).
    o = jnp.sum(h2 * w3_ref[...], axis=-1) + b3_ref[0, 0]             # (TB,)

    # Lane-dense store: batch sits on the lane axis -> unmasked full-width vst.
    o_ref[...] = o[None, :]


def _pick_block_b(batch):
    """Pick the batch tile size.

    Preferences (in order):
      * large tiles (up to 2048 rows) to amortize the ~0.35us per-step
        pipeline overhead,
      * a multiple of 256 so the fc1 LHS fills whole 256-row MXU passes,
      * >= 2 grid steps whenever the batch allows it (both v7x TensorCores),
      * a tile that divides B exactly so the wrapper never has to jnp.pad x
        (an extra HBM read+write of the dominant array).
    """
    if batch < 512:
        # Tiny / serving batch: a single tile rounded up to the 8-row sublane
        # granularity (at most 7 padded rows).
        return max(8, ((batch + 7) // 8) * 8)
    half = (batch + 1) // 2
    return min(2048, max(256, (half // 256) * 256))


@functools.partial(jax.jit, static_argnames=("block_b",))
def _kpnnue_forward(x, w1, b1, w2, b2, w3, b3, *, block_b):
    B = x.shape[0]
    num_tiles = pl.cdiv(B, block_b)
    b_pad = num_tiles * block_b
    if b_pad != B:
        # Fallback only; _pick_block_b avoids this whenever B is well shaped.
        x = jnp.pad(x, ((0, b_pad - B), (0, 0)))

    # Weights are tiny: casting / reshaping them per call is negligible.
    w1_bf = w1.astype(jnp.bfloat16)                        # (832, 256) bf16
    w3_row = w3.reshape(1, HIDDEN2).astype(jnp.float32)    # (1, 32) VPU path
    b3_s = b3.reshape(1, 1).astype(jnp.float32)            # SMEM scalar

    # Constant index_map -> block is DMA'd once and stays VMEM-resident.
    resident = lambda shape: pl.BlockSpec(shape, lambda i: (0, 0))

    out = pl.pallas_call(
        nnue_kernel,
        out_shape=jax.ShapeDtypeStruct((1, b_pad), jnp.float32),
        grid=(num_tiles,),
        in_specs=[
            pl.BlockSpec((block_b, INPUT_DIM), lambda i: (i, 0)),  # x batch tile
            resident((INPUT_DIM, HIDDEN1)),                         # w1 (bf16)
            resident((1, HIDDEN1)),                                 # b1
            resident((HIDDEN1, HIDDEN2)),                           # w2 (f32)
            resident((1, HIDDEN2)),                                 # b2
            resident((1, HIDDEN2)),                                 # w3 row
            pl.BlockSpec(memory_space=pltpu.MemorySpace.SMEM),      # b3 scalar
        ],
        out_specs=pl.BlockSpec((1, block_b), lambda i: (0, i)),     # lane-dense
        compiler_params=pltpu.CompilerParams(
            dimension_semantics=("parallel",),     # both TensorCores on v7x
            vmem_limit_bytes=32 * 1024 * 1024,     # ample even at block_b=2048
        ),
    )(x, w1_bf, b1, w2, b2, w3_row, b3_s)

    # (1, b_pad) -> (b_pad, 1) -> strip batch padding (padded rows carry
    # relu(b1)-derived garbage by construction and must be sliced off).
    return out.reshape(b_pad, 1)[:B]


def kpnnue_forward(x, w1, b1, w2, b2, w3, b3, block_b=None):
    """Fused NNUE forward: relu(x@w1+b1) -> relu(.@w2+b2) -> .@w3+b3.

    x : (B, 832) float32 or int8 binary features (int8 quarters x HBM bytes).
    w*: (in, out) float32 (PyTorch weights pre-transposed), b*: (1, out) f32.
    Returns (B, 1) float32.
    """
    if block_b is None:
        block_b = _pick_block_b(x.shape[0])
    return _kpnnue_forward(x, w1, b1, w2, b2, w3, b3, block_b=block_b)


def _init_linear(key, fan_in, fan_out):
    """Deterministic init, same scale convention as torch.nn.Linear
    (uniform +/- 1/sqrt(fan_in)). Weight returned pre-transposed (in, out)."""
    kw, kb = jax.random.split(key)
    bound = 1.0 / (fan_in ** 0.5)
    w = jax.random.uniform(kw, (fan_in, fan_out), jnp.float32, -bound, bound)
    b = jax.random.uniform(kb, (1, fan_out), jnp.float32, -bound, bound)
    return w, b


if __name__ == "__main__":
    key = jax.random.PRNGKey(0)
    k_x, k1, k2, k3 = jax.random.split(key, 4)

    B = 512  # -> block_b=256, grid=(2,), no batch padding, 2 TCs on v7x

    # Synthetic sparse binary feature input (like KP one-hot features).
    x = (jax.random.uniform(k_x, (B, INPUT_DIM)) < 0.05).astype(jnp.float32)

    w1, b1 = _init_linear(k1, INPUT_DIM, HIDDEN1)
    w2, b2 = _init_linear(k2, HIDDEN1, HIDDEN2)
    w3, b3 = _init_linear(k3, HIDDEN2, 1)

    # Pure-f32 JAX reference of the PyTorch forward semantics.
    def ref(xv):
        h1 = jnp.maximum(xv @ w1 + b1, 0.0)
        h2 = jnp.maximum(h1 @ w2 + b2, 0.0)
        return h2 @ w3 + b3

    ref_out = ref(x)

    # 1) f32 features, well-shaped batch (no padding, 2 grid steps).
    out = jax.block_until_ready(kpnnue_forward(x, w1, b1, w2, b2, w3, b3))
    assert out.shape == (B, 1)
    # bf16 fc1 operands -> loosened tolerance vs the f32 reference.
    assert jnp.allclose(out, ref_out, atol=1e-2, rtol=1e-2), float(
        jnp.max(jnp.abs(out - ref_out)))

    # 2) int8 features (0/1 is exact in int8): 4x less x HBM traffic.
    x_i8 = x.astype(jnp.int8)
    out_i8 = jax.block_until_ready(kpnnue_forward(x_i8, w1, b1, w2, b2, w3, b3))
    assert out_i8.shape == (B, 1)
    assert jnp.allclose(out_i8, ref_out, atol=1e-2, rtol=1e-2)

    # 3) Tiny serving batch: single 8-row tile, no padding.
    out_small = jax.block_until_ready(
        kpnnue_forward(x[:8], w1, b1, w2, b2, w3, b3))
    assert out_small.shape == (8, 1)
    assert jnp.allclose(out_small, ref_out[:8], atol=1e-2, rtol=1e-2)

    # 4) Batch not a multiple of 8: exercises the padding fallback path.
    out_odd = jax.block_until_ready(
        kpnnue_forward(x[:13], w1, b1, w2, b2, w3, b3))
    assert out_odd.shape == (13, 1)
    assert jnp.allclose(out_odd, ref_out[:13], atol=1e-2, rtol=1e-2)

    print("KERNEL_OK")
</pallas_src>

<mosaic_0001>
module attributes {stable_mosaic.version = 11 : i64} {
  func.func @nnue_kernel(%arg0: i32, %arg1: memref<256x832xf32, #tpu.memory_space<vmem>>, %arg2: memref<832x256xbf16, #tpu.memory_space<vmem>>, %arg3: memref<1x256xf32, #tpu.memory_space<vmem>>, %arg4: memref<256x32xf32, #tpu.memory_space<vmem>>, %arg5: memref<1x32xf32, #tpu.memory_space<vmem>>, %arg6: memref<1x32xf32, #tpu.memory_space<vmem>>, %arg7: memref<1x1xf32, #tpu.memory_space<smem>>, %arg8: memref<1x256xf32, #tpu.memory_space<vmem>>) attributes {dimension_semantics = [#tpu.dimension_semantics<parallel>], iteration_bounds = array<i64: 2>, scalar_prefetch = 0 : i64, scratch_operands = 0 : i64, tpu.core_type = #tpu.core_type<tc>, window_params = [{transform_indices = @transform_0, window_bounds = array<i64: 256, 832>}, {pipeline_mode = #tpu.pipeline_mode<synchronous>, transform_indices = @transform_1, window_bounds = array<i64: 832, 256>}, {pipeline_mode = #tpu.pipeline_mode<synchronous>, transform_indices = @transform_2, window_bounds = array<i64: 1, 256>}, {pipeline_mode = #tpu.pipeline_mode<synchronous>, transform_indices = @transform_3, window_bounds = array<i64: 256, 32>}, {pipeline_mode = #tpu.pipeline_mode<synchronous>, transform_indices = @transform_4, window_bounds = array<i64: 1, 32>}, {pipeline_mode = #tpu.pipeline_mode<synchronous>, transform_indices = @transform_5, window_bounds = array<i64: 1, 32>}, {transform_indices = @transform_6, window_bounds = array<i64: 1, 1>}, {transform_indices = @transform_7, window_bounds = array<i64: 1, 256>}]} {
    %c0 = arith.constant 0 : index
    %c0_0 = arith.constant 0 : index
    %0 = vector.load %arg1[%c0, %c0_0] : memref<256x832xf32, #tpu.memory_space<vmem>>, vector<256x832xf32>
    %1 = arith.truncf %0 : vector<256x832xf32> to vector<256x832xbf16>
    %c0_1 = arith.constant 0 : index
    %c0_2 = arith.constant 0 : index
    %2 = vector.load %arg2[%c0_1, %c0_2] : memref<832x256xbf16, #tpu.memory_space<vmem>>, vector<832x256xbf16>
    %cst = arith.constant dense<0.000000e+00> : vector<256x256xf32>
    %3 = tpu.matmul %1, %2, %cst {dimension_numbers = #tpu.dot_dimension_numbers<[1], [0], [0], [1], [0, 0, 1, 1], [], []>} : vector<256x832xbf16>, vector<832x256xbf16>, vector<256x256xf32> -> vector<256x256xf32>
    %c0_3 = arith.constant 0 : index
    %c0_4 = arith.constant 0 : index
    %4 = vector.load %arg3[%c0_3, %c0_4] : memref<1x256xf32, #tpu.memory_space<vmem>>, vector<1x256xf32>
    %5 = vector.broadcast %4 : vector<1x256xf32> to vector<256x256xf32>
    %6 = arith.addf %3, %5 : vector<256x256xf32>
    %cst_5 = arith.constant 0.000000e+00 : f32
    %7 = vector.broadcast %cst_5 : f32 to vector<256x256xf32>
    %8 = arith.maximumf %6, %7 : vector<256x256xf32>
    %c0_6 = arith.constant 0 : index
    %c0_7 = arith.constant 0 : index
    %9 = vector.load %arg4[%c0_6, %c0_7] : memref<256x32xf32, #tpu.memory_space<vmem>>, vector<256x32xf32>
    %cst_8 = arith.constant dense<0.000000e+00> : vector<256x32xf32>
    %10 = tpu.matmul %8, %9, %cst_8 {dimension_numbers = #tpu.dot_dimension_numbers<[1], [0], [0], [1], [0, 0, 1, 1], [], []>} : vector<256x256xf32>, vector<256x32xf32>, vector<256x32xf32> -> vector<256x32xf32>
    %c0_9 = arith.constant 0 : index
    %c0_10 = arith.constant 0 : index
    %11 = vector.load %arg5[%c0_9, %c0_10] : memref<1x32xf32, #tpu.memory_space<vmem>>, vector<1x32xf32>
    %12 = vector.broadcast %11 : vector<1x32xf32> to vector<256x32xf32>
    %13 = arith.addf %10, %12 : vector<256x32xf32>
    %cst_11 = arith.constant 0.000000e+00 : f32
    %14 = vector.broadcast %cst_11 : f32 to vector<256x32xf32>
    %15 = arith.maximumf %13, %14 : vector<256x32xf32>
    %c0_12 = arith.constant 0 : index
    %c0_13 = arith.constant 0 : index
    %16 = vector.load %arg6[%c0_12, %c0_13] : memref<1x32xf32, #tpu.memory_space<vmem>>, vector<1x32xf32>
    %17 = vector.broadcast %16 : vector<1x32xf32> to vector<256x32xf32>
    %18 = arith.mulf %15, %17 : vector<256x32xf32>
    %cst_14 = arith.constant dense<0.000000e+00> : vector<256xf32>
    %19 = vector.multi_reduction <add>, %18, %cst_14 [1] : vector<256x32xf32> to vector<256xf32>
    %c0_15 = arith.constant 0 : index
    %c0_16 = arith.constant 0 : index
    %20 = memref.load %arg7[%c0_15, %c0_16] : memref<1x1xf32, #tpu.memory_space<smem>>
    %21 = vector.broadcast %20 : f32 to vector<256xf32>
    %22 = arith.addf %19, %21 : vector<256xf32>
    %23 = vector.shape_cast %22 : vector<256xf32> to vector<1x256xf32>
    %c0_17 = arith.constant 0 : index
    %c0_18 = arith.constant 0 : index
    %24 = vector.load %arg8[%c0_17, %c0_18] : memref<1x256xf32, #tpu.memory_space<vmem>>, vector<1x256xf32>
    tpu.vector_store %arg8[%c0_17, %c0_18], %23 {strides = array<i32>} : memref<1x256xf32, #tpu.memory_space<vmem>>, vector<1x256xf32>,
    return
  }
  func.func @transform_0(%arg0: i32) -> (i32, i32) {
    %c0_i32 = arith.constant 0 : i32
    %c0_i32_0 = arith.constant 0 : i32
    return %arg0, %c0_i32 : i32, i32
  }
  func.func @transform_1(%arg0: i32) -> (i32, i32) {
    %c0_i32 = arith.constant 0 : i32
    %c0_i32_0 = arith.constant 0 : i32
    %c0_i32_1 = arith.constant 0 : i32
    return %c0_i32, %c0_i32_0 : i32, i32
  }
  func.func @transform_2(%arg0: i32) -> (i32, i32) {
    %c0_i32 = arith.constant 0 : i32
    %c0_i32_0 = arith.constant 0 : i32
    %c0_i32_1 = arith.constant 0 : i32
    return %c0_i32, %c0_i32_0 : i32, i32
  }
  func.func @transform_3(%arg0: i32) -> (i32, i32) {
    %c0_i32 = arith.constant 0 : i32
    %c0_i32_0 = arith.constant 0 : i32
    %c0_i32_1 = arith.constant 0 : i32
    return %c0_i32, %c0_i32_0 : i32, i32
  }
  func.func @transform_4(%arg0: i32) -> (i32, i32) {
    %c0_i32 = arith.constant 0 : i32
    %c0_i32_0 = arith.constant 0 : i32
    %c0_i32_1 = arith.constant 0 : i32
    return %c0_i32, %c0_i32_0 : i32, i32
  }
  func.func @transform_5(%arg0: i32) -> (i32, i32) {
    %c0_i32 = arith.constant 0 : i32
    %c0_i32_0 = arith.constant 0 : i32
    %c0_i32_1 = arith.constant 0 : i32
    return %c0_i32, %c0_i32_0 : i32, i32
  }
  func.func @transform_6(%arg0: i32) -> (i32, i32) {
    %c0_i32 = arith.constant 0 : i32
    %c0_i32_0 = arith.constant 0 : i32
    %c0_i32_1 = arith.constant 0 : i32
    return %c0_i32, %c0_i32_0 : i32, i32
  }
  func.func @transform_7(%arg0: i32) -> (i32, i32) {
    %c0_i32 = arith.constant 0 : i32
    %c0_i32_0 = arith.constant 0 : i32
    return %c0_i32, %arg0 : i32, i32
  }
}

</mosaic_0001>

<llo_original>
// kernel: _kpnnue_forward.1
$region0: #{_kpnnue_forward.1}
  #allocation0 [shape = 'u32[]', space=smem, size = 0x4, offset = 0x4, fixed_abs, tag = 'smem constant byte address 0x4 - core index']
  #allocation1 [shape = 'u32[144,128]{1,0:T(1,128)}', space=vmem, size = 0x12000, scoped, tag = 'internal scratch']
  #allocation2 [shape = 'f32[1,1]{1,0:T(1,128)S(6)}', space=smem, size = 0x200, scoped, tag = 'scoped memory for _kpnnue_forward.1']
  %s0 = inlined_call_operand.vmem [shape: f32[512,832], index: 0, kind: input, shape index: {}]
  %s1 = inlined_call_operand.vmem [shape: bf16[832,256], index: 1, kind: input, shape index: {}]
  %s2 = inlined_call_operand.vmem [shape: f32[1,256], index: 2, kind: input, shape index: {}]
  %s3 = inlined_call_operand.vmem [shape: f32[256,32], index: 3, kind: input, shape index: {}]
  %s4 = inlined_call_operand.vmem [shape: f32[1,32], index: 4, kind: input, shape index: {}]
  %s5 = inlined_call_operand.vmem [shape: f32[1,32], index: 5, kind: input, shape index: {}]
  %s6 = inlined_call_operand.<no memory space> [shape: f32[1,1], index: 6, kind: input, shape index: {}]
  %s7 = inlined_call_operand.hbm [shape: f32[1,512], index: 7, kind: output, shape index: {}]
  %s8 = sld [smem:[#allocation0]]
  $region61: #{_kpnnue_forward.1} parent=0
    _
  %s10 = ssub.s32 1, %s8
  %s11 = scalar_select 0, %s10, %s8
  %12 = sst [smem:[#allocation2]] %s6
  $region1: #{_kpnnue_forward.1} parent=0
    #allocation3 [shape = 'u8[2048]{0}', space=vmem, size = 0x800, scoped, tag = 'output window, operand 0']
    #allocation4 [shape = 's32[2]{0}', space=sflag, size = 0x8, scoped, tag = 'scoped memory for _kpnnue_forward.1']
    %13 = vsyncpa [#allocation4], 0
    %s14 = scalar_lea.sflag [#allocation4], 1
    %15 = vsyncpa %s14, 0
    loop: start=0, step=1, limit=4
    $region2: #{_kpnnue_forward.1} parent=1 // loop_pre_header
      _
    $region3: #{_kpnnue_forward.1} parent=1 // loop_header
      %s17 = sphi 0, %s21
      %p18 = scmp.ge.s32.totalorder %s17, 4
      %s27 = sphi 0, %s29
      %s30 = sphi 0, %s27
      %s31 = sphi 0, %s30
      %s47 = sphi 0, %s31
      %s51 = sphi 0, %s51
      %s53 = sphi 0, %s51
      %s54 = sphi 0, %s53
      %s68 = sphi 0, %s54
      %s72 = sphi 0, %s72
      %s74 = sphi 0, %s72
      %s75 = sphi 0, %s74
      %s89 = sphi 0, %s75
      %s93 = sphi 0, %s93
      %s95 = sphi 0, %s93
      %s96 = sphi 0, %s95
      %s110 = sphi 0, %s96
      %s114 = sphi 0, %s114
      %s116 = sphi 0, %s114
      %s117 = sphi 0, %s116
      %s131 = sphi 0, %s117
      %s135 = sphi 0, %s135
      %s137 = sphi 0, %s135
      %s138 = sphi 0, %s137
      %s152 = sphi 0, %s138
      %s156 = sphi 0, %s156
      %s158 = sphi 0, %s156
      %s159 = sphi 0, %s158
      %s173 = sphi 0, %s159
      %s179 = sphi 0, %s181
      %s182 = sphi 0, %s179
      %s183 = sphi 0, %s182
      %s199 = sphi 0, %s183
    $region4: #{_kpnnue_forward.1} parent=1 // loop_header_branch
      %20 = sbr.rel (%p18) target = $region8
    $region5: #{_kpnnue_forward.1} parent=1 // loop_body
      %s22 = ssub.s32 %s17, 1
      %s23 = ssub.s32 %s17, 2
      %s24 = sadd.s32 %s17, 1
      %s25 = ssub.s32 %s17, %s24
      %p26 = scmp.eq.s32.totalorder %s25, 0
      %s28 = sadd.s32 %s27, 1
      %s29 = scalar_select %p26, %s27, %s28
      %p32 = pneg %p26
      %p33 = scmp.eq.s32.totalorder %s17, 1
      %p34 = por %p32, %p33
      %p35 = scmp.ne.s32.totalorder %s27, %s30
      %p36 = scmp.eq.s32.totalorder %s17, 0
      %p37 = por %p35, %p36
      %p38 = scmp.ne.s32.totalorder %s27, %s30
      %p39 = scmp.eq.s32.totalorder %s22, 1
      %p40 = por %p38, %p39
      %p41 = scmp.ne.s32.totalorder %s30, %s31
      %p42 = scmp.eq.s32.totalorder %s22, 0
      %p43 = por %p41, %p42
      %p44 = scmp.ne.s32.totalorder %s30, %s31
      %p45 = scmp.eq.s32.totalorder %s23, 1
      %p46 = por %p44, %p45
      %p48 = scmp.ne.s32.totalorder %s31, %s47
      %p49 = scmp.eq.s32.totalorder %s23, 0
      %p50 = por %p48, %p49
      %s52 = sadd.s32 %s51, 1
      %p55 = scmp.eq.s32.totalorder %s17, 1
      %p56 = scmp.ne.s32.totalorder %s51, %s53
      %p57 = scmp.eq.s32.totalorder %s17, 0
      %p58 = por %p56, %p57
      %p59 = scmp.ne.s32.totalorder %s51, %s53
      %p60 = scmp.eq.s32.totalorder %s22, 1
      %p61 = por %p59, %p60
      %p62 = scmp.ne.s32.totalorder %s53, %s54
      %p63 = scmp.eq.s32.totalorder %s22, 0
      %p64 = por %p62, %p63
      %p65 = scmp.ne.s32.totalorder %s53, %s54
      %p66 = scmp.eq.s32.totalorder %s23, 1
      %p67 = por %p65, %p66
      %p69 = scmp.ne.s32.totalorder %s54, %s68
      %p70 = scmp.eq.s32.totalorder %s23, 0
      %p71 = por %p69, %p70
      %s73 = sadd.s32 %s72, 1
      %p76 = scmp.eq.s32.totalorder %s17, 1
      %p77 = scmp.ne.s32.totalorder %s72, %s74
      %p78 = scmp.eq.s32.totalorder %s17, 0
      %p79 = por %p77, %p78
      %p80 = scmp.ne.s32.totalorder %s72, %s74
      %p81 = scmp.eq.s32.totalorder %s22, 1
      %p82 = por %p80, %p81
      %p83 = scmp.ne.s32.totalorder %s74, %s75
      %p84 = scmp.eq.s32.totalorder %s22, 0
      %p85 = por %p83, %p84
      %p86 = scmp.ne.s32.totalorder %s74, %s75
      %p87 = scmp.eq.s32.totalorder %s23, 1
      %p88 = por %p86, %p87
      %p90 = scmp.ne.s32.totalorder %s75, %s89
      %p91 = scmp.eq.s32.totalorder %s23, 0
      %p92 = por %p90, %p91
      %s94 = sadd.s32 %s93, 1
      %p97 = scmp.eq.s32.totalorder %s17, 1
      %p98 = scmp.ne.s32.totalorder %s93, %s95
      %p99 = scmp.eq.s32.totalorder %s17, 0
      %p100 = por %p98, %p99
      %p101 = scmp.ne.s32.totalorder %s93, %s95
      %p102 = scmp.eq.s32.totalorder %s22, 1
      %p103 = por %p101, %p102
      %p104 = scmp.ne.s32.totalorder %s95, %s96
      %p105 = scmp.eq.s32.totalorder %s22, 0
      %p106 = por %p104, %p105
      %p107 = scmp.ne.s32.totalorder %s95, %s96
      %p108 = scmp.eq.s32.totalorder %s23, 1
      %p109 = por %p107, %p108
      %p111 = scmp.ne.s32.totalorder %s96, %s110
      %p112 = scmp.eq.s32.totalorder %s23, 0
      %p113 = por %p111, %p112
      %s115 = sadd.s32 %s114, 1
      %p118 = scmp.eq.s32.totalorder %s17, 1
      %p119 = scmp.ne.s32.totalorder %s114, %s116
      %p120 = scmp.eq.s32.totalorder %s17, 0
      %p121 = por %p119, %p120
      %p122 = scmp.ne.s32.totalorder %s114, %s116
      %p123 = scmp.eq.s32.totalorder %s22, 1
      %p124 = por %p122, %p123
      %p125 = scmp.ne.s32.totalorder %s116, %s117
      %p126 = scmp.eq.s32.totalorder %s22, 0
      %p127 = por %p125, %p126
      %p128 = scmp.ne.s32.totalorder %s116, %s117
      %p129 = scmp.eq.s32.totalorder %s23, 1
      %p130 = por %p128, %p129
      %p132 = scmp.ne.s32.totalorder %s117, %s131
      %p133 = scmp.eq.s32.totalorder %s23, 0
      %p134 = por %p132, %p133
      %s136 = sadd.s32 %s135, 1
      %p139 = scmp.eq.s32.totalorder %s17, 1
      %p140 = scmp.ne.s32.totalorder %s135, %s137
      %p141 = scmp.eq.s32.totalorder %s17, 0
      %p142 = por %p140, %p141
      %p143 = scmp.ne.s32.totalorder %s135, %s137
      %p144 = scmp.eq.s32.totalorder %s22, 1
      %p145 = por %p143, %p144
      %p146 = scmp.ne.s32.totalorder %s137, %s138
      %p147 = scmp.eq.s32.totalorder %s22, 0
      %p148 = por %p146, %p147
      %p149 = scmp.ne.s32.totalorder %s137, %s138
      %p150 = scmp.eq.s32.totalorder %s23, 1
      %p151 = por %p149, %p150
      %p153 = scmp.ne.s32.totalorder %s138, %s152
      %p154 = scmp.eq.s32.totalorder %s23, 0
      %p155 = por %p153, %p154
      %s157 = sadd.s32 %s156, 1
      %p160 = scmp.eq.s32.totalorder %s17, 1
      %p161 = scmp.ne.s32.totalorder %s156, %s158
      %p162 = scmp.eq.s32.totalorder %s17, 0
      %p163 = por %p161, %p162
      %p164 = scmp.ne.s32.totalorder %s156, %s158
      %p165 = scmp.eq.s32.totalorder %s22, 1
      %p166 = por %p164, %p165
      %p167 = scmp.ne.s32.totalorder %s158, %s159
      %p168 = scmp.eq.s32.totalorder %s22, 0
      %p169 = por %p167, %p168
      %p170 = scmp.ne.s32.totalorder %s158, %s159
      %p171 = scmp.eq.s32.totalorder %s23, 1
      %p172 = por %p170, %p171
      %p174 = scmp.ne.s32.totalorder %s159, %s173
      %p175 = scmp.eq.s32.totalorder %s23, 0
      %p176 = por %p174, %p175
      %s177 = ssub.s32 %s17, %s24
      %p178 = scmp.eq.s32.totalorder %s177, 0
      %s180 = sadd.s32 %s179, 1
      %s181 = scalar_select %p178, %s179, %s180
      %p184 = pneg %p178
      %p185 = scmp.eq.s32.totalorder %s17, 1
      %p186 = por %p184, %p185
      %p187 = scmp.ne.s32.totalorder %s179, %s182
      %p188 = scmp.eq.s32.totalorder %s17, 0
      %p189 = por %p187, %p188
      %p190 = scmp.ne.s32.totalorder %s179, %s182
      %p191 = scmp.eq.s32.totalorder %s22, 1
      %p192 = por %p190, %p191
      %p193 = scmp.ne.s32.totalorder %s182, %s183
      %p194 = scmp.eq.s32.totalorder %s22, 0
      %p195 = por %p193, %p194
      %p196 = scmp.ne.s32.totalorder %s182, %s183
      %p197 = scmp.eq.s32.totalorder %s23, 1
      %p198 = por %p196, %p197
      %p200 = scmp.ne.s32.totalorder %s183, %s199
      %p201 = scmp.eq.s32.totalorder %s23, 0
      %p202 = por %p200, %p201
      %p203 = scmp.le.s32.totalorder 1, %s17
      %p204 = scmp.lt.s32.totalorder %s17, 3
      %p205 = pnand %p203, %p204
      %p206 = pneg %p205
      // Predicated region
      $region9: #{_kpnnue_forward.1} parent=5 // pred_check
        _
      $region10: #{_kpnnue_forward.1} parent=5 // pred_check_branch
        %208 = sbr.rel (%p205) target = $region12
      $region11: #{_kpnnue_forward.1} parent=5 // pred_region
        %s209 = ssub.s32 %s17, 1
        // Predicated region
        $region13: #{_kpnnue_forward.1} parent=11 // pred_check
          %p210 = pneg %p64
        $region14: #{_kpnnue_forward.1} parent=11 // pred_check_branch
          %212 = sbr.rel (%p210) target = $region16
        $region15: #{_kpnnue_forward.1} parent=11 // pred_region
          _
        $region16: #{_kpnnue_forward.1} parent=11 // pred_fallthru
          _
        // Predicated region
        $region17: #{_kpnnue_forward.1} parent=11 // pred_check
          %p213 = pneg %p85
        $region18: #{_kpnnue_forward.1} parent=11 // pred_check_branch
          %215 = sbr.rel (%p213) target = $region20
        $region19: #{_kpnnue_forward.1} parent=11 // pred_region
          _
        $region20: #{_kpnnue_forward.1} parent=11 // pred_fallthru
          _
        // Predicated region
        $region21: #{_kpnnue_forward.1} parent=11 // pred_check
          %p216 = pneg %p106
        $region22: #{_kpnnue_forward.1} parent=11 // pred_check_branch
          %218 = sbr.rel (%p216) target = $region24
        $region23: #{_kpnnue_forward.1} parent=11 // pred_region
          _
        $region24: #{_kpnnue_forward.1} parent=11 // pred_fallthru
          _
        // Predicated region
        $region25: #{_kpnnue_forward.1} parent=11 // pred_check
          %p219 = pneg %p127
        $region26: #{_kpnnue_forward.1} parent=11 // pred_check_branch
          %221 = sbr.rel (%p219) target = $region28
        $region27: #{_kpnnue_forward.1} parent=11 // pred_region
          _
        $region28: #{_kpnnue_forward.1} parent=11 // pred_fallthru
          _
        // Predicated region
        $region29: #{_kpnnue_forward.1} parent=11 // pred_check
          %p222 = pneg %p148
        $region30: #{_kpnnue_forward.1} parent=11 // pred_check_branch
          %224 = sbr.rel (%p222) target = $region32
        $region31: #{_kpnnue_forward.1} parent=11 // pred_region
          _
        $region32: #{_kpnnue_forward.1} parent=11 // pred_fallthru
          _
        // Predicated region
        $region33: #{_kpnnue_forward.1} parent=11 // pred_check
          %p225 = pneg %p169
        $region34: #{_kpnnue_forward.1} parent=11 // pred_check_branch
          %227 = sbr.rel (%p225) target = $region36
        $region35: #{_kpnnue_forward.1} parent=11 // pred_region
          _
        $region36: #{_kpnnue_forward.1} parent=11 // pred_fallthru
          _
      $region12: #{_kpnnue_forward.1} parent=5 // pred_fallthru
        _
      %p228 = scmp.lt.s32.totalorder %s17, 2
      // Predicated region
      $region37: #{_kpnnue_forward.1} parent=5 // pred_check
        %p229 = pneg %p228
      $region38: #{_kpnnue_forward.1} parent=5 // pred_check_branch
        %231 = sbr.rel (%p229) target = $region40
      $region39: #{_kpnnue_forward.1} parent=5 // pred_region
        // Predicated region
        $region41: #{_kpnnue_forward.1} parent=39 // pred_check
          %p232 = pneg %p37
        $region42: #{_kpnnue_forward.1} parent=39 // pred_check_branch
          %234 = sbr.rel (%p232) target = $region44
        $region43: #{_kpnnue_forward.1} parent=39 // pred_region
          %s235 = smul.u32 32, %s17
          %p236 = scmp.lt.s32.totalorder %s235, 63
          %s237 = scalar_select %p236, %s235, 63
          %s238 = smul.addr %s237, 7
          %s239 = smul.addr %s238, 8
          %s240 = scalar_lea.vmem %s0, %s239
          %s241 = smul.u32 32, %s17
        $region44: #{_kpnnue_forward.1} parent=39 // pred_fallthru
          _
      $region40: #{_kpnnue_forward.1} parent=5 // pred_fallthru
        _
      %p242 = scmp.le.s32.totalorder 1, %s17
      %p243 = scmp.lt.s32.totalorder %s17, 3
      %p244 = pnand %p242, %p243
      %p245 = pneg %p244
      // Predicated region
      $region45: #{_kpnnue_forward.1} parent=5 // pred_check
        _
      $region46: #{_kpnnue_forward.1} parent=5 // pred_check_branch
        %247 = sbr.rel (%p244) target = $region48
      $region47: #{_kpnnue_forward.1} parent=5 // pred_region
        %s248 = ssub.s32 %s17, 1
        %s249 = smul.u32 32, %s22
        %p250 = scmp.lt.s32.totalorder %s249, 63
        %s251 = scalar_select %p250, %s249, 63
        %s252 = smul.addr %s251, 7
        %s253 = smul.addr %s252, 8
        %s254 = scalar_lea.vmem %s0, %s253
        %p255 = pneg %p43
        %p256 = pneg %p40
        %p257 = pneg %p64
        %p258 = pneg %p61
        %p259 = pneg %p85
        %p260 = pneg %p82
        %p261 = pneg %p106
        %p262 = pneg %p103
        %p263 = pneg %p127
        %p264 = pneg %p124
        %p265 = pneg %p148
        %p266 = pneg %p145
        %p267 = pneg %p169
        %p268 = pneg %p166
        %p269 = pneg %p195
        %p270 = pneg %p192
        %s271 = sand.u32 %s182, 1
        %s272 = scalar_lea.sflag [#allocation4], %s271
        %s273 = sand.u32 %s182, 1
        %s274 = smul.addr %s273, 2
        %s275 = scalar_lea.vmem [#allocation3], %s274
        %s276 = smul.u32 32, %s22
        %p277 = scmp.lt.s32.totalorder %s276, 63
        %s278 = scalar_select %p277, %s276, 63
        %s279 = smul.addr %s278, 7
        %s280 = smul.addr %s279, 8
        %s281 = scalar_lea.vmem %s0, %s280
        %s282 = smul.u32 32, %s22
        %s283 = smul.u32 2, %s22
        %v285 = vld [vmem:[%s281] sm:$0xff]
        %v286 = vld [vmem:[%s281 + $0x8] sm:$0xff]
        %v287 = vld [vmem:[%s281 + $0x10] sm:$0xff]
        %v288 = vld [vmem:[%s281 + $0x18] sm:$0xff]
        %v289 = vld [vmem:[%s281 + $0x20] sm:$0xff]
        %v290 = vld [vmem:[%s281 + $0x28] sm:$0xff]
        %v291 = vld [vmem:[%s281 + $0x30] sm:$0xff]
        %v292 = vld [vmem:[%s281 + $0x38] sm:$0xff]
        %v293 = vld [vmem:[%s281 + $0x40] sm:$0xff]
        %v294 = vld [vmem:[%s281 + $0x48] sm:$0xff]
        %v295 = vld [vmem:[%s281 + $0x50] sm:$0xff]
        %v296 = vld [vmem:[%s281 + $0x58] sm:$0xff]
        %v297 = vld [vmem:[%s281 + $0x60] sm:$0xff]
        %v298 = vld [vmem:[%s281 + $0x68] sm:$0xff]
        %v299 = vld [vmem:[%s281 + $0x70] sm:$0xff]
        %v300 = vld [vmem:[%s281 + $0x78] sm:$0xff]
        %v301 = vld [vmem:[%s281 + $0x80] sm:$0xff]
        %v302 = vld [vmem:[%s281 + $0x88] sm:$0xff]
        %v303 = vld [vmem:[%s281 + $0x90] sm:$0xff]
        %v304 = vld [vmem:[%s281 + $0x98] sm:$0xff]
        %v305 = vld [vmem:[%s281 + $0xa0] sm:$0xff]
        %v306 = vld [vmem:[%s281 + $0xa8] sm:$0xff]
        %v307 = vld [vmem:[%s281 + $0xb0] sm:$0xff]
        %v308 = vld [vmem:[%s281 + $0xb8] sm:$0xff]
        %v309 = vld [vmem:[%s281 + $0xc0] sm:$0xff]
        %v310 = vld [vmem:[%s281 + $0xc8] sm:$0xff]
        %v311 = vld [vmem:[%s281 + $0xd0] sm:$0xff]
        %v312 = vld [vmem:[%s281 + $0xd8] sm:$0xff]
        %v313 = vld [vmem:[%s281 + $0xe0] sm:$0xff]
        %v314 = vld [vmem:[%s281 + $0xe8] sm:$0xff]
        %v315 = vld [vmem:[%s281 + $0xf0] sm:$0xff]
        %v316 = vld [vmem:[%s281 + $0xf8] sm:$0xff]
        %v317 = vld [vmem:[%s281 + $0x100] sm:$0xff]
        %v318 = vld [vmem:[%s281 + $0x108] sm:$0xff]
        %v319 = vld [vmem:[%s281 + $0x110] sm:$0xff]
        %v320 = vld [vmem:[%s281 + $0x118] sm:$0xff]
        %v321 = vld [vmem:[%s281 + $0x120] sm:$0xff]
        %v322 = vld [vmem:[%s281 + $0x128] sm:$0xff]
        %v323 = vld [vmem:[%s281 + $0x130] sm:$0xff]
        %v324 = vld [vmem:[%s281 + $0x138] sm:$0xff]
        %v325 = vld [vmem:[%s281 + $0x140] sm:$0xff]
        %v326 = vld [vmem:[%s281 + $0x148] sm:$0xff]
        %v327 = vld [vmem:[%s281 + $0x150] sm:$0xff]
        %v328 = vld [vmem:[%s281 + $0x158] sm:$0xff]
        %v329 = vld [vmem:[%s281 + $0x160] sm:$0xff]
        %v330 = vld [vmem:[%s281 + $0x168] sm:$0xff]
        %v331 = vld [vmem:[%s281 + $0x170] sm:$0xff]
        %v332 = vld [vmem:[%s281 + $0x178] sm:$0xff]
        %v333 = vld [vmem:[%s281 + $0x180] sm:$0xff]
        %v334 = vld [vmem:[%s281 + $0x188] sm:$0xff]
        %v335 = vld [vmem:[%s281 + $0x190] sm:$0xff]
        %v336 = vld [vmem:[%s281 + $0x198] sm:$0xff]
        %v337 = vld [vmem:[%s281 + $0x1a0] sm:$0xff]
        %v338 = vld [vmem:[%s281 + $0x1a8] sm:$0xff]
        %v339 = vld [vmem:[%s281 + $0x1b0] sm:$0xff]
        %v340 = vld [vmem:[%s281 + $0x1b8] sm:$0xff]
        %v341 = vld [vmem:[%s281 + $0x1c0] sm:$0xff]
        %v342 = vld [vmem:[%s281 + $0x1c8] sm:$0xff]
        %v343 = vld [vmem:[%s281 + $0x1d0] sm:$0xff]
        %v344 = vld [vmem:[%s281 + $0x1d8] sm:$0xff]
        %v345 = vld [vmem:[%s281 + $0x1e0] sm:$0xff]
        %v346 = vld [vmem:[%s281 + $0x1e8] sm:$0xff]
        %v347 = vld [vmem:[%s281 + $0x1f0] sm:$0xff]
        %v348 = vld [vmem:[%s281 + $0x1f8] sm:$0xff]
        %v349 = vld [vmem:[%s281 + $0x200] sm:$0xff]
        %v350 = vld [vmem:[%s281 + $0x208] sm:$0xff]
        %v351 = vld [vmem:[%s281 + $0x210] sm:$0xff]
        %v352 = vld [vmem:[%s281 + $0x218] sm:$0xff]
        %v353 = vld [vmem:[%s281 + $0x220] sm:$0xff]
        %v354 = vld [vmem:[%s281 + $0x228] sm:$0xff]
        %v355 = vld [vmem:[%s281 + $0x230] sm:$0xff]
        %v356 = vld [vmem:[%s281 + $0x238] sm:$0xff]
        %v357 = vld [vmem:[%s281 + $0x240] sm:$0xff]
        %v358 = vld [vmem:[%s281 + $0x248] sm:$0xff]
        %v359 = vld [vmem:[%s281 + $0x250] sm:$0xff]
        %v360 = vld [vmem:[%s281 + $0x258] sm:$0xff]
        %v361 = vld [vmem:[%s281 + $0x260] sm:$0xff]
        %v362 = vld [vmem:[%s281 + $0x268] sm:$0xff]
        %v363 = vld [vmem:[%s281 + $0x270] sm:$0xff]
        %v364 = vld [vmem:[%s281 + $0x278] sm:$0xff]
        %v365 = vld [vmem:[%s281 + $0x280] sm:$0xff]
        %v366 = vld [vmem:[%s281 + $0x288] sm:$0xff]
        %v367 = vld [vmem:[%s281 + $0x290] sm:$0xff]
        %v368 = vld [vmem:[%s281 + $0x298] sm:$0xff]
        %v369 = vld [vmem:[%s281 + $0x2a0] sm:$0xff]
        %v370 = vld [vmem:[%s281 + $0x2a8] sm:$0xff]
        %v371 = vld [vmem:[%s281 + $0x2b0] sm:$0xff]
        %v372 = vld [vmem:[%s281 + $0x2b8] sm:$0xff]
        %v373 = vld [vmem:[%s281 + $0x2c0] sm:$0xff]
        %v374 = vld [vmem:[%s281 + $0x2c8] sm:$0xff]
        %v375 = vld [vmem:[%s281 + $0x2d0] sm:$0xff]
        %v376 = vld [vmem:[%s281 + $0x2d8] sm:$0xff]
        %v377 = vld [vmem:[%s281 + $0x2e0] sm:$0xff]
        %v378 = vld [vmem:[%s281 + $0x2e8] sm:$0xff]
        %v379 = vld [vmem:[%s281 + $0x2f0] sm:$0xff]
        %v380 = vld [vmem:[%s281 + $0x2f8] sm:$0xff]
        %v381 = vld [vmem:[%s281 + $0x300] sm:$0xff]
        %v382 = vld [vmem:[%s281 + $0x308] sm:$0xff]
        %v383 = vld [vmem:[%s281 + $0x310] sm:$0xff]
        %v384 = vld [vmem:[%s281 + $0x318] sm:$0xff]
        %v385 = vld [vmem:[%s281 + $0x320] sm:$0xff]
        %v386 = vld [vmem:[%s281 + $0x328] sm:$0xff]
        %v387 = vld [vmem:[%s281 + $0x330] sm:$0xff]
        %v388 = vld [vmem:[%s281 + $0x338] sm:$0xff]
        %v389 = vld [vmem:[%s281 + $0x340] sm:$0xff]
        %v390 = vld [vmem:[%s281 + $0x348] sm:$0xff]
        %v391 = vld [vmem:[%s281 + $0x350] sm:$0xff]
        %v392 = vld [vmem:[%s281 + $0x358] sm:$0xff]
        %v393 = vld [vmem:[%s281 + $0x360] sm:$0xff]
        %v394 = vld [vmem:[%s281 + $0x368] sm:$0xff]
        %v395 = vld [vmem:[%s281 + $0x370] sm:$0xff]
        %v396 = vld [vmem:[%s281 + $0x378] sm:$0xff]
        %v397 = vld [vmem:[%s281 + $0x380] sm:$0xff]
        %v398 = vld [vmem:[%s281 + $0x388] sm:$0xff]
        %v399 = vld [vmem:[%s281 + $0x390] sm:$0xff]
        %v400 = vld [vmem:[%s281 + $0x398] sm:$0xff]
        %v401 = vld [vmem:[%s281 + $0x3a0] sm:$0xff]
        %v402 = vld [vmem:[%s281 + $0x3a8] sm:$0xff]
        %v403 = vld [vmem:[%s281 + $0x3b0] sm:$0xff]
        %v404 = vld [vmem:[%s281 + $0x3b8] sm:$0xff]
        %v405 = vld [vmem:[%s281 + $0x3c0] sm:$0xff]
        %v406 = vld [vmem:[%s281 + $0x3c8] sm:$0xff]
        %v407 = vld [vmem:[%s281 + $0x3d0] sm:$0xff]
        %v408 = vld [vmem:[%s281 + $0x3d8] sm:$0xff]
        %v409 = vld [vmem:[%s281 + $0x3e0] sm:$0xff]
        %v410 = vld [vmem:[%s281 + $0x3e8] sm:$0xff]
        %v411 = vld [vmem:[%s281 + $0x3f0] sm:$0xff]
        %v412 = vld [vmem:[%s281 + $0x3f8] sm:$0xff]
        %v413 = vld [vmem:[%s281 + $0x400] sm:$0xff]
        %v414 = vld [vmem:[%s281 + $0x408] sm:$0xff]
        %v415 = vld [vmem:[%s281 + $0x410] sm:$0xff]
        %v416 = vld [vmem:[%s281 + $0x418] sm:$0xff]
        %v417 = vld [vmem:[%s281 + $0x420] sm:$0xff]
        %v418 = vld [vmem:[%s281 + $0x428] sm:$0xff]
        %v419 = vld [vmem:[%s281 + $0x430] sm:$0xff]
        %v420 = vld [vmem:[%s281 + $0x438] sm:$0xff]
        %v421 = vld [vmem:[%s281 + $0x440] sm:$0xff]
        %v422 = vld [vmem:[%s281 + $0x448] sm:$0xff]
        %v423 = vld [vmem:[%s281 + $0x450] sm:$0xff]
        %v424 = vld [vmem:[%s281 + $0x458] sm:$0xff]
        %v425 = vld [vmem:[%s281 + $0x460] sm:$0xff]
        %v426 = vld [vmem:[%s281 + $0x468] sm:$0xff]
        %v427 = vld [vmem:[%s281 + $0x470] sm:$0xff]
        %v428 = vld [vmem:[%s281 + $0x478] sm:$0xff]
        %v429 = vld [vmem:[%s281 + $0x480] sm:$0xff]
        %v430 = vld [vmem:[%s281 + $0x488] sm:$0xff]
        %v431 = vld [vmem:[%s281 + $0x490] sm:$0xff]
        %v432 = vld [vmem:[%s281 + $0x498] sm:$0xff]
        %v433 = vld [vmem:[%s281 + $0x4a0] sm:$0xff]
        %v434 = vld [vmem:[%s281 + $0x4a8] sm:$0xff]
        %v435 = vld [vmem:[%s281 + $0x4b0] sm:$0xff]
        %v436 = vld [vmem:[%s281 + $0x4b8] sm:$0xff]
        %v437 = vld [vmem:[%s281 + $0x4c0] sm:$0xff]
        %v438 = vld [vmem:[%s281 + $0x4c8] sm:$0xff]
        %v439 = vld [vmem:[%s281 + $0x4d0] sm:$0xff]
        %v440 = vld [vmem:[%s281 + $0x4d8] sm:$0xff]
        %v441 = vld [vmem:[%s281 + $0x4e0] sm:$0xff]
        %v442 = vld [vmem:[%s281 + $0x4e8] sm:$0xff]
        %v443 = vld [vmem:[%s281 + $0x4f0] sm:$0xff]
        %v444 = vld [vmem:[%s281 + $0x4f8] sm:$0xff]
        %v445 = vld [vmem:[%s281 + $0x500] sm:$0xff]
        %v446 = vld [vmem:[%s281 + $0x508] sm:$0xff]
        %v447 = vld [vmem:[%s281 + $0x510] sm:$0xff]
        %v448 = vld [vmem:[%s281 + $0x518] sm:$0xff]
        %v449 = vld [vmem:[%s281 + $0x520] sm:$0xff]
        %v450 = vld [vmem:[%s281 + $0x528] sm:$0xff]
        %v451 = vld [vmem:[%s281 + $0x530] sm:$0xff]
        %v452 = vld [vmem:[%s281 + $0x538] sm:$0xff]
        %v453 = vld [vmem:[%s281 + $0x540] sm:$0xff]
        %v454 = vld [vmem:[%s281 + $0x548] sm:$0xff]
        %v455 = vld [vmem:[%s281 + $0x550] sm:$0xff]
        %v456 = vld [vmem:[%s281 + $0x558] sm:$0xff]
        %v457 = vld [vmem:[%s281 + $0x560] sm:$0xff]
        %v458 = vld [vmem:[%s281 + $0x568] sm:$0xff]
        %v459 = vld [vmem:[%s281 + $0x570] sm:$0xff]
        %v460 = vld [vmem:[%s281 + $0x578] sm:$0xff]
        %v461 = vld [vmem:[%s281 + $0x580] sm:$0xff]
        %v462 = vld [vmem:[%s281 + $0x588] sm:$0xff]
        %v463 = vld [vmem:[%s281 + $0x590] sm:$0xff]
        %v464 = vld [vmem:[%s281 + $0x598] sm:$0xff]
        %v465 = vld [vmem:[%s281 + $0x5a0] sm:$0xff]
        %v466 = vld [vmem:[%s281 + $0x5a8] sm:$0xff]
        %v467 = vld [vmem:[%s281 + $0x5b0] sm:$0xff]
        %v468 = vld [vmem:[%s281 + $0x5b8] sm:$0xff]
        %v469 = vld [vmem:[%s281 + $0x5c0] sm:$0xff]
        %v470 = vld [vmem:[%s281 + $0x5c8] sm:$0xff]
        %v471 = vld [vmem:[%s281 + $0x5d0] sm:$0xff]
        %v472 = vld [vmem:[%s281 + $0x5d8] sm:$0xff]
        %v473 = vld [vmem:[%s281 + $0x5e0] sm:$0xff]
        %v474 = vld [vmem:[%s281 + $0x5e8] sm:$0xff]
        %v475 = vld [vmem:[%s281 + $0x5f0] sm:$0xff]
        %v476 = vld [vmem:[%s281 + $0x5f8] sm:$0xff]
        %v477 = vld [vmem:[%s281 + $0x600] sm:$0xff]
        %v478 = vld [vmem:[%s281 + $0x608] sm:$0xff]
        %v479 = vld [vmem:[%s281 + $0x610] sm:$0xff]
        %v480 = vld [vmem:[%s281 + $0x618] sm:$0xff]
        %v481 = vld [vmem:[%s281 + $0x620] sm:$0xff]
        %v482 = vld [vmem:[%s281 + $0x628] sm:$0xff]
        %v483 = vld [vmem:[%s281 + $0x630] sm:$0xff]
        %v484 = vld [vmem:[%s281 + $0x638] sm:$0xff]
        %v485 = vld [vmem:[%s281 + $0x640] sm:$0xff]
        %v486 = vld [vmem:[%s281 + $0x648] sm:$0xff]
        %v487 = vld [vmem:[%s281 + $0x650] sm:$0xff]
        %v488 = vld [vmem:[%s281 + $0x658] sm:$0xff]
        %v489 = vld [vmem:[%s281 + $0x660] sm:$0xff]
        %v490 = vld [vmem:[%s281 + $0x668] sm:$0xff]
        %v491 = vld [vmem:[%s281 + $0x670] sm:$0xff]
        %v492 = vld [vmem:[%s281 + $0x678] sm:$0xff]
        %v493 = vld [vmem:[%s281 + $0x680] sm:$0xff]
        %v494 = vld [vmem:[%s281 + $0x688] sm:$0xff]
        %v495 = vld [vmem:[%s281 + $0x690] sm:$0xff]
        %v496 = vld [vmem:[%s281 + $0x698] sm:$0xff]
        %v497 = vld [vmem:[%s281 + $0x6a0] sm:$0xff]
        %v498 = vld [vmem:[%s281 + $0x6a8] sm:$0xff]
        %v499 = vld [vmem:[%s281 + $0x6b0] sm:$0xff]
        %v500 = vld [vmem:[%s281 + $0x6b8] sm:$0xff]
        %v501 = vld [vmem:[%s281 + $0x6c0] sm:$0xff]
        %v502 = vld [vmem:[%s281 + $0x6c8] sm:$0xff]
        %v503 = vld [vmem:[%s281 + $0x6d0] sm:$0xff]
        %v504 = vld [vmem:[%s281 + $0x6d8] sm:$0xff]
        %v505 = vld [vmem:[%s281 + $0x6e0] sm:$0xff]
        %v506 = vld [vmem:[%s281 + $0x6e8] sm:$0xff]
        %v507 = vld [vmem:[%s281 + $0x6f0] sm:$0xff]
        %v508 = vld [vmem:[%s281 + $0x6f8] sm:$0xff]
        %v509 = vpack.c.bf16 %v292, %v285
        %v510 = vpack.c.bf16 %v293, %v286
        %v511 = vpack.c.bf16 %v294, %v287
        %v512 = vpack.c.bf16 %v295, %v288
        %v513 = vpack.c.bf16 %v296, %v289
        %v514 = vpack.c.bf16 %v297, %v290
        %v515 = vpack.c.bf16 %v298, %v291
        %v516 = vpack.c.bf16 %v306, %v299
        %v517 = vpack.c.bf16 %v307, %v300
        %v518 = vpack.c.bf16 %v308, %v301
        %v519 = vpack.c.bf16 %v309, %v302
        %v520 = vpack.c.bf16 %v310, %v303
        %v521 = vpack.c.bf16 %v311, %v304
        %v522 = vpack.c.bf16 %v312, %v305
        %v523 = vpack.c.bf16 %v320, %v313
        %v524 = vpack.c.bf16 %v321, %v314
        %v525 = vpack.c.bf16 %v322, %v315
        %v526 = vpack.c.bf16 %v323, %v316
        %v527 = vpack.c.bf16 %v324, %v317
        %v528 = vpack.c.bf16 %v325, %v318
        %v529 = vpack.c.bf16 %v326, %v319
        %v530 = vpack.c.bf16 %v334, %v327
        %v531 = vpack.c.bf16 %v335, %v328
        %v532 = vpack.c.bf16 %v336, %v329
        %v533 = vpack.c.bf16 %v337, %v330
        %v534 = vpack.c.bf16 %v338, %v331
        %v535 = vpack.c.bf16 %v339, %v332
        %v536 = vpack.c.bf16 %v340, %v333
        %v537 = vpack.c.bf16 %v348, %v341
        %v538 = vpack.c.bf16 %v349, %v342
        %v539 = vpack.c.bf16 %v350, %v343
        %v540 = vpack.c.bf16 %v351, %v344
        %v541 = vpack.c.bf16 %v352, %v345
        %v542 = vpack.c.bf16 %v353, %v346
        %v543 = vpack.c.bf16 %v354, %v347
        %v544 = vpack.c.bf16 %v362, %v355
        %v545 = vpack.c.bf16 %v363, %v356
        %v546 = vpack.c.bf16 %v364, %v357
        %v547 = vpack.c.bf16 %v365, %v358
        %v548 = vpack.c.bf16 %v366, %v359
        %v549 = vpack.c.bf16 %v367, %v360
        %v550 = vpack.c.bf16 %v368, %v361
        %v551 = vpack.c.bf16 %v376, %v369
        %v552 = vpack.c.bf16 %v377, %v370
        %v553 = vpack.c.bf16 %v378, %v371
        %v554 = vpack.c.bf16 %v379, %v372
        %v555 = vpack.c.bf16 %v380, %v373
        %v556 = vpack.c.bf16 %v381, %v374
        %v557 = vpack.c.bf16 %v382, %v375
        %v558 = vpack.c.bf16 %v390, %v383
        %v559 = vpack.c.bf16 %v391, %v384
        %v560 = vpack.c.bf16 %v392, %v385
        %v561 = vpack.c.bf16 %v393, %v386
        %v562 = vpack.c.bf16 %v394, %v387
        %v563 = vpack.c.bf16 %v395, %v388
        %v564 = vpack.c.bf16 %v396, %v389
        %v565 = vpack.c.bf16 %v404, %v397
        %v566 = vpack.c.bf16 %v405, %v398
        %v567 = vpack.c.bf16 %v406, %v399
        %v568 = vpack.c.bf16 %v407, %v400
        %v569 = vpack.c.bf16 %v408, %v401
        %v570 = vpack.c.bf16 %v409, %v402
        %v571 = vpack.c.bf16 %v410, %v403
        %v572 = vpack.c.bf16 %v418, %v411
        %v573 = vpack.c.bf16 %v419, %v412
        %v574 = vpack.c.bf16 %v420, %v413
        %v575 = vpack.c.bf16 %v421, %v414
        %v576 = vpack.c.bf16 %v422, %v415
        %v577 = vpack.c.bf16 %v423, %v416
        %v578 = vpack.c.bf16 %v424, %v417
        %v579 = vpack.c.bf16 %v432, %v425
        %v580 = vpack.c.bf16 %v433, %v426
        %v581 = vpack.c.bf16 %v434, %v427
        %v582 = vpack.c.bf16 %v435, %v428
        %v583 = vpack.c.bf16 %v436, %v429
        %v584 = vpack.c.bf16 %v437, %v430
        %v585 = vpack.c.bf16 %v438, %v431
        %v586 = vpack.c.bf16 %v446, %v439
        %v587 = vpack.c.bf16 %v447, %v440
        %v588 = vpack.c.bf16 %v448, %v441
        %v589 = vpack.c.bf16 %v449, %v442
        %v590 = vpack.c.bf16 %v450, %v443
        %v591 = vpack.c.bf16 %v451, %v444
        %v592 = vpack.c.bf16 %v452, %v445
        %v593 = vpack.c.bf16 %v460, %v453
        %v594 = vpack.c.bf16 %v461, %v454
        %v595 = vpack.c.bf16 %v462, %v455
        %v596 = vpack.c.bf16 %v463, %v456
        %v597 = vpack.c.bf16 %v464, %v457
        %v598 = vpack.c.bf16 %v465, %v458
        %v599 = vpack.c.bf16 %v466, %v459
        %v600 = vpack.c.bf16 %v474, %v467
        %v601 = vpack.c.bf16 %v475, %v468
        %v602 = vpack.c.bf16 %v476, %v469
        %v603 = vpack.c.bf16 %v477, %v470
        %v604 = vpack.c.bf16 %v478, %v471
        %v605 = vpack.c.bf16 %v479, %v472
        %v606 = vpack.c.bf16 %v480, %v473
        %v607 = vpack.c.bf16 %v488, %v481
        %v608 = vpack.c.bf16 %v489, %v482
        %v609 = vpack.c.bf16 %v490, %v483
        %v610 = vpack.c.bf16 %v491, %v484
        %v611 = vpack.c.bf16 %v492, %v485
        %v612 = vpack.c.bf16 %v493, %v486
        %v613 = vpack.c.bf16 %v494, %v487
        %v614 = vpack.c.bf16 %v502, %v495
        %v615 = vpack.c.bf16 %v503, %v496
        %v616 = vpack.c.bf16 %v504, %v497
        %v617 = vpack.c.bf16 %v505, %v498
        %v618 = vpack.c.bf16 %v506, %v499
        %v619 = vpack.c.bf16 %v507, %v500
        %v620 = vpack.c.bf16 %v508, %v501
        %v621 = vld [vmem:[%s1] sm:$0xff]
        %v622 = vld [vmem:[%s1 + $0x8] sm:$0xff]
        %v623 = vld [vmem:[%s1 + $0x10] sm:$0xff]
        %v624 = vld [vmem:[%s1 + $0x18] sm:$0xff]
        %v625 = vld [vmem:[%s1 + $0x20] sm:$0xff]
        %v626 = vld [vmem:[%s1 + $0x28] sm:$0xff]
        %v627 = vld [vmem:[%s1 + $0x30] sm:$0xff]
        %v628 = vld [vmem:[%s1 + $0x38] sm:$0xff]
        %v629 = vld [vmem:[%s1 + $0x40] sm:$0xff]
        %v630 = vld [vmem:[%s1 + $0x48] sm:$0xff]
        %v631 = vld [vmem:[%s1 + $0x50] sm:$0xff]
        %v632 = vld [vmem:[%s1 + $0x58] sm:$0xff]
        %v633 = vld [vmem:[%s1 + $0x60] sm:$0xff]
        %v634 = vld [vmem:[%s1 + $0x68] sm:$0xff]
        %v635 = vld [vmem:[%s1 + $0x70] sm:$0xff]
        %v636 = vld [vmem:[%s1 + $0x78] sm:$0xff]
        %v637 = vld [vmem:[%s1 + $0x80] sm:$0xff]
        %v638 = vld [vmem:[%s1 + $0x88] sm:$0xff]
        %v639 = vld [vmem:[%s1 + $0x90] sm:$0xff]
        %v640 = vld [vmem:[%s1 + $0x98] sm:$0xff]
        %v641 = vld [vmem:[%s1 + $0xa0] sm:$0xff]
        %v642 = vld [vmem:[%s1 + $0xa8] sm:$0xff]
        %v643 = vld [vmem:[%s1 + $0xb0] sm:$0xff]
        %v644 = vld [vmem:[%s1 + $0xb8] sm:$0xff]
        %v645 = vld [vmem:[%s1 + $0xc0] sm:$0xff]
        %v646 = vld [vmem:[%s1 + $0xc8] sm:$0xff]
        %v647 = vld [vmem:[%s1 + $0xd0] sm:$0xff]
        %v648 = vld [vmem:[%s1 + $0xd8] sm:$0xff]
        %v649 = vld [vmem:[%s1 + $0xe0] sm:$0xff]
        %v650 = vld [vmem:[%s1 + $0xe8] sm:$0xff]
        %v651 = vld [vmem:[%s1 + $0xf0] sm:$0xff]
        %v652 = vld [vmem:[%s1 + $0xf8] sm:$0xff]
        %v653 = vld [vmem:[%s1 + $0x100] sm:$0xff]
        %v654 = vld [vmem:[%s1 + $0x108] sm:$0xff]
        %v655 = vld [vmem:[%s1 + $0x110] sm:$0xff]
        %v656 = vld [vmem:[%s1 + $0x118] sm:$0xff]
        %v657 = vld [vmem:[%s1 + $0x120] sm:$0xff]
        %v658 = vld [vmem:[%s1 + $0x128] sm:$0xff]
        %v659 = vld [vmem:[%s1 + $0x130] sm:$0xff]
        %v660 = vld [vmem:[%s1 + $0x138] sm:$0xff]
        %v661 = vld [vmem:[%s1 + $0x140] sm:$0xff]
        %v662 = vld [vmem:[%s1 + $0x148] sm:$0xff]
        %v663 = vld [vmem:[%s1 + $0x150] sm:$0xff]
        %v664 = vld [vmem:[%s1 + $0x158] sm:$0xff]
        %v665 = vld [vmem:[%s1 + $0x160] sm:$0xff]
        %v666 = vld [vmem:[%s1 + $0x168] sm:$0xff]
        %v667 = vld [vmem:[%s1 + $0x170] sm:$0xff]
        %v668 = vld [vmem:[%s1 + $0x178] sm:$0xff]
        %v669 = vld [vmem:[%s1 + $0x180] sm:$0xff]
        %v670 = vld [vmem:[%s1 + $0x188] sm:$0xff]
        %v671 = vld [vmem:[%s1 + $0x190] sm:$0xff]
        %v672 = vld [vmem:[%s1 + $0x198] sm:$0xff]
        %v673 = vld [vmem:[%s1 + $0x1a0] sm:$0xff]
        %v674 = vld [vmem:[%s1 + $0x1a8] sm:$0xff]
        %v675 = vld [vmem:[%s1 + $0x1b0] sm:$0xff]
        %v676 = vld [vmem:[%s1 + $0x1b8] sm:$0xff]
        %v677 = vld [vmem:[%s1 + $0x1c0] sm:$0xff]
        %v678 = vld [vmem:[%s1 + $0x1c8] sm:$0xff]
        %v679 = vld [vmem:[%s1 + $0x1d0] sm:$0xff]
        %v680 = vld [vmem:[%s1 + $0x1d8] sm:$0xff]
        %v681 = vld [vmem:[%s1 + $0x1e0] sm:$0xff]
        %v682 = vld [vmem:[%s1 + $0x1e8] sm:$0xff]
        %v683 = vld [vmem:[%s1 + $0x1f0] sm:$0xff]
        %v684 = vld [vmem:[%s1 + $0x1f8] sm:$0xff]
        %v685 = vld [vmem:[%s1 + $0x200] sm:$0xff]
        %v686 = vld [vmem:[%s1 + $0x208] sm:$0xff]
        %v687 = vld [vmem:[%s1 + $0x210] sm:$0xff]
        %v688 = vld [vmem:[%s1 + $0x218] sm:$0xff]
        %v689 = vld [vmem:[%s1 + $0x220] sm:$0xff]
        %v690 = vld [vmem:[%s1 + $0x228] sm:$0xff]
        %v691 = vld [vmem:[%s1 + $0x230] sm:$0xff]
        %v692 = vld [vmem:[%s1 + $0x238] sm:$0xff]
        %v693 = vld [vmem:[%s1 + $0x240] sm:$0xff]
        %v694 = vld [vmem:[%s1 + $0x248] sm:$0xff]
        %v695 = vld [vmem:[%s1 + $0x250] sm:$0xff]
        %v696 = vld [vmem:[%s1 + $0x258] sm:$0xff]
        %v697 = vld [vmem:[%s1 + $0x260] sm:$0xff]
        %v698 = vld [vmem:[%s1 + $0x268] sm:$0xff]
        %v699 = vld [vmem:[%s1 + $0x270] sm:$0xff]
        %v700 = vld [vmem:[%s1 + $0x278] sm:$0xff]
        %v701 = vld [vmem:[%s1 + $0x280] sm:$0xff]
        %v702 = vld [vmem:[%s1 + $0x288] sm:$0xff]
        %v703 = vld [vmem:[%s1 + $0x290] sm:$0xff]
        %v704 = vld [vmem:[%s1 + $0x298] sm:$0xff]
        %v705 = vld [vmem:[%s1 + $0x2a0] sm:$0xff]
        %v706 = vld [vmem:[%s1 + $0x2a8] sm:$0xff]
        %v707 = vld [vmem:[%s1 + $0x2b0] sm:$0xff]
        %v708 = vld [vmem:[%s1 + $0x2b8] sm:$0xff]
        %v709 = vld [vmem:[%s1 + $0x2c0] sm:$0xff]
        %v710 = vld [vmem:[%s1 + $0x2c8] sm:$0xff]
        %v711 = vld [vmem:[%s1 + $0x2d0] sm:$0xff]
        %v712 = vld [vmem:[%s1 + $0x2d8] sm:$0xff]
        %v713 = vld [vmem:[%s1 + $0x2e0] sm:$0xff]
        %v714 = vld [vmem:[%s1 + $0x2e8] sm:$0xff]
        %v715 = vld [vmem:[%s1 + $0x2f0] sm:$0xff]
        %v716 = vld [vmem:[%s1 + $0x2f8] sm:$0xff]
        %v717 = vld [vmem:[%s1 + $0x300] sm:$0xff]
        %v718 = vld [vmem:[%s1 + $0x308] sm:$0xff]
        %v719 = vld [vmem:[%s1 + $0x310] sm:$0xff]
        %v720 = vld [vmem:[%s1 + $0x318] sm:$0xff]
        %v721 = vld [vmem:[%s1 + $0x320] sm:$0xff]
        %v722 = vld [vmem:[%s1 + $0x328] sm:$0xff]
        %v723 = vld [vmem:[%s1 + $0x330] sm:$0xff]
        %v724 = vld [vmem:[%s1 + $0x338] sm:$0xff]
        %v725 = vld [vmem:[%s2] sm:$0x3]
        %v727 = vlaneseq
        %v728 = vshrl.u32 %v727, 7
        %v729 = vsub.s32 0, %v728
        %v730 = vrot.slane %v725, %v729
        %v731 = vlaneseq
        %v732 = vshrl.u32 %v731, 7
        %v733 = vsub.s32 1, %v732
        %v734 = vrot.slane %v725, %v733
        %v841 = vunpack.c.l.b16 %v621
        %v842 = vunpack.c.h.b16 %v621
        %v843 = vunpack.c.l.b16 %v622
        %v844 = vunpack.c.h.b16 %v622
        %v845 = vunpack.c.l.b16 %v623
        %v846 = vunpack.c.h.b16 %v623
        %v847 = vunpack.c.l.b16 %v624
        %v848 = vunpack.c.h.b16 %v624
        %v849 = vunpack.c.l.b16 %v625
        %v850 = vunpack.c.h.b16 %v625
        %v851 = vunpack.c.l.b16 %v626
        %v852 = vunpack.c.h.b16 %v626
        %v853 = vunpack.c.l.b16 %v627
        %v854 = vunpack.c.h.b16 %v627
        %v855 = vunpack.c.l.b16 %v628
        %v856 = vunpack.c.h.b16 %v628
        %v857 = vunpack.c.l.b16 %v629
        %v858 = vunpack.c.h.b16 %v629
        %v859 = vunpack.c.l.b16 %v630
        %v860 = vunpack.c.h.b16 %v630
        %v861 = vunpack.c.l.b16 %v631
        %v862 = vunpack.c.h.b16 %v631
        %v863 = vunpack.c.l.b16 %v632
        %v864 = vunpack.c.h.b16 %v632
        %v865 = vunpack.c.l.b16 %v633
        %v866 = vunpack.c.h.b16 %v633
        %v867 = vunpack.c.l.b16 %v634
        %v868 = vunpack.c.h.b16 %v634
        %v869 = vunpack.c.l.b16 %v635
        %v870 = vunpack.c.h.b16 %v635
        %v871 = vunpack.c.l.b16 %v636
        %v872 = vunpack.c.h.b16 %v636
        %v873 = vunpack.c.l.b16 %v637
        %v874 = vunpack.c.h.b16 %v637
        %v875 = vunpack.c.l.b16 %v638
        %v876 = vunpack.c.h.b16 %v638
        %v877 = vunpack.c.l.b16 %v639
        %v878 = vunpack.c.h.b16 %v639
        %v879 = vunpack.c.l.b16 %v640
        %v880 = vunpack.c.h.b16 %v640
        %v881 = vunpack.c.l.b16 %v641
        %v882 = vunpack.c.h.b16 %v641
        %v883 = vunpack.c.l.b16 %v642
        %v884 = vunpack.c.h.b16 %v642
        %v885 = vunpack.c.l.b16 %v643
        %v886 = vunpack.c.h.b16 %v643
        %v887 = vunpack.c.l.b16 %v644
        %v888 = vunpack.c.h.b16 %v644
        %v889 = vunpack.c.l.b16 %v645
        %v890 = vunpack.c.h.b16 %v645
        %v891 = vunpack.c.l.b16 %v646
        %v892 = vunpack.c.h.b16 %v646
        %v893 = vunpack.c.l.b16 %v647
        %v894 = vunpack.c.h.b16 %v647
        %v895 = vunpack.c.l.b16 %v648
        %v896 = vunpack.c.h.b16 %v648
        %v897 = vunpack.c.l.b16 %v649
        %v898 = vunpack.c.h.b16 %v649
        %v899 = vunpack.c.l.b16 %v650
        %v900 = vunpack.c.h.b16 %v650
        %v901 = vunpack.c.l.b16 %v651
        %v902 = vunpack.c.h.b16 %v651
        %v903 = vunpack.c.l.b16 %v652
        %v904 = vunpack.c.h.b16 %v652
        %v905 = vunpack.c.l.b16 %v653
        %v906 = vunpack.c.h.b16 %v653
        %v907 = vunpack.c.l.b16 %v654
        %v908 = vunpack.c.h.b16 %v654
        %v909 = vunpack.c.l.b16 %v655
        %v910 = vunpack.c.h.b16 %v655
        %v911 = vunpack.c.l.b16 %v656
        %v912 = vunpack.c.h.b16 %v656
        %v913 = vunpack.c.l.b16 %v657
        %v914 = vunpack.c.h.b16 %v657
        %v915 = vunpack.c.l.b16 %v658
        %v916 = vunpack.c.h.b16 %v658
        %v917 = vunpack.c.l.b16 %v659
        %v918 = vunpack.c.h.b16 %v659
        %v919 = vunpack.c.l.b16 %v660
        %v920 = vunpack.c.h.b16 %v660
        %v921 = vunpack.c.l.b16 %v661
        %v922 = vunpack.c.h.b16 %v661
        %v923 = vunpack.c.l.b16 %v662
        %v924 = vunpack.c.h.b16 %v662
        %v925 = vunpack.c.l.b16 %v663
        %v926 = vunpack.c.h.b16 %v663
        %v927 = vunpack.c.l.b16 %v664
        %v928 = vunpack.c.h.b16 %v664
        %v929 = vunpack.c.l.b16 %v665
        %v930 = vunpack.c.h.b16 %v665
        %v931 = vunpack.c.l.b16 %v666
        %v932 = vunpack.c.h.b16 %v666
        %v933 = vunpack.c.l.b16 %v667
        %v934 = vunpack.c.h.b16 %v667
        %v935 = vunpack.c.l.b16 %v668
        %v936 = vunpack.c.h.b16 %v668
        %v937 = vunpack.c.l.b16 %v669
        %v938 = vunpack.c.h.b16 %v669
        %v939 = vunpack.c.l.b16 %v670
        %v940 = vunpack.c.h.b16 %v670
        %v941 = vunpack.c.l.b16 %v671
        %v942 = vunpack.c.h.b16 %v671
        %v943 = vunpack.c.l.b16 %v672
        %v944 = vunpack.c.h.b16 %v672
        %v945 = vunpack.c.l.b16 %v673
        %v946 = vunpack.c.h.b16 %v673
        %v947 = vunpack.c.l.b16 %v674
        %v948 = vunpack.c.h.b16 %v674
        %v949 = vunpack.c.l.b16 %v675
        %v950 = vunpack.c.h.b16 %v675
        %v951 = vunpack.c.l.b16 %v676
        %v952 = vunpack.c.h.b16 %v676
        %v953 = vunpack.c.l.b16 %v677
        %v954 = vunpack.c.h.b16 %v677
        %v955 = vunpack.c.l.b16 %v678
        %v956 = vunpack.c.h.b16 %v678
        %v957 = vunpack.c.l.b16 %v679
        %v958 = vunpack.c.h.b16 %v679
        %v959 = vunpack.c.l.b16 %v680
        %v960 = vunpack.c.h.b16 %v680
        %v961 = vunpack.c.l.b16 %v681
        %v962 = vunpack.c.h.b16 %v681
        %v963 = vunpack.c.l.b16 %v682
        %v964 = vunpack.c.h.b16 %v682
        %v965 = vunpack.c.l.b16 %v683
        %v966 = vunpack.c.h.b16 %v683
        %v967 = vunpack.c.l.b16 %v684
        %v968 = vunpack.c.h.b16 %v684
        %v969 = vunpack.c.l.b16 %v685
        %v970 = vunpack.c.h.b16 %v685
        %v971 = vunpack.c.l.b16 %v686
        %v972 = vunpack.c.h.b16 %v686
        %v973 = vunpack.c.l.b16 %v687
        %v974 = vunpack.c.h.b16 %v687
        %v975 = vunpack.c.l.b16 %v688
        %v976 = vunpack.c.h.b16 %v688
        %v977 = vunpack.c.l.b16 %v689
        %v978 = vunpack.c.h.b16 %v689
        %v979 = vunpack.c.l.b16 %v690
        %v980 = vunpack.c.h.b16 %v690
        %v981 = vunpack.c.l.b16 %v691
        %v982 = vunpack.c.h.b16 %v691
        %v983 = vunpack.c.l.b16 %v692
        %v984 = vunpack.c.h.b16 %v692
        %v985 = vunpack.c.l.b16 %v693
        %v986 = vunpack.c.h.b16 %v693
        %v987 = vunpack.c.l.b16 %v694
        %v988 = vunpack.c.h.b16 %v694
        %v989 = vunpack.c.l.b16 %v695
        %v990 = vunpack.c.h.b16 %v695
        %v991 = vunpack.c.l.b16 %v696
        %v992 = vunpack.c.h.b16 %v696
        %v993 = vunpack.c.l.b16 %v697
        %v994 = vunpack.c.h.b16 %v697
        %v995 = vunpack.c.l.b16 %v698
        %v996 = vunpack.c.h.b16 %v698
        %v997 = vunpack.c.l.b16 %v699
        %v998 = vunpack.c.h.b16 %v699
        %v999 = vunpack.c.l.b16 %v700
        %v1000 = vunpack.c.h.b16 %v700
        %v1001 = vunpack.c.l.b16 %v701
        %v1002 = vunpack.c.h.b16 %v701
        %v1003 = vunpack.c.l.b16 %v702
        %v1004 = vunpack.c.h.b16 %v702
        %v1005 = vunpack.c.l.b16 %v703
        %v1006 = vunpack.c.h.b16 %v703
        %v1007 = vunpack.c.l.b16 %v704
        %v1008 = vunpack.c.h.b16 %v704
        %v1009 = vunpack.c.l.b16 %v705
        %v1010 = vunpack.c.h.b16 %v705
        %v1011 = vunpack.c.l.b16 %v706
        %v1012 = vunpack.c.h.b16 %v706
        %v1013 = vunpack.c.l.b16 %v707
        %v1014 = vunpack.c.h.b16 %v707
        %v1015 = vunpack.c.l.b16 %v708
        %v1016 = vunpack.c.h.b16 %v708
        %v1017 = vunpack.c.l.b16 %v709
        %v1018 = vunpack.c.h.b16 %v709
        %v1019 = vunpack.c.l.b16 %v710
        %v1020 = vunpack.c.h.b16 %v710
        %v1021 = vunpack.c.l.b16 %v711
        %v1022 = vunpack.c.h.b16 %v711
        %v1023 = vunpack.c.l.b16 %v712
        %v1024 = vunpack.c.h.b16 %v712
        %v1025 = vunpack.c.l.b16 %v713
        %v1026 = vunpack.c.h.b16 %v713
        %v1027 = vunpack.c.l.b16 %v714
        %v1028 = vunpack.c.h.b16 %v714
        %v1029 = vunpack.c.l.b16 %v715
        %v1030 = vunpack.c.h.b16 %v715
        %v1031 = vunpack.c.l.b16 %v716
        %v1032 = vunpack.c.h.b16 %v716
        %v1033 = vunpack.c.l.b16 %v717
        %v1034 = vunpack.c.h.b16 %v717
        %v1035 = vunpack.c.l.b16 %v718
        %v1036 = vunpack.c.h.b16 %v718
        %v1037 = vunpack.c.l.b16 %v719
        %v1038 = vunpack.c.h.b16 %v719
        %v1039 = vunpack.c.l.b16 %v720
        %v1040 = vunpack.c.h.b16 %v720
        %v1041 = vunpack.c.l.b16 %v721
        %v1042 = vunpack.c.h.b16 %v721
        %v1043 = vunpack.c.l.b16 %v722
        %v1044 = vunpack.c.h.b16 %v722
        %v1045 = vunpack.c.l.b16 %v723
        %v1046 = vunpack.c.h.b16 %v723
        %v1047 = vunpack.c.l.b16 %v724
        %v1048 = vunpack.c.h.b16 %v724
        %v1049 = vpack.c.b16 %v843, %v841
        %v1050 = vpack.c.b16 %v844, %v842
        %v1051 = vpack.c.b16 %v847, %v845
        %v1052 = vpack.c.b16 %v848, %v846
        %v1053 = vpack.c.b16 %v851, %v849
        %v1054 = vpack.c.b16 %v852, %v850
        %v1055 = vpack.c.b16 %v855, %v853
        %v1056 = vpack.c.b16 %v856, %v854
        %v1057 = vpack.c.b16 %v859, %v857
        %v1058 = vpack.c.b16 %v860, %v858
        %v1059 = vpack.c.b16 %v863, %v861
        %v1060 = vpack.c.b16 %v864, %v862
        %v1061 = vpack.c.b16 %v867, %v865
        %v1062 = vpack.c.b16 %v868, %v866
        %v1063 = vpack.c.b16 %v871, %v869
        %v1064 = vpack.c.b16 %v872, %v870
        %v1065 = vpack.c.b16 %v875, %v873
        %v1066 = vpack.c.b16 %v876, %v874
        %v1067 = vpack.c.b16 %v879, %v877
        %v1068 = vpack.c.b16 %v880, %v878
        %v1069 = vpack.c.b16 %v883, %v881
        %v1070 = vpack.c.b16 %v884, %v882
        %v1071 = vpack.c.b16 %v887, %v885
        %v1072 = vpack.c.b16 %v888, %v886
        %v1073 = vpack.c.b16 %v891, %v889
        %v1074 = vpack.c.b16 %v892, %v890
        %v1075 = vpack.c.b16 %v895, %v893
        %v1076 = vpack.c.b16 %v896, %v894
        %v1077 = vpack.c.b16 %v899, %v897
        %v1078 = vpack.c.b16 %v900, %v898
        %v1079 = vpack.c.b16 %v903, %v901
        %v1080 = vpack.c.b16 %v904, %v902
        %v1081 = vpack.c.b16 %v907, %v905
        %v1082 = vpack.c.b16 %v908, %v906
        %v1083 = vpack.c.b16 %v911, %v909
        %v1084 = vpack.c.b16 %v912, %v910
        %v1085 = vpack.c.b16 %v915, %v913
        %v1086 = vpack.c.b16 %v916, %v914
        %v1087 = vpack.c.b16 %v919, %v917
        %v1088 = vpack.c.b16 %v920, %v918
        %v1089 = vpack.c.b16 %v923, %v921
        %v1090 = vpack.c.b16 %v924, %v922
        %v1091 = vpack.c.b16 %v927, %v925
        %v1092 = vpack.c.b16 %v928, %v926
        %v1093 = vpack.c.b16 %v931, %v929
        %v1094 = vpack.c.b16 %v932, %v930
        %v1095 = vpack.c.b16 %v935, %v933
        %v1096 = vpack.c.b16 %v936, %v934
        %v1097 = vpack.c.b16 %v939, %v937
        %v1098 = vpack.c.b16 %v940, %v938
        %v1099 = vpack.c.b16 %v943, %v941
        %v1100 = vpack.c.b16 %v944, %v942
        %v1101 = vpack.c.b16 %v947, %v945
        %v1102 = vpack.c.b16 %v948, %v946
        %v1103 = vpack.c.b16 %v951, %v949
        %v1104 = vpack.c.b16 %v952, %v950
        %v1105 = vpack.c.b16 %v955, %v953
        %v1106 = vpack.c.b16 %v956, %v954
        %v1107 = vpack.c.b16 %v959, %v957
        %v1108 = vpack.c.b16 %v960, %v958
        %v1109 = vpack.c.b16 %v963, %v961
        %v1110 = vpack.c.b16 %v964, %v962
        %v1111 = vpack.c.b16 %v967, %v965
        %v1112 = vpack.c.b16 %v968, %v966
        %v1113 = vpack.c.b16 %v971, %v969
        %v1114 = vpack.c.b16 %v972, %v970
        %v1115 = vpack.c.b16 %v975, %v973
        %v1116 = vpack.c.b16 %v976, %v974
        %v1117 = vpack.c.b16 %v979, %v977
        %v1118 = vpack.c.b16 %v980, %v978
        %v1119 = vpack.c.b16 %v983, %v981
        %v1120 = vpack.c.b16 %v984, %v982
        %v1121 = vpack.c.b16 %v987, %v985
        %v1122 = vpack.c.b16 %v988, %v986
        %v1123 = vpack.c.b16 %v991, %v989
        %v1124 = vpack.c.b16 %v992, %v990
        %v1125 = vpack.c.b16 %v995, %v993
        %v1126 = vpack.c.b16 %v996, %v994
        %v1127 = vpack.c.b16 %v999, %v997
        %v1128 = vpack.c.b16 %v1000, %v998
        %v1129 = vpack.c.b16 %v1003, %v1001
        %v1130 = vpack.c.b16 %v1004, %v1002
        %v1131 = vpack.c.b16 %v1007, %v1005
        %v1132 = vpack.c.b16 %v1008, %v1006
        %v1133 = vpack.c.b16 %v1011, %v1009
        %v1134 = vpack.c.b16 %v1012, %v1010
        %v1135 = vpack.c.b16 %v1015, %v1013
        %v1136 = vpack.c.b16 %v1016, %v1014
        %v1137 = vpack.c.b16 %v1019, %v1017
        %v1138 = vpack.c.b16 %v1020, %v1018
        %v1139 = vpack.c.b16 %v1023, %v1021
        %v1140 = vpack.c.b16 %v1024, %v1022
        %v1141 = vpack.c.b16 %v1027, %v1025
        %v1142 = vpack.c.b16 %v1028, %v1026
        %v1143 = vpack.c.b16 %v1031, %v1029
        %v1144 = vpack.c.b16 %v1032, %v1030
        %v1145 = vpack.c.b16 %v1035, %v1033
        %v1146 = vpack.c.b16 %v1036, %v1034
        %v1147 = vpack.c.b16 %v1039, %v1037
        %v1148 = vpack.c.b16 %v1040, %v1038
        %v1149 = vpack.c.b16 %v1043, %v1041
        %v1150 = vpack.c.b16 %v1044, %v1042
        %v1151 = vpack.c.b16 %v1047, %v1045
        %v1152 = vpack.c.b16 %v1048, %v1046
        %vm1257 = vcmask 523264
        %v1259 = vsel %vm1257, %v515, 0
        %v1262 = vsel %vm1257, %v522, 0
        %v1265 = vsel %vm1257, %v529, 0
        %v1268 = vsel %vm1257, %v536, 0
        %v1271 = vsel %vm1257, %v543, 0
        %v1274 = vsel %vm1257, %v550, 0
        %v1277 = vsel %vm1257, %v557, 0
        %v1280 = vsel %vm1257, %v564, 0
        %v1283 = vsel %vm1257, %v571, 0
        %v1286 = vsel %vm1257, %v578, 0
        %v1289 = vsel %vm1257, %v585, 0
        %v1292 = vsel %vm1257, %v592, 0
        %v1295 = vsel %vm1257, %v599, 0
        %v1298 = vsel %vm1257, %v606, 0
        %v1301 = vsel %vm1257, %v613, 0
        %v1304 = vsel %vm1257, %v620, 0
        %1306 = vmatprep.subr.bf16.mxu0 %v1064
        %1307 = vmatpush1.bf16.msra.mxu0 %v1063
        %1308 = vmatprep.subr.bf16.mxu0 %v1062
        %1309 = vmatpush1.bf16.msra.mxu0 %v1061
        %1310 = vmatprep.subr.bf16.mxu0 %v1060
        %1311 = vmatpush1.bf16.msra.mxu0 %v1059
        %1312 = vmatprep.subr.bf16.mxu0 %v1058
        %1313 = vmatpush1.bf16.msra.mxu0 %v1057
        %1314 = vmatprep.subr.bf16.mxu0 %v1056
        %1315 = vmatpush1.bf16.msra.mxu0 %v1055
        %1316 = vmatprep.subr.bf16.mxu0 %v1054
        %1317 = vmatpush1.bf16.msra.mxu0 %v1053
        %1318 = vmatprep.subr.bf16.mxu0 %v1052
        %1319 = vmatpush1.bf16.msra.mxu0 %v1051
        %1320 = vmatprep.subr.bf16.mxu0 %v1050
        %1321 = vmatpush1.bf16.msra.mxu0 %v1049
        %1322 = vmatprep.subr.bf16.mxu0 %v1080
        %1323 = vmatpush2.bf16.msra.mxu0 %v1079
        %1324 = vmatprep.subr.bf16.mxu0 %v1078
        %1325 = vmatpush2.bf16.msra.mxu0 %v1077
        %1326 = vmatprep.subr.bf16.mxu0 %v1076
        %1327 = vmatpush2.bf16.msra.mxu0 %v1075
        %1328 = vmatprep.subr.bf16.mxu0 %v1074
        %1329 = vmatpush2.bf16.msra.mxu0 %v1073
        %1330 = vmatprep.subr.bf16.mxu0 %v1072
        %1331 = vmatpush2.bf16.msra.mxu0 %v1071
        %1332 = vmatprep.subr.bf16.mxu0 %v1070
        %1333 = vmatpush2.bf16.msra.mxu0 %v1069
        %1334 = vmatprep.subr.bf16.mxu0 %v1068
        %1335 = vmatpush2.bf16.msra.mxu0 %v1067
        %1336 = vmatprep.subr.bf16.mxu0 %v1066
        %1337 = vmatpush2.bf16.msra.mxu0 %v1065
        %1338 = vmatprep.mubr.bf16.mxu0 %v510
        %1339 = vmatmul.mubr.bf16.gmra.mxu0 %v509
        %v1340 = vpop.f32.mrf.mxu0
        %v1341 = vadd.f32 %v730, %v1340
        %v1342 = vpop.f32.mrf.mxu0
        %v1343 = vadd.f32 %v734, %v1342
        %v1344 = vpop.f32.mrf.mxu0
        %v1345 = vadd.f32 %v730, %v1344
        %v1346 = vpop.f32.mrf.mxu0
        %v1347 = vadd.f32 %v734, %v1346
        %1348 = vmatprep.mubr.bf16.mxu0 %v517
        %1349 = vmatmul.mubr.bf16.gmra.mxu0 %v516
        %v1350 = vpop.f32.mrf.mxu0
        %v1351 = vadd.f32 %v730, %v1350
        %v1352 = vpop.f32.mrf.mxu0
        %v1353 = vadd.f32 %v734, %v1352
        %v1354 = vpop.f32.mrf.mxu0
        %v1355 = vadd.f32 %v730, %v1354
        %v1356 = vpop.f32.mrf.mxu0
        %v1357 = vadd.f32 %v734, %v1356
        %1358 = vmatprep.mubr.bf16.mxu0 %v524
        %1359 = vmatmul.mubr.bf16.gmra.mxu0 %v523
        %v1360 = vpop.f32.mrf.mxu0
        %v1361 = vadd.f32 %v730, %v1360
        %v1362 = vpop.f32.mrf.mxu0
        %v1363 = vadd.f32 %v734, %v1362
        %v1364 = vpop.f32.mrf.mxu0
        %v1365 = vadd.f32 %v730, %v1364
        %v1366 = vpop.f32.mrf.mxu0
        %v1367 = vadd.f32 %v734, %v1366
        %1368 = vmatprep.mubr.bf16.mxu0 %v531
        %1369 = vmatmul.mubr.bf16.gmra.mxu0 %v530
        %v1370 = vpop.f32.mrf.mxu0
        %v1371 = vadd.f32 %v730, %v1370
        %v1372 = vpop.f32.mrf.mxu0
        %v1373 = vadd.f32 %v734, %v1372
        %v1374 = vpop.f32.mrf.mxu0
        %v1375 = vadd.f32 %v730, %v1374
        %v1376 = vpop.f32.mrf.mxu0
        %v1377 = vadd.f32 %v734, %v1376
        %1378 = vmatprep.mubr.bf16.mxu0 %v538
        %1379 = vmatmul.mubr.bf16.gmra.mxu0 %v537
        %v1380 = vpop.f32.mrf.mxu0
        %v1381 = vadd.f32 %v730, %v1380
        %v1382 = vpop.f32.mrf.mxu0
        %v1383 = vadd.f32 %v734, %v1382
        %v1384 = vpop.f32.mrf.mxu0
        %v1385 = vadd.f32 %v730, %v1384
        %v1386 = vpop.f32.mrf.mxu0
        %v1387 = vadd.f32 %v734, %v1386
        %1388 = vmatprep.mubr.bf16.mxu0 %v545
        %1389 = vmatmul.mubr.bf16.gmra.mxu0 %v544
        %v1390 = vpop.f32.mrf.mxu0
        %v1391 = vadd.f32 %v730, %v1390
        %v1392 = vpop.f32.mrf.mxu0
        %v1393 = vadd.f32 %v734, %v1392
        %v1394 = vpop.f32.mrf.mxu0
        %v1395 = vadd.f32 %v730, %v1394
        %v1396 = vpop.f32.mrf.mxu0
        %v1397 = vadd.f32 %v734, %v1396
        %1398 = vmatprep.mubr.bf16.mxu0 %v552
        %1399 = vmatmul.mubr.bf16.gmra.mxu0 %v551
        %v1400 = vpop.f32.mrf.mxu0
        %v1401 = vadd.f32 %v730, %v1400
        %v1402 = vpop.f32.mrf.mxu0
        %v1403 = vadd.f32 %v734, %v1402
        %v1404 = vpop.f32.mrf.mxu0
        %v1405 = vadd.f32 %v730, %v1404
        %v1406 = vpop.f32.mrf.mxu0
        %v1407 = vadd.f32 %v734, %v1406
        %1408 = vmatprep.mubr.bf16.mxu0 %v559
        %1409 = vmatmul.mubr.bf16.gmra.mxu0 %v558
        %v1410 = vpop.f32.mrf.mxu0
        %v1411 = vadd.f32 %v730, %v1410
        %v1412 = vpop.f32.mrf.mxu0
        %v1413 = vadd.f32 %v734, %v1412
        %v1414 = vpop.f32.mrf.mxu0
        %v1415 = vadd.f32 %v730, %v1414
        %v1416 = vpop.f32.mrf.mxu0
        %v1417 = vadd.f32 %v734, %v1416
        %1418 = vmatprep.mubr.bf16.mxu0 %v566
        %1419 = vmatmul.mubr.bf16.gmra.mxu0 %v565
        %v1420 = vpop.f32.mrf.mxu0
        %v1421 = vadd.f32 %v730, %v1420
        %v1422 = vpop.f32.mrf.mxu0
        %v1423 = vadd.f32 %v734, %v1422
        %v1424 = vpop.f32.mrf.mxu0
        %v1425 = vadd.f32 %v730, %v1424
        %v1426 = vpop.f32.mrf.mxu0
        %v1427 = vadd.f32 %v734, %v1426
        %1428 = vmatprep.mubr.bf16.mxu0 %v573
        %1429 = vmatmul.mubr.bf16.gmra.mxu0 %v572
        %v1430 = vpop.f32.mrf.mxu0
        %v1431 = vadd.f32 %v730, %v1430
        %v1432 = vpop.f32.mrf.mxu0
        %v1433 = vadd.f32 %v734, %v1432
        %v1434 = vpop.f32.mrf.mxu0
        %v1435 = vadd.f32 %v730, %v1434
        %v1436 = vpop.f32.mrf.mxu0
        %v1437 = vadd.f32 %v734, %v1436
        %1438 = vmatprep.mubr.bf16.mxu0 %v580
        %1439 = vmatmul.mubr.bf16.gmra.mxu0 %v579
        %v1440 = vpop.f32.mrf.mxu0
        %v1441 = vadd.f32 %v730, %v1440
        %v1442 = vpop.f32.mrf.mxu0
        %v1443 = vadd.f32 %v734, %v1442
        %v1444 = vpop.f32.mrf.mxu0
        %v1445 = vadd.f32 %v730, %v1444
        %v1446 = vpop.f32.mrf.mxu0
        %v1447 = vadd.f32 %v734, %v1446
        %1448 = vmatprep.mubr.bf16.mxu0 %v587
        %1449 = vmatmul.mubr.bf16.gmra.mxu0 %v586
        %v1450 = vpop.f32.mrf.mxu0
        %v1451 = vadd.f32 %v730, %v1450
        %v1452 = vpop.f32.mrf.mxu0
        %v1453 = vadd.f32 %v734, %v1452
        %v1454 = vpop.f32.mrf.mxu0
        %v1455 = vadd.f32 %v730, %v1454
        %v1456 = vpop.f32.mrf.mxu0
        %v1457 = vadd.f32 %v734, %v1456
        %1458 = vmatprep.mubr.bf16.mxu0 %v594
        %1459 = vmatmul.mubr.bf16.gmra.mxu0 %v593
        %v1460 = vpop.f32.mrf.mxu0
        %v1461 = vadd.f32 %v730, %v1460
        %v1462 = vpop.f32.mrf.mxu0
        %v1463 = vadd.f32 %v734, %v1462
        %v1464 = vpop.f32.mrf.mxu0
        %v1465 = vadd.f32 %v730, %v1464
        %v1466 = vpop.f32.mrf.mxu0
        %v1467 = vadd.f32 %v734, %v1466
        %1468 = vmatprep.mubr.bf16.mxu0 %v601
        %1469 = vmatmul.mubr.bf16.gmra.mxu0 %v600
        %v1470 = vpop.f32.mrf.mxu0
        %v1471 = vadd.f32 %v730, %v1470
        %v1472 = vpop.f32.mrf.mxu0
        %v1473 = vadd.f32 %v734, %v1472
        %v1474 = vpop.f32.mrf.mxu0
        %v1475 = vadd.f32 %v730, %v1474
        %v1476 = vpop.f32.mrf.mxu0
        %v1477 = vadd.f32 %v734, %v1476
        %1478 = vmatprep.mubr.bf16.mxu0 %v608
        %1479 = vmatmul.mubr.bf16.gmra.mxu0 %v607
        %v1480 = vpop.f32.mrf.mxu0
        %v1481 = vadd.f32 %v730, %v1480
        %v1482 = vpop.f32.mrf.mxu0
        %v1483 = vadd.f32 %v734, %v1482
        %v1484 = vpop.f32.mrf.mxu0
        %v1485 = vadd.f32 %v730, %v1484
        %v1486 = vpop.f32.mrf.mxu0
        %v1487 = vadd.f32 %v734, %v1486
        %1488 = vmatprep.mubr.bf16.mxu0 %v615
        %1489 = vmatmul.mubr.bf16.gmra.mxu0 %v614
        %v1490 = vpop.f32.mrf.mxu0
        %v1491 = vadd.f32 %v730, %v1490
        %v1492 = vpop.f32.mrf.mxu0
        %v1493 = vadd.f32 %v734, %v1492
        %v1494 = vpop.f32.mrf.mxu0
        %v1495 = vadd.f32 %v730, %v1494
        %v1496 = vpop.f32.mrf.mxu0
        %v1497 = vadd.f32 %v734, %v1496
        %1498 = vdwg.mxu0
        %1499 = vmatprep.subr.bf16.mxu0 %v1096
        %1500 = vmatpush1.bf16.msra.mxu0 %v1095
        %1501 = vmatprep.subr.bf16.mxu0 %v1094
        %1502 = vmatpush1.bf16.msra.mxu0 %v1093
        %1503 = vmatprep.subr.bf16.mxu0 %v1092
        %1504 = vmatpush1.bf16.msra.mxu0 %v1091
        %1505 = vmatprep.subr.bf16.mxu0 %v1090
        %1506 = vmatpush1.bf16.msra.mxu0 %v1089
        %1507 = vmatprep.subr.bf16.mxu0 %v1088
        %1508 = vmatpush1.bf16.msra.mxu0 %v1087
        %1509 = vmatprep.subr.bf16.mxu0 %v1086
        %1510 = vmatpush1.bf16.msra.mxu0 %v1085
        %1511 = vmatprep.subr.bf16.mxu0 %v1084
        %1512 = vmatpush1.bf16.msra.mxu0 %v1083
        %1513 = vmatprep.subr.bf16.mxu0 %v1082
        %1514 = vmatpush1.bf16.msra.mxu0 %v1081
        %1515 = vmatprep.subr.bf16.mxu0 %v1112
        %1516 = vmatpush2.bf16.msra.mxu0 %v1111
        %1517 = vmatprep.subr.bf16.mxu0 %v1110
        %1518 = vmatpush2.bf16.msra.mxu0 %v1109
        %1519 = vmatprep.subr.bf16.mxu0 %v1108
        %1520 = vmatpush2.bf16.msra.mxu0 %v1107
        %1521 = vmatprep.subr.bf16.mxu0 %v1106
        %1522 = vmatpush2.bf16.msra.mxu0 %v1105
        %1523 = vmatprep.subr.bf16.mxu0 %v1104
        %1524 = vmatpush2.bf16.msra.mxu0 %v1103
        %1525 = vmatprep.subr.bf16.mxu0 %v1102
        %1526 = vmatpush2.bf16.msra.mxu0 %v1101
        %1527 = vmatprep.subr.bf16.mxu0 %v1100
        %1528 = vmatpush2.bf16.msra.mxu0 %v1099
        %1529 = vmatprep.subr.bf16.mxu0 %v1098
        %1530 = vmatpush2.bf16.msra.mxu0 %v1097
        %1531 = vmatprep.mubr.bf16.mxu0 %v512
        %1532 = vmatmul.mubr.bf16.gmra.mxu0 %v511
        %v1533 = vpop.f32.mrf.mxu0
        %v1534 = vadd.f32 %v1341, %v1533
        %v1535 = vpop.f32.mrf.mxu0
        %v1536 = vadd.f32 %v1343, %v1535
        %v1537 = vpop.f32.mrf.mxu0
        %v1538 = vadd.f32 %v1345, %v1537
        %v1539 = vpop.f32.mrf.mxu0
        %v1540 = vadd.f32 %v1347, %v1539
        %1541 = vmatprep.mubr.bf16.mxu0 %v519
        %1542 = vmatmul.mubr.bf16.gmra.mxu0 %v518
        %v1543 = vpop.f32.mrf.mxu0
        %v1544 = vadd.f32 %v1351, %v1543
        %v1545 = vpop.f32.mrf.mxu0
        %v1546 = vadd.f32 %v1353, %v1545
        %v1547 = vpop.f32.mrf.mxu0
        %v1548 = vadd.f32 %v1355, %v1547
        %v1549 = vpop.f32.mrf.mxu0
        %v1550 = vadd.f32 %v1357, %v1549
        %1551 = vmatprep.mubr.bf16.mxu0 %v526
        %1552 = vmatmul.mubr.bf16.gmra.mxu0 %v525
        %v1553 = vpop.f32.mrf.mxu0
        %v1554 = vadd.f32 %v1361, %v1553
        %v1555 = vpop.f32.mrf.mxu0
        %v1556 = vadd.f32 %v1363, %v1555
        %v1557 = vpop.f32.mrf.mxu0
        %v1558 = vadd.f32 %v1365, %v1557
        %v1559 = vpop.f32.mrf.mxu0
        %v1560 = vadd.f32 %v1367, %v1559
        %1561 = vmatprep.mubr.bf16.mxu0 %v533
        %1562 = vmatmul.mubr.bf16.gmra.mxu0 %v532
        %v1563 = vpop.f32.mrf.mxu0
        %v1564 = vadd.f32 %v1371, %v1563
        %v1565 = vpop.f32.mrf.mxu0
        %v1566 = vadd.f32 %v1373, %v1565
        %v1567 = vpop.f32.mrf.mxu0
        %v1568 = vadd.f32 %v1375, %v1567
        %v1569 = vpop.f32.mrf.mxu0
        %v1570 = vadd.f32 %v1377, %v1569
        %1571 = vmatprep.mubr.bf16.mxu0 %v540
        %1572 = vmatmul.mubr.bf16.gmra.mxu0 %v539
        %v1573 = vpop.f32.mrf.mxu0
        %v1574 = vadd.f32 %v1381, %v1573
        %v1575 = vpop.f32.mrf.mxu0
        %v1576 = vadd.f32 %v1383, %v1575
        %v1577 = vpop.f32.mrf.mxu0
        %v1578 = vadd.f32 %v1385, %v1577
        %v1579 = vpop.f32.mrf.mxu0
        %v1580 = vadd.f32 %v1387, %v1579
        %1581 = vmatprep.mubr.bf16.mxu0 %v547
        %1582 = vmatmul.mubr.bf16.gmra.mxu0 %v546
        %v1583 = vpop.f32.mrf.mxu0
        %v1584 = vadd.f32 %v1391, %v1583
        %v1585 = vpop.f32.mrf.mxu0
        %v1586 = vadd.f32 %v1393, %v1585
        %v1587 = vpop.f32.mrf.mxu0
        %v1588 = vadd.f32 %v1395, %v1587
        %v1589 = vpop.f32.mrf.mxu0
        %v1590 = vadd.f32 %v1397, %v1589
        %1591 = vmatprep.mubr.bf16.mxu0 %v554
        %1592 = vmatmul.mubr.bf16.gmra.mxu0 %v553
        %v1593 = vpop.f32.mrf.mxu0
        %v1594 = vadd.f32 %v1401, %v1593
        %v1595 = vpop.f32.mrf.mxu0
        %v1596 = vadd.f32 %v1403, %v1595
        %v1597 = vpop.f32.mrf.mxu0
        %v1598 = vadd.f32 %v1405, %v1597
        %v1599 = vpop.f32.mrf.mxu0
        %v1600 = vadd.f32 %v1407, %v1599
        %1601 = vmatprep.mubr.bf16.mxu0 %v561
        %1602 = vmatmul.mubr.bf16.gmra.mxu0 %v560
        %v1603 = vpop.f32.mrf.mxu0
        %v1604 = vadd.f32 %v1411, %v1603
        %v1605 = vpop.f32.mrf.mxu0
        %v1606 = vadd.f32 %v1413, %v1605
        %v1607 = vpop.f32.mrf.mxu0
        %v1608 = vadd.f32 %v1415, %v1607
        %v1609 = vpop.f32.mrf.mxu0
        %v1610 = vadd.f32 %v1417, %v1609
        %1611 = vmatprep.mubr.bf16.mxu0 %v568
        %1612 = vmatmul.mubr.bf16.gmra.mxu0 %v567
        %v1613 = vpop.f32.mrf.mxu0
        %v1614 = vadd.f32 %v1421, %v1613
        %v1615 = vpop.f32.mrf.mxu0
        %v1616 = vadd.f32 %v1423, %v1615
        %v1617 = vpop.f32.mrf.mxu0
        %v1618 = vadd.f32 %v1425, %v1617
        %v1619 = vpop.f32.mrf.mxu0
        %v1620 = vadd.f32 %v1427, %v1619
        %1621 = vmatprep.mubr.bf16.mxu0 %v575
        %1622 = vmatmul.mubr.bf16.gmra.mxu0 %v574
        %v1623 = vpop.f32.mrf.mxu0
        %v1624 = vadd.f32 %v1431, %v1623
        %v1625 = vpop.f32.mrf.mxu0
        %v1626 = vadd.f32 %v1433, %v1625
        %v1627 = vpop.f32.mrf.mxu0
        %v1628 = vadd.f32 %v1435, %v1627
        %v1629 = vpop.f32.mrf.mxu0
        %v1630 = vadd.f32 %v1437, %v1629
        %1631 = vmatprep.mubr.bf16.mxu0 %v582
        %1632 = vmatmul.mubr.bf16.gmra.mxu0 %v581
        %v1633 = vpop.f32.mrf.mxu0
        %v1634 = vadd.f32 %v1441, %v1633
        %v1635 = vpop.f32.mrf.mxu0
        %v1636 = vadd.f32 %v1443, %v1635
        %v1637 = vpop.f32.mrf.mxu0
        %v1638 = vadd.f32 %v1445, %v1637
        %v1639 = vpop.f32.mrf.mxu0
        %v1640 = vadd.f32 %v1447, %v1639
        %1641 = vmatprep.mubr.bf16.mxu0 %v589
        %1642 = vmatmul.mubr.bf16.gmra.mxu0 %v588
        %v1643 = vpop.f32.mrf.mxu0
        %v1644 = vadd.f32 %v1451, %v1643
        %v1645 = vpop.f32.mrf.mxu0
        %v1646 = vadd.f32 %v1453, %v1645
        %v1647 = vpop.f32.mrf.mxu0
        %v1648 = vadd.f32 %v1455, %v1647
        %v1649 = vpop.f32.mrf.mxu0
        %v1650 = vadd.f32 %v1457, %v1649
        %1651 = vmatprep.mubr.bf16.mxu0 %v596
        %1652 = vmatmul.mubr.bf16.gmra.mxu0 %v595
        %v1653 = vpop.f32.mrf.mxu0
        %v1654 = vadd.f32 %v1461, %v1653
        %v1655 = vpop.f32.mrf.mxu0
        %v1656 = vadd.f32 %v1463, %v1655
        %v1657 = vpop.f32.mrf.mxu0
        %v1658 = vadd.f32 %v1465, %v1657
        %v1659 = vpop.f32.mrf.mxu0
        %v1660 = vadd.f32 %v1467, %v1659
        %1661 = vmatprep.mubr.bf16.mxu0 %v603
        %1662 = vmatmul.mubr.bf16.gmra.mxu0 %v602
        %v1663 = vpop.f32.mrf.mxu0
        %v1664 = vadd.f32 %v1471, %v1663
        %v1665 = vpop.f32.mrf.mxu0
        %v1666 = vadd.f32 %v1473, %v1665
        %v1667 = vpop.f32.mrf.mxu0
        %v1668 = vadd.f32 %v1475, %v1667
        %v1669 = vpop.f32.mrf.mxu0
        %v1670 = vadd.f32 %v1477, %v1669
        %1671 = vmatprep.mubr.bf16.mxu0 %v610
        %1672 = vmatmul.mubr.bf16.gmra.mxu0 %v609
        %v1673 = vpop.f32.mrf.mxu0
        %v1674 = vadd.f32 %v1481, %v1673
        %v1675 = vpop.f32.mrf.mxu0
        %v1676 = vadd.f32 %v1483, %v1675
        %v1677 = vpop.f32.mrf.mxu0
        %v1678 = vadd.f32 %v1485, %v1677
        %v1679 = vpop.f32.mrf.mxu0
        %v1680 = vadd.f32 %v1487, %v1679
        %1681 = vmatprep.mubr.bf16.mxu0 %v617
        %1682 = vmatmul.mubr.bf16.gmra.mxu0 %v616
        %v1683 = vpop.f32.mrf.mxu0
        %v1684 = vadd.f32 %v1491, %v1683
        %v1685 = vpop.f32.mrf.mxu0
        %v1686 = vadd.f32 %v1493, %v1685
        %v1687 = vpop.f32.mrf.mxu0
        %v1688 = vadd.f32 %v1495, %v1687
        %v1689 = vpop.f32.mrf.mxu0
        %v1690 = vadd.f32 %v1497, %v1689
        %1691 = vdwg.mxu0
        %1692 = vmatprep.subr.bf16.mxu0 %v1128
        %1693 = vmatpush1.bf16.msra.mxu0 %v1127
        %1694 = vmatprep.subr.bf16.mxu0 %v1126
        %1695 = vmatpush1.bf16.msra.mxu0 %v1125
        %1696 = vmatprep.subr.bf16.mxu0 %v1124
        %1697 = vmatpush1.bf16.msra.mxu0 %v1123
        %1698 = vmatprep.subr.bf16.mxu0 %v1122
        %1699 = vmatpush1.bf16.msra.mxu0 %v1121
        %1700 = vmatprep.subr.bf16.mxu0 %v1120
        %1701 = vmatpush1.bf16.msra.mxu0 %v1119
        %1702 = vmatprep.subr.bf16.mxu0 %v1118
        %1703 = vmatpush1.bf16.msra.mxu0 %v1117
        %1704 = vmatprep.subr.bf16.mxu0 %v1116
        %1705 = vmatpush1.bf16.msra.mxu0 %v1115
        %1706 = vmatprep.subr.bf16.mxu0 %v1114
        %1707 = vmatpush1.bf16.msra.mxu0 %v1113
        %1708 = vmatprep.subr.bf16.mxu0 %v1144
        %1709 = vmatpush2.bf16.msra.mxu0 %v1143
        %1710 = vmatprep.subr.bf16.mxu0 %v1142
        %1711 = vmatpush2.bf16.msra.mxu0 %v1141
        %1712 = vmatprep.subr.bf16.mxu0 %v1140
        %1713 = vmatpush2.bf16.msra.mxu0 %v1139
        %1714 = vmatprep.subr.bf16.mxu0 %v1138
        %1715 = vmatpush2.bf16.msra.mxu0 %v1137
        %1716 = vmatprep.subr.bf16.mxu0 %v1136
        %1717 = vmatpush2.bf16.msra.mxu0 %v1135
        %1718 = vmatprep.subr.bf16.mxu0 %v1134
        %1719 = vmatpush2.bf16.msra.mxu0 %v1133
        %1720 = vmatprep.subr.bf16.mxu0 %v1132
        %1721 = vmatpush2.bf16.msra.mxu0 %v1131
        %1722 = vmatprep.subr.bf16.mxu0 %v1130
        %1723 = vmatpush2.bf16.msra.mxu0 %v1129
        %1724 = vmatprep.mubr.bf16.mxu0 %v514
        %1725 = vmatmul.mubr.bf16.gmra.mxu0 %v513
        %v1726 = vpop.f32.mrf.mxu0
        %v1727 = vadd.f32 %v1534, %v1726
        %v1728 = vpop.f32.mrf.mxu0
        %v1729 = vadd.f32 %v1536, %v1728
        %v1730 = vpop.f32.mrf.mxu0
        %v1731 = vadd.f32 %v1538, %v1730
        %v1732 = vpop.f32.mrf.mxu0
        %v1733 = vadd.f32 %v1540, %v1732
        %1734 = vmatprep.mubr.bf16.mxu0 %v521
        %1735 = vmatmul.mubr.bf16.gmra.mxu0 %v520
        %v1736 = vpop.f32.mrf.mxu0
        %v1737 = vadd.f32 %v1544, %v1736
        %v1738 = vpop.f32.mrf.mxu0
        %v1739 = vadd.f32 %v1546, %v1738
        %v1740 = vpop.f32.mrf.mxu0
        %v1741 = vadd.f32 %v1548, %v1740
        %v1742 = vpop.f32.mrf.mxu0
        %v1743 = vadd.f32 %v1550, %v1742
        %1744 = vmatprep.mubr.bf16.mxu0 %v528
        %1745 = vmatmul.mubr.bf16.gmra.mxu0 %v527
        %v1746 = vpop.f32.mrf.mxu0
        %v1747 = vadd.f32 %v1554, %v1746
        %v1748 = vpop.f32.mrf.mxu0
        %v1749 = vadd.f32 %v1556, %v1748
        %v1750 = vpop.f32.mrf.mxu0
        %v1751 = vadd.f32 %v1558, %v1750
        %v1752 = vpop.f32.mrf.mxu0
        %v1753 = vadd.f32 %v1560, %v1752
        %1754 = vmatprep.mubr.bf16.mxu0 %v535
        %1755 = vmatmul.mubr.bf16.gmra.mxu0 %v534
        %v1756 = vpop.f32.mrf.mxu0
        %v1757 = vadd.f32 %v1564, %v1756
        %v1758 = vpop.f32.mrf.mxu0
        %v1759 = vadd.f32 %v1566, %v1758
        %v1760 = vpop.f32.mrf.mxu0
        %v1761 = vadd.f32 %v1568, %v1760
        %v1762 = vpop.f32.mrf.mxu0
        %v1763 = vadd.f32 %v1570, %v1762
        %1764 = vmatprep.mubr.bf16.mxu0 %v542
        %1765 = vmatmul.mubr.bf16.gmra.mxu0 %v541
        %v1766 = vpop.f32.mrf.mxu0
        %v1767 = vadd.f32 %v1574, %v1766
        %v1768 = vpop.f32.mrf.mxu0
        %v1769 = vadd.f32 %v1576, %v1768
        %v1770 = vpop.f32.mrf.mxu0
        %v1771 = vadd.f32 %v1578, %v1770
        %v1772 = vpop.f32.mrf.mxu0
        %v1773 = vadd.f32 %v1580, %v1772
        %1774 = vmatprep.mubr.bf16.mxu0 %v549
        %1775 = vmatmul.mubr.bf16.gmra.mxu0 %v548
        %v1776 = vpop.f32.mrf.mxu0
        %v1777 = vadd.f32 %v1584, %v1776
        %v1778 = vpop.f32.mrf.mxu0
        %v1779 = vadd.f32 %v1586, %v1778
        %v1780 = vpop.f32.mrf.mxu0
        %v1781 = vadd.f32 %v1588, %v1780
        %v1782 = vpop.f32.mrf.mxu0
        %v1783 = vadd.f32 %v1590, %v1782
        %1784 = vmatprep.mubr.bf16.mxu0 %v556
        %1785 = vmatmul.mubr.bf16.gmra.mxu0 %v555
        %v1786 = vpop.f32.mrf.mxu0
        %v1787 = vadd.f32 %v1594, %v1786
        %v1788 = vpop.f32.mrf.mxu0
        %v1789 = vadd.f32 %v1596, %v1788
        %v1790 = vpop.f32.mrf.mxu0
        %v1791 = vadd.f32 %v1598, %v1790
        %v1792 = vpop.f32.mrf.mxu0
        %v1793 = vadd.f32 %v1600, %v1792
        %1794 = vmatprep.mubr.bf16.mxu0 %v563
        %1795 = vmatmul.mubr.bf16.gmra.mxu0 %v562
        %v1796 = vpop.f32.mrf.mxu0
        %v1797 = vadd.f32 %v1604, %v1796
        %v1798 = vpop.f32.mrf.mxu0
        %v1799 = vadd.f32 %v1606, %v1798
        %v1800 = vpop.f32.mrf.mxu0
        %v1801 = vadd.f32 %v1608, %v1800
        %v1802 = vpop.f32.mrf.mxu0
        %v1803 = vadd.f32 %v1610, %v1802
        %1804 = vmatprep.mubr.bf16.mxu0 %v570
        %1805 = vmatmul.mubr.bf16.gmra.mxu0 %v569
        %v1806 = vpop.f32.mrf.mxu0
        %v1807 = vadd.f32 %v1614, %v1806
        %v1808 = vpop.f32.mrf.mxu0
        %v1809 = vadd.f32 %v1616, %v1808
        %v1810 = vpop.f32.mrf.mxu0
        %v1811 = vadd.f32 %v1618, %v1810
        %v1812 = vpop.f32.mrf.mxu0
        %v1813 = vadd.f32 %v1620, %v1812
        %1814 = vmatprep.mubr.bf16.mxu0 %v577
        %1815 = vmatmul.mubr.bf16.gmra.mxu0 %v576
        %v1816 = vpop.f32.mrf.mxu0
        %v1817 = vadd.f32 %v1624, %v1816
        %v1818 = vpop.f32.mrf.mxu0
        %v1819 = vadd.f32 %v1626, %v1818
        %v1820 = vpop.f32.mrf.mxu0
        %v1821 = vadd.f32 %v1628, %v1820
        %v1822 = vpop.f32.mrf.mxu0
        %v1823 = vadd.f32 %v1630, %v1822
        %1824 = vmatprep.mubr.bf16.mxu0 %v584
        %1825 = vmatmul.mubr.bf16.gmra.mxu0 %v583
        %v1826 = vpop.f32.mrf.mxu0
        %v1827 = vadd.f32 %v1634, %v1826
        %v1828 = vpop.f32.mrf.mxu0
        %v1829 = vadd.f32 %v1636, %v1828
        %v1830 = vpop.f32.mrf.mxu0
        %v1831 = vadd.f32 %v1638, %v1830
        %v1832 = vpop.f32.mrf.mxu0
        %v1833 = vadd.f32 %v1640, %v1832
        %1834 = vmatprep.mubr.bf16.mxu0 %v591
        %1835 = vmatmul.mubr.bf16.gmra.mxu0 %v590
        %v1836 = vpop.f32.mrf.mxu0
        %v1837 = vadd.f32 %v1644, %v1836
        %v1838 = vpop.f32.mrf.mxu0
        %v1839 = vadd.f32 %v1646, %v1838
        %v1840 = vpop.f32.mrf.mxu0
        %v1841 = vadd.f32 %v1648, %v1840
        %v1842 = vpop.f32.mrf.mxu0
        %v1843 = vadd.f32 %v1650, %v1842
        %1844 = vmatprep.mubr.bf16.mxu0 %v598
        %1845 = vmatmul.mubr.bf16.gmra.mxu0 %v597
        %v1846 = vpop.f32.mrf.mxu0
        %v1847 = vadd.f32 %v1654, %v1846
        %v1848 = vpop.f32.mrf.mxu0
        %v1849 = vadd.f32 %v1656, %v1848
        %v1850 = vpop.f32.mrf.mxu0
        %v1851 = vadd.f32 %v1658, %v1850
        %v1852 = vpop.f32.mrf.mxu0
        %v1853 = vadd.f32 %v1660, %v1852
        %1854 = vmatprep.mubr.bf16.mxu0 %v605
        %1855 = vmatmul.mubr.bf16.gmra.mxu0 %v604
        %v1856 = vpop.f32.mrf.mxu0
        %v1857 = vadd.f32 %v1664, %v1856
        %v1858 = vpop.f32.mrf.mxu0
        %v1859 = vadd.f32 %v1666, %v1858
        %v1860 = vpop.f32.mrf.mxu0
        %v1861 = vadd.f32 %v1668, %v1860
        %v1862 = vpop.f32.mrf.mxu0
        %v1863 = vadd.f32 %v1670, %v1862
        %1864 = vmatprep.mubr.bf16.mxu0 %v612
        %1865 = vmatmul.mubr.bf16.gmra.mxu0 %v611
        %v1866 = vpop.f32.mrf.mxu0
        %v1867 = vadd.f32 %v1674, %v1866
        %v1868 = vpop.f32.mrf.mxu0
        %v1869 = vadd.f32 %v1676, %v1868
        %v1870 = vpop.f32.mrf.mxu0
        %v1871 = vadd.f32 %v1678, %v1870
        %v1872 = vpop.f32.mrf.mxu0
        %v1873 = vadd.f32 %v1680, %v1872
        %1874 = vmatprep.mubr.bf16.mxu0 %v619
        %1875 = vmatmul.mubr.bf16.gmra.mxu0 %v618
        %v1876 = vpop.f32.mrf.mxu0
        %v1877 = vadd.f32 %v1684, %v1876
        %v1878 = vpop.f32.mrf.mxu0
        %v1879 = vadd.f32 %v1686, %v1878
        %v1880 = vpop.f32.mrf.mxu0
        %v1881 = vadd.f32 %v1688, %v1880
        %v1882 = vpop.f32.mrf.mxu0
        %v1883 = vadd.f32 %v1690, %v1882
        %1884 = vdwg.mxu0
        %1885 = vmatprep.subr.bf16.mxu0 0
        %1886 = vmatpush1.bf16.msra.mxu0 0
        %1887 = vmatprep.subr.bf16.mxu0 0
        %1888 = vmatpush1.bf16.msra.mxu0 0
        %1889 = vmatprep.subr.bf16.mxu0 0
        %1890 = vmatpush1.bf16.msra.mxu0 0
        %1891 = vmatprep.subr.bf16.mxu0 0
        %1892 = vmatpush1.bf16.msra.mxu0 0
        %1893 = vmatprep.subr.bf16.mxu0 %v1152
        %1894 = vmatpush1.bf16.msra.mxu0 %v1151
        %1895 = vmatprep.subr.bf16.mxu0 %v1150
        %1896 = vmatpush1.bf16.msra.mxu0 %v1149
        %1897 = vmatprep.subr.bf16.mxu0 %v1148
        %1898 = vmatpush1.bf16.msra.mxu0 %v1147
        %1899 = vmatprep.subr.bf16.mxu0 %v1146
        %1900 = vmatpush1.bf16.msra.mxu0 %v1145
        %1901 = vmatprep.subr.bf16.mxu0 0
        %1902 = vmatpush2.bf16.msra.mxu0 0
        %1903 = vmatprep.subr.bf16.mxu0 0
        %1904 = vmatpush2.bf16.msra.mxu0 0
        %1905 = vmatprep.subr.bf16.mxu0 0
        %1906 = vmatpush2.bf16.msra.mxu0 0
        %1907 = vmatprep.subr.bf16.mxu0 0
        %1908 = vmatpush2.bf16.msra.mxu0 0
        %1909 = vmatprep.subr.bf16.mxu0 0
        %1910 = vmatpush2.bf16.msra.mxu0 0
        %1911 = vmatprep.subr.bf16.mxu0 0
        %1912 = vmatpush2.bf16.msra.mxu0 0
        %1913 = vmatprep.subr.bf16.mxu0 0
        %1914 = vmatpush2.bf16.msra.mxu0 0
        %1915 = vmatprep.subr.bf16.mxu0 0
        %1916 = vmatpush2.bf16.msra.mxu0 0
        %1917 = vmatprep.mubr.bf16.mxu0 0
        %1918 = vmatmul.mubr.bf16.gmra.mxu0 %v1259
        %v1919 = vpop.f32.mrf.mxu0
        %v1920 = vadd.f32 %v1727, %v1919
        %v1921 = vpop.f32.mrf.mxu0
        %v1922 = vadd.f32 %v1729, %v1921
        %v1923 = vpop.f32.mrf.mxu0
        %v1924 = vadd.f32 %v1731, %v1923
        %v1925 = vpop.f32.mrf.mxu0
        %v1926 = vadd.f32 %v1733, %v1925
        %1927 = vmatprep.mubr.bf16.mxu0 0
        %1928 = vmatmul.mubr.bf16.gmra.mxu0 %v1262
        %v1929 = vpop.f32.mrf.mxu0
        %v1930 = vadd.f32 %v1737, %v1929
        %v1931 = vpop.f32.mrf.mxu0
        %v1932 = vadd.f32 %v1739, %v1931
        %v1933 = vpop.f32.mrf.mxu0
        %v1934 = vadd.f32 %v1741, %v1933
        %v1935 = vpop.f32.mrf.mxu0
        %v1936 = vadd.f32 %v1743, %v1935
        %1937 = vmatprep.mubr.bf16.mxu0 0
        %1938 = vmatmul.mubr.bf16.gmra.mxu0 %v1265
        %v1939 = vpop.f32.mrf.mxu0
        %v1940 = vadd.f32 %v1747, %v1939
        %v1941 = vpop.f32.mrf.mxu0
        %v1942 = vadd.f32 %v1749, %v1941
        %v1943 = vpop.f32.mrf.mxu0
        %v1944 = vadd.f32 %v1751, %v1943
        %v1945 = vpop.f32.mrf.mxu0
        %v1946 = vadd.f32 %v1753, %v1945
        %1947 = vmatprep.mubr.bf16.mxu0 0
        %1948 = vmatmul.mubr.bf16.gmra.mxu0 %v1268
        %v1949 = vpop.f32.mrf.mxu0
        %v1950 = vadd.f32 %v1757, %v1949
        %v1951 = vpop.f32.mrf.mxu0
        %v1952 = vadd.f32 %v1759, %v1951
        %v1953 = vpop.f32.mrf.mxu0
        %v1954 = vadd.f32 %v1761, %v1953
        %v1955 = vpop.f32.mrf.mxu0
        %v1956 = vadd.f32 %v1763, %v1955
        %1957 = vmatprep.mubr.bf16.mxu0 0
        %1958 = vmatmul.mubr.bf16.gmra.mxu0 %v1271
        %v1959 = vpop.f32.mrf.mxu0
        %v1960 = vadd.f32 %v1767, %v1959
        %v1961 = vpop.f32.mrf.mxu0
        %v1962 = vadd.f32 %v1769, %v1961
        %v1963 = vpop.f32.mrf.mxu0
        %v1964 = vadd.f32 %v1771, %v1963
        %v1965 = vpop.f32.mrf.mxu0
        %v1966 = vadd.f32 %v1773, %v1965
        %1967 = vmatprep.mubr.bf16.mxu0 0
        %1968 = vmatmul.mubr.bf16.gmra.mxu0 %v1274
        %v1969 = vpop.f32.mrf.mxu0
        %v1970 = vadd.f32 %v1777, %v1969
        %v1971 = vpop.f32.mrf.mxu0
        %v1972 = vadd.f32 %v1779, %v1971
        %v1973 = vpop.f32.mrf.mxu0
        %v1974 = vadd.f32 %v1781, %v1973
        %v1975 = vpop.f32.mrf.mxu0
        %v1976 = vadd.f32 %v1783, %v1975
        %1977 = vmatprep.mubr.bf16.mxu0 0
        %1978 = vmatmul.mubr.bf16.gmra.mxu0 %v1277
        %v1979 = vpop.f32.mrf.mxu0
        %v1980 = vadd.f32 %v1787, %v1979
        %v1981 = vpop.f32.mrf.mxu0
        %v1982 = vadd.f32 %v1789, %v1981
        %v1983 = vpop.f32.mrf.mxu0
        %v1984 = vadd.f32 %v1791, %v1983
        %v1985 = vpop.f32.mrf.mxu0
        %v1986 = vadd.f32 %v1793, %v1985
        %1987 = vmatprep.mubr.bf16.mxu0 0
        %1988 = vmatmul.mubr.bf16.gmra.mxu0 %v1280
        %v1989 = vpop.f32.mrf.mxu0
        %v1990 = vadd.f32 %v1797, %v1989
        %v1991 = vpop.f32.mrf.mxu0
        %v1992 = vadd.f32 %v1799, %v1991
        %v1993 = vpop.f32.mrf.mxu0
        %v1994 = vadd.f32 %v1801, %v1993
        %v1995 = vpop.f32.mrf.mxu0
        %v1996 = vadd.f32 %v1803, %v1995
        %1997 = vmatprep.mubr.bf16.mxu0 0
        %1998 = vmatmul.mubr.bf16.gmra.mxu0 %v1283
        %v1999 = vpop.f32.mrf.mxu0
        %v2000 = vadd.f32 %v1807, %v1999
        %v2001 = vpop.f32.mrf.mxu0
        %v2002 = vadd.f32 %v1809, %v2001
        %v2003 = vpop.f32.mrf.mxu0
        %v2004 = vadd.f32 %v1811, %v2003
        %v2005 = vpop.f32.mrf.mxu0
        %v2006 = vadd.f32 %v1813, %v2005
        %2007 = vmatprep.mubr.bf16.mxu0 0
        %2008 = vmatmul.mubr.bf16.gmra.mxu0 %v1286
        %v2009 = vpop.f32.mrf.mxu0
        %v2010 = vadd.f32 %v1817, %v2009
        %v2011 = vpop.f32.mrf.mxu0
        %v2012 = vadd.f32 %v1819, %v2011
        %v2013 = vpop.f32.mrf.mxu0
        %v2014 = vadd.f32 %v1821, %v2013
        %v2015 = vpop.f32.mrf.mxu0
        %v2016 = vadd.f32 %v1823, %v2015
        %2017 = vmatprep.mubr.bf16.mxu0 0
        %2018 = vmatmul.mubr.bf16.gmra.mxu0 %v1289
        %v2019 = vpop.f32.mrf.mxu0
        %v2020 = vadd.f32 %v1827, %v2019
        %v2021 = vpop.f32.mrf.mxu0
        %v2022 = vadd.f32 %v1829, %v2021
        %v2023 = vpop.f32.mrf.mxu0
        %v2024 = vadd.f32 %v1831, %v2023
        %v2025 = vpop.f32.mrf.mxu0
        %v2026 = vadd.f32 %v1833, %v2025
        %2027 = vmatprep.mubr.bf16.mxu0 0
        %2028 = vmatmul.mubr.bf16.gmra.mxu0 %v1292
        %v2029 = vpop.f32.mrf.mxu0
        %v2030 = vadd.f32 %v1837, %v2029
        %v2031 = vpop.f32.mrf.mxu0
        %v2032 = vadd.f32 %v1839, %v2031
        %v2033 = vpop.f32.mrf.mxu0
        %v2034 = vadd.f32 %v1841, %v2033
        %v2035 = vpop.f32.mrf.mxu0
        %v2036 = vadd.f32 %v1843, %v2035
        %2037 = vmatprep.mubr.bf16.mxu0 0
        %2038 = vmatmul.mubr.bf16.gmra.mxu0 %v1295
        %v2039 = vpop.f32.mrf.mxu0
        %v2040 = vadd.f32 %v1847, %v2039
        %v2041 = vpop.f32.mrf.mxu0
        %v2042 = vadd.f32 %v1849, %v2041
        %v2043 = vpop.f32.mrf.mxu0
        %v2044 = vadd.f32 %v1851, %v2043
        %v2045 = vpop.f32.mrf.mxu0
        %v2046 = vadd.f32 %v1853, %v2045
        %2047 = vmatprep.mubr.bf16.mxu0 0
        %2048 = vmatmul.mubr.bf16.gmra.mxu0 %v1298
        %v2049 = vpop.f32.mrf.mxu0
        %v2050 = vadd.f32 %v1857, %v2049
        %v2051 = vpop.f32.mrf.mxu0
        %v2052 = vadd.f32 %v1859, %v2051
        %v2053 = vpop.f32.mrf.mxu0
        %v2054 = vadd.f32 %v1861, %v2053
        %v2055 = vpop.f32.mrf.mxu0
        %v2056 = vadd.f32 %v1863, %v2055
        %2057 = vmatprep.mubr.bf16.mxu0 0
        %2058 = vmatmul.mubr.bf16.gmra.mxu0 %v1301
        %v2059 = vpop.f32.mrf.mxu0
        %v2060 = vadd.f32 %v1867, %v2059
        %v2061 = vpop.f32.mrf.mxu0
        %v2062 = vadd.f32 %v1869, %v2061
        %v2063 = vpop.f32.mrf.mxu0
        %v2064 = vadd.f32 %v1871, %v2063
        %v2065 = vpop.f32.mrf.mxu0
        %v2066 = vadd.f32 %v1873, %v2065
        %2067 = vmatprep.mubr.bf16.mxu0 0
        %2068 = vmatmul.mubr.bf16.gmra.mxu0 %v1304
        %v2069 = vpop.f32.mrf.mxu0
        %v2070 = vadd.f32 %v1877, %v2069
        %v2071 = vpop.f32.mrf.mxu0
        %v2072 = vadd.f32 %v1879, %v2071
        %v2073 = vpop.f32.mrf.mxu0
        %v2074 = vadd.f32 %v1881, %v2073
        %v2075 = vpop.f32.mrf.mxu0
        %v2076 = vadd.f32 %v1883, %v2075
        %2077 = vdwg.mxu0
        %v2078 = vmax.f32 %v1920, 0.0
        %v2079 = vmax.f32 %v1922, 0.0
        %v2080 = vmax.f32 %v1924, 0.0
        %v2081 = vmax.f32 %v1926, 0.0
        %v2082 = vmax.f32 %v1930, 0.0
        %v2083 = vmax.f32 %v1932, 0.0
        %v2084 = vmax.f32 %v1934, 0.0
        %v2085 = vmax.f32 %v1936, 0.0
        %v2086 = vmax.f32 %v1940, 0.0
        %v2087 = vmax.f32 %v1942, 0.0
        %v2088 = vmax.f32 %v1944, 0.0
        %v2089 = vmax.f32 %v1946, 0.0
        %v2090 = vmax.f32 %v1950, 0.0
        %v2091 = vmax.f32 %v1952, 0.0
        %v2092 = vmax.f32 %v1954, 0.0
        %v2093 = vmax.f32 %v1956, 0.0
        %v2094 = vmax.f32 %v1960, 0.0
        %v2095 = vmax.f32 %v1962, 0.0
        %v2096 = vmax.f32 %v1964, 0.0
        %v2097 = vmax.f32 %v1966, 0.0
        %v2098 = vmax.f32 %v1970, 0.0
        %v2099 = vmax.f32 %v1972, 0.0
        %v2100 = vmax.f32 %v1974, 0.0
        %v2101 = vmax.f32 %v1976, 0.0
        %v2102 = vmax.f32 %v1980, 0.0
        %v2103 = vmax.f32 %v1982, 0.0
        %v2104 = vmax.f32 %v1984, 0.0
        %v2105 = vmax.f32 %v1986, 0.0
        %v2106 = vmax.f32 %v1990, 0.0
        %v2107 = vmax.f32 %v1992, 0.0
        %v2108 = vmax.f32 %v1994, 0.0
        %v2109 = vmax.f32 %v1996, 0.0
        %v2110 = vmax.f32 %v2000, 0.0
        %v2111 = vmax.f32 %v2002, 0.0
        %v2112 = vmax.f32 %v2004, 0.0
        %v2113 = vmax.f32 %v2006, 0.0
        %v2114 = vmax.f32 %v2010, 0.0
        %v2115 = vmax.f32 %v2012, 0.0
        %v2116 = vmax.f32 %v2014, 0.0
        %v2117 = vmax.f32 %v2016, 0.0
        %v2118 = vmax.f32 %v2020, 0.0
        %v2119 = vmax.f32 %v2022, 0.0
        %v2120 = vmax.f32 %v2024, 0.0
        %v2121 = vmax.f32 %v2026, 0.0
        %v2122 = vmax.f32 %v2030, 0.0
        %v2123 = vmax.f32 %v2032, 0.0
        %v2124 = vmax.f32 %v2034, 0.0
        %v2125 = vmax.f32 %v2036, 0.0
        %v2126 = vmax.f32 %v2040, 0.0
        %v2127 = vmax.f32 %v2042, 0.0
        %v2128 = vmax.f32 %v2044, 0.0
        %v2129 = vmax.f32 %v2046, 0.0
        %v2130 = vmax.f32 %v2050, 0.0
        %v2131 = vmax.f32 %v2052, 0.0
        %v2132 = vmax.f32 %v2054, 0.0
        %v2133 = vmax.f32 %v2056, 0.0
        %v2134 = vmax.f32 %v2060, 0.0
        %v2135 = vmax.f32 %v2062, 0.0
        %v2136 = vmax.f32 %v2064, 0.0
        %v2137 = vmax.f32 %v2066, 0.0
        %v2138 = vmax.f32 %v2070, 0.0
        %v2139 = vmax.f32 %v2072, 0.0
        %v2140 = vmax.f32 %v2074, 0.0
        %v2141 = vmax.f32 %v2076, 0.0
        %v2142 = vld [vmem:[%s3] sm:$0xff]
        %v2143 = vld [vmem:[%s3 + $0x8] sm:$0xff]
        %v2144 = vld [vmem:[%s3 + $0x10] sm:$0xff]
        %v2145 = vld [vmem:[%s3 + $0x18] sm:$0xff]
        %v2146 = vld [vmem:[%s3 + $0x20] sm:$0xff]
        %v2147 = vld [vmem:[%s3 + $0x28] sm:$0xff]
        %v2148 = vld [vmem:[%s3 + $0x30] sm:$0xff]
        %v2149 = vld [vmem:[%s3 + $0x38] sm:$0xff]
        %v2150 = vld [vmem:[%s3 + $0x40] sm:$0xff]
        %v2151 = vld [vmem:[%s3 + $0x48] sm:$0xff]
        %v2152 = vld [vmem:[%s3 + $0x50] sm:$0xff]
        %v2153 = vld [vmem:[%s3 + $0x58] sm:$0xff]
        %v2154 = vld [vmem:[%s3 + $0x60] sm:$0xff]
        %v2155 = vld [vmem:[%s3 + $0x68] sm:$0xff]
        %v2156 = vld [vmem:[%s3 + $0x70] sm:$0xff]
        %v2157 = vld [vmem:[%s3 + $0x78] sm:$0xff]
        %v2158 = vld [vmem:[%s3 + $0x80] sm:$0xff]
        %v2159 = vld [vmem:[%s3 + $0x88] sm:$0xff]
        %v2160 = vld [vmem:[%s3 + $0x90] sm:$0xff]
        %v2161 = vld [vmem:[%s3 + $0x98] sm:$0xff]
        %v2162 = vld [vmem:[%s3 + $0xa0] sm:$0xff]
        %v2163 = vld [vmem:[%s3 + $0xa8] sm:$0xff]
        %v2164 = vld [vmem:[%s3 + $0xb0] sm:$0xff]
        %v2165 = vld [vmem:[%s3 + $0xb8] sm:$0xff]
        %v2166 = vld [vmem:[%s3 + $0xc0] sm:$0xff]
        %v2167 = vld [vmem:[%s3 + $0xc8] sm:$0xff]
        %v2168 = vld [vmem:[%s3 + $0xd0] sm:$0xff]
        %v2169 = vld [vmem:[%s3 + $0xd8] sm:$0xff]
        %v2170 = vld [vmem:[%s3 + $0xe0] sm:$0xff]
        %v2171 = vld [vmem:[%s3 + $0xe8] sm:$0xff]
        %v2172 = vld [vmem:[%s3 + $0xf0] sm:$0xff]
        %v2173 = vld [vmem:[%s3 + $0xf8] sm:$0xff]
        %v2174 = vld [vmem:[%s4] sm:$0x1]
        %v2176 = vlaneseq
        %v2177 = vshrl.u32 %v2176, 7
        %v2178 = vsub.s32 0, %v2177
        %v2179 = vrot.slane %v2174, %v2178
        %2181 = vmatprep.subr.mxu0 0.0
        %2182 = vmatpush1.msra.mxu0 %v2157
        %2183 = vmatprep.subr.mxu0 0.0
        %2184 = vmatpush1.msra.mxu0 %v2156
        %2185 = vmatprep.subr.mxu0 0.0
        %2186 = vmatpush1.msra.mxu0 %v2155
        %2187 = vmatprep.subr.mxu0 0.0
        %2188 = vmatpush1.msra.mxu0 %v2154
        %2189 = vmatprep.subr.mxu0 0.0
        %2190 = vmatpush1.msra.mxu0 %v2153
        %2191 = vmatprep.subr.mxu0 0.0
        %2192 = vmatpush1.msra.mxu0 %v2152
        %2193 = vmatprep.subr.mxu0 0.0
        %2194 = vmatpush1.msra.mxu0 %v2151
        %2195 = vmatprep.subr.mxu0 0.0
        %2196 = vmatpush1.msra.mxu0 %v2150
        %2197 = vmatprep.subr.mxu0 0.0
        %2198 = vmatpush1.msra.mxu0 %v2149
        %2199 = vmatprep.subr.mxu0 0.0
        %2200 = vmatpush1.msra.mxu0 %v2148
        %2201 = vmatprep.subr.mxu0 0.0
        %2202 = vmatpush1.msra.mxu0 %v2147
        %2203 = vmatprep.subr.mxu0 0.0
        %2204 = vmatpush1.msra.mxu0 %v2146
        %2205 = vmatprep.subr.mxu0 0.0
        %2206 = vmatpush1.msra.mxu0 %v2145
        %2207 = vmatprep.subr.mxu0 0.0
        %2208 = vmatpush1.msra.mxu0 %v2144
        %2209 = vmatprep.subr.mxu0 0.0
        %2210 = vmatpush1.msra.mxu0 %v2143
        %2211 = vmatprep.subr.mxu0 0.0
        %2212 = vmatpush1.msra.mxu0 %v2142
        %2213 = vmatprep.subr.mxu0 0.0
        %2214 = vmatpush2.msra.mxu0 %v2173
        %2215 = vmatprep.subr.mxu0 0.0
        %2216 = vmatpush2.msra.mxu0 %v2172
        %2217 = vmatprep.subr.mxu0 0.0
        %2218 = vmatpush2.msra.mxu0 %v2171
        %2219 = vmatprep.subr.mxu0 0.0
        %2220 = vmatpush2.msra.mxu0 %v2170
        %2221 = vmatprep.subr.mxu0 0.0
        %2222 = vmatpush2.msra.mxu0 %v2169
        %2223 = vmatprep.subr.mxu0 0.0
        %2224 = vmatpush2.msra.mxu0 %v2168
        %2225 = vmatprep.subr.mxu0 0.0
        %2226 = vmatpush2.msra.mxu0 %v2167
        %2227 = vmatprep.subr.mxu0 0.0
        %2228 = vmatpush2.msra.mxu0 %v2166
        %2229 = vmatprep.subr.mxu0 0.0
        %2230 = vmatpush2.msra.mxu0 %v2165
        %2231 = vmatprep.subr.mxu0 0.0
        %2232 = vmatpush2.msra.mxu0 %v2164
        %2233 = vmatprep.subr.mxu0 0.0
        %2234 = vmatpush2.msra.mxu0 %v2163
        %2235 = vmatprep.subr.mxu0 0.0
        %2236 = vmatpush2.msra.mxu0 %v2162
        %2237 = vmatprep.subr.mxu0 0.0
        %2238 = vmatpush2.msra.mxu0 %v2161
        %2239 = vmatprep.subr.mxu0 0.0
        %2240 = vmatpush2.msra.mxu0 %v2160
        %2241 = vmatprep.subr.mxu0 0.0
        %2242 = vmatpush2.msra.mxu0 %v2159
        %2243 = vmatprep.subr.mxu0 0.0
        %2244 = vmatpush2.msra.mxu0 %v2158
        %2245 = vmatprep.mubr.f32.mxu0 %v2079
        %2246 = vmatmul.mubr.f32.gmra.mxu0 %v2078
        %v2247 = vpop.f32.mrf.mxu0
        %v2248 = vadd.f32 %v2179, %v2247
        %v2249 = vpop.f32.mrf.mxu0
        %2250 = vmatprep.mubr.f32.mxu0 %v2081
        %2251 = vmatmul.mubr.f32.gmra.mxu0 %v2080
        %v2252 = vpop.f32.mrf.mxu0
        %v2253 = vadd.f32 %v2179, %v2252
        %v2254 = vpop.f32.mrf.mxu0
        %2255 = vmatprep.mubr.f32.mxu0 %v2083
        %2256 = vmatmul.mubr.f32.gmra.mxu0 %v2082
        %v2257 = vpop.f32.mrf.mxu0
        %v2258 = vadd.f32 %v2179, %v2257
        %v2259 = vpop.f32.mrf.mxu0
        %2260 = vmatprep.mubr.f32.mxu0 %v2085
        %2261 = vmatmul.mubr.f32.gmra.mxu0 %v2084
        %v2262 = vpop.f32.mrf.mxu0
        %v2263 = vadd.f32 %v2179, %v2262
        %v2264 = vpop.f32.mrf.mxu0
        %2265 = vmatprep.mubr.f32.mxu0 %v2087
        %2266 = vmatmul.mubr.f32.gmra.mxu0 %v2086
        %v2267 = vpop.f32.mrf.mxu0
        %v2268 = vadd.f32 %v2179, %v2267
        %v2269 = vpop.f32.mrf.mxu0
        %2270 = vmatprep.mubr.f32.mxu0 %v2089
        %2271 = vmatmul.mubr.f32.gmra.mxu0 %v2088
        %v2272 = vpop.f32.mrf.mxu0
        %v2273 = vadd.f32 %v2179, %v2272
        %v2274 = vpop.f32.mrf.mxu0
        %2275 = vmatprep.mubr.f32.mxu0 %v2091
        %2276 = vmatmul.mubr.f32.gmra.mxu0 %v2090
        %v2277 = vpop.f32.mrf.mxu0
        %v2278 = vadd.f32 %v2179, %v2277
        %v2279 = vpop.f32.mrf.mxu0
        %2280 = vmatprep.mubr.f32.mxu0 %v2093
        %2281 = vmatmul.mubr.f32.gmra.mxu0 %v2092
        %v2282 = vpop.f32.mrf.mxu0
        %v2283 = vadd.f32 %v2179, %v2282
        %v2284 = vpop.f32.mrf.mxu0
        %2285 = vmatprep.mubr.f32.mxu0 %v2095
        %2286 = vmatmul.mubr.f32.gmra.mxu0 %v2094
        %v2287 = vpop.f32.mrf.mxu0
        %v2288 = vadd.f32 %v2179, %v2287
        %v2289 = vpop.f32.mrf.mxu0
        %2290 = vmatprep.mubr.f32.mxu0 %v2097
        %2291 = vmatmul.mubr.f32.gmra.mxu0 %v2096
        %v2292 = vpop.f32.mrf.mxu0
        %v2293 = vadd.f32 %v2179, %v2292
        %v2294 = vpop.f32.mrf.mxu0
        %2295 = vmatprep.mubr.f32.mxu0 %v2099
        %2296 = vmatmul.mubr.f32.gmra.mxu0 %v2098
        %v2297 = vpop.f32.mrf.mxu0
        %v2298 = vadd.f32 %v2179, %v2297
        %v2299 = vpop.f32.mrf.mxu0
        %2300 = vmatprep.mubr.f32.mxu0 %v2101
        %2301 = vmatmul.mubr.f32.gmra.mxu0 %v2100
        %v2302 = vpop.f32.mrf.mxu0
        %v2303 = vadd.f32 %v2179, %v2302
        %v2304 = vpop.f32.mrf.mxu0
        %2305 = vmatprep.mubr.f32.mxu0 %v2103
        %2306 = vmatmul.mubr.f32.gmra.mxu0 %v2102
        %v2307 = vpop.f32.mrf.mxu0
        %v2308 = vadd.f32 %v2179, %v2307
        %v2309 = vpop.f32.mrf.mxu0
        %2310 = vmatprep.mubr.f32.mxu0 %v2105
        %2311 = vmatmul.mubr.f32.gmra.mxu0 %v2104
        %v2312 = vpop.f32.mrf.mxu0
        %v2313 = vadd.f32 %v2179, %v2312
        %v2314 = vpop.f32.mrf.mxu0
        %2315 = vmatprep.mubr.f32.mxu0 %v2107
        %2316 = vmatmul.mubr.f32.gmra.mxu0 %v2106
        %v2317 = vpop.f32.mrf.mxu0
        %v2318 = vadd.f32 %v2179, %v2317
        %v2319 = vpop.f32.mrf.mxu0
        %2320 = vmatprep.mubr.f32.mxu0 %v2109
        %2321 = vmatmul.mubr.f32.gmra.mxu0 %v2108
        %v2322 = vpop.f32.mrf.mxu0
        %v2323 = vadd.f32 %v2179, %v2322
        %v2324 = vpop.f32.mrf.mxu0
        %2325 = vmatprep.mubr.f32.mxu0 %v2111
        %2326 = vmatmul.mubr.f32.gmra.mxu0 %v2110
        %v2327 = vpop.f32.mrf.mxu0
        %v2328 = vadd.f32 %v2179, %v2327
        %v2329 = vpop.f32.mrf.mxu0
        %2330 = vmatprep.mubr.f32.mxu0 %v2113
        %2331 = vmatmul.mubr.f32.gmra.mxu0 %v2112
        %v2332 = vpop.f32.mrf.mxu0
        %v2333 = vadd.f32 %v2179, %v2332
        %v2334 = vpop.f32.mrf.mxu0
        %2335 = vmatprep.mubr.f32.mxu0 %v2115
        %2336 = vmatmul.mubr.f32.gmra.mxu0 %v2114
        %v2337 = vpop.f32.mrf.mxu0
        %v2338 = vadd.f32 %v2179, %v2337
        %v2339 = vpop.f32.mrf.mxu0
        %2340 = vmatprep.mubr.f32.mxu0 %v2117
        %2341 = vmatmul.mubr.f32.gmra.mxu0 %v2116
        %v2342 = vpop.f32.mrf.mxu0
        %v2343 = vadd.f32 %v2179, %v2342
        %v2344 = vpop.f32.mrf.mxu0
        %2345 = vmatprep.mubr.f32.mxu0 %v2119
        %2346 = vmatmul.mubr.f32.gmra.mxu0 %v2118
        %v2347 = vpop.f32.mrf.mxu0
        %v2348 = vadd.f32 %v2179, %v2347
        %v2349 = vpop.f32.mrf.mxu0
        %2350 = vmatprep.mubr.f32.mxu0 %v2121
        %2351 = vmatmul.mubr.f32.gmra.mxu0 %v2120
        %v2352 = vpop.f32.mrf.mxu0
        %v2353 = vadd.f32 %v2179, %v2352
        %v2354 = vpop.f32.mrf.mxu0
        %2355 = vmatprep.mubr.f32.mxu0 %v2123
        %2356 = vmatmul.mubr.f32.gmra.mxu0 %v2122
        %v2357 = vpop.f32.mrf.mxu0
        %v2358 = vadd.f32 %v2179, %v2357
        %v2359 = vpop.f32.mrf.mxu0
        %2360 = vmatprep.mubr.f32.mxu0 %v2125
        %2361 = vmatmul.mubr.f32.gmra.mxu0 %v2124
        %v2362 = vpop.f32.mrf.mxu0
        %v2363 = vadd.f32 %v2179, %v2362
        %v2364 = vpop.f32.mrf.mxu0
        %2365 = vmatprep.mubr.f32.mxu0 %v2127
        %2366 = vmatmul.mubr.f32.gmra.mxu0 %v2126
        %v2367 = vpop.f32.mrf.mxu0
        %v2368 = vadd.f32 %v2179, %v2367
        %v2369 = vpop.f32.mrf.mxu0
        %2370 = vmatprep.mubr.f32.mxu0 %v2129
        %2371 = vmatmul.mubr.f32.gmra.mxu0 %v2128
        %v2372 = vpop.f32.mrf.mxu0
        %v2373 = vadd.f32 %v2179, %v2372
        %v2374 = vpop.f32.mrf.mxu0
        %2375 = vmatprep.mubr.f32.mxu0 %v2131
        %2376 = vmatmul.mubr.f32.gmra.mxu0 %v2130
        %v2377 = vpop.f32.mrf.mxu0
        %v2378 = vadd.f32 %v2179, %v2377
        %v2379 = vpop.f32.mrf.mxu0
        %2380 = vmatprep.mubr.f32.mxu0 %v2133
        %2381 = vmatmul.mubr.f32.gmra.mxu0 %v2132
        %v2382 = vpop.f32.mrf.mxu0
        %v2383 = vadd.f32 %v2179, %v2382
        %v2384 = vpop.f32.mrf.mxu0
        %2385 = vmatprep.mubr.f32.mxu0 %v2135
        %2386 = vmatmul.mubr.f32.gmra.mxu0 %v2134
        %v2387 = vpop.f32.mrf.mxu0
        %v2388 = vadd.f32 %v2179, %v2387
        %v2389 = vpop.f32.mrf.mxu0
        %2390 = vmatprep.mubr.f32.mxu0 %v2137
        %2391 = vmatmul.mubr.f32.gmra.mxu0 %v2136
        %v2392 = vpop.f32.mrf.mxu0
        %v2393 = vadd.f32 %v2179, %v2392
        %v2394 = vpop.f32.mrf.mxu0
        %2395 = vmatprep.mubr.f32.mxu0 %v2139
        %2396 = vmatmul.mubr.f32.gmra.mxu0 %v2138
        %v2397 = vpop.f32.mrf.mxu0
        %v2398 = vadd.f32 %v2179, %v2397
        %v2399 = vpop.f32.mrf.mxu0
        %2400 = vmatprep.mubr.f32.mxu0 %v2141
        %2401 = vmatmul.mubr.f32.gmra.mxu0 %v2140
        %v2402 = vpop.f32.mrf.mxu0
        %v2403 = vadd.f32 %v2179, %v2402
        %v2404 = vpop.f32.mrf.mxu0
        %2405 = vdwg.mxu0
        %v2406 = vmax.f32 %v2248, 0.0
        %v2407 = vmax.f32 %v2253, 0.0
        %v2408 = vmax.f32 %v2258, 0.0
        %v2409 = vmax.f32 %v2263, 0.0
        %v2410 = vmax.f32 %v2268, 0.0
        %v2411 = vmax.f32 %v2273, 0.0
        %v2412 = vmax.f32 %v2278, 0.0
        %v2413 = vmax.f32 %v2283, 0.0
        %v2414 = vmax.f32 %v2288, 0.0
        %v2415 = vmax.f32 %v2293, 0.0
        %v2416 = vmax.f32 %v2298, 0.0
        %v2417 = vmax.f32 %v2303, 0.0
        %v2418 = vmax.f32 %v2308, 0.0
        %v2419 = vmax.f32 %v2313, 0.0
        %v2420 = vmax.f32 %v2318, 0.0
        %v2421 = vmax.f32 %v2323, 0.0
        %v2422 = vmax.f32 %v2328, 0.0
        %v2423 = vmax.f32 %v2333, 0.0
        %v2424 = vmax.f32 %v2338, 0.0
        %v2425 = vmax.f32 %v2343, 0.0
        %v2426 = vmax.f32 %v2348, 0.0
        %v2427 = vmax.f32 %v2353, 0.0
        %v2428 = vmax.f32 %v2358, 0.0
        %v2429 = vmax.f32 %v2363, 0.0
        %v2430 = vmax.f32 %v2368, 0.0
        %v2431 = vmax.f32 %v2373, 0.0
        %v2432 = vmax.f32 %v2378, 0.0
        %v2433 = vmax.f32 %v2383, 0.0
        %v2434 = vmax.f32 %v2388, 0.0
        %v2435 = vmax.f32 %v2393, 0.0
        %v2436 = vmax.f32 %v2398, 0.0
        %v2437 = vmax.f32 %v2403, 0.0
        %v2438 = vld [vmem:[%s5] sm:$0x1]
        %v2440 = vlaneseq
        %v2441 = vshrl.u32 %v2440, 7
        %v2442 = vsub.s32 0, %v2441
        %v2443 = vrot.slane %v2438, %v2442
        %v2445 = vmul.f32 %v2406, %v2443
        %v2446 = vmul.f32 %v2407, %v2443
        %v2447 = vmul.f32 %v2408, %v2443
        %v2448 = vmul.f32 %v2409, %v2443
        %v2449 = vmul.f32 %v2410, %v2443
        %v2450 = vmul.f32 %v2411, %v2443
        %v2451 = vmul.f32 %v2412, %v2443
        %v2452 = vmul.f32 %v2413, %v2443
        %v2453 = vmul.f32 %v2414, %v2443
        %v2454 = vmul.f32 %v2415, %v2443
        %v2455 = vmul.f32 %v2416, %v2443
        %v2456 = vmul.f32 %v2417, %v2443
        %v2457 = vmul.f32 %v2418, %v2443
        %v2458 = vmul.f32 %v2419, %v2443
        %v2459 = vmul.f32 %v2420, %v2443
        %v2460 = vmul.f32 %v2421, %v2443
        %v2461 = vmul.f32 %v2422, %v2443
        %v2462 = vmul.f32 %v2423, %v2443
        %v2463 = vmul.f32 %v2424, %v2443
        %v2464 = vmul.f32 %v2425, %v2443
        %v2465 = vmul.f32 %v2426, %v2443
        %v2466 = vmul.f32 %v2427, %v2443
        %v2467 = vmul.f32 %v2428, %v2443
        %v2468 = vmul.f32 %v2429, %v2443
        %v2469 = vmul.f32 %v2430, %v2443
        %v2470 = vmul.f32 %v2431, %v2443
        %v2471 = vmul.f32 %v2432, %v2443
        %v2472 = vmul.f32 %v2433, %v2443
        %v2473 = vmul.f32 %v2434, %v2443
        %v2474 = vmul.f32 %v2435, %v2443
        %v2475 = vmul.f32 %v2436, %v2443
        %v2476 = vmul.f32 %v2437, %v2443
        %vm2477 = vcmask 261120
        %v2478 = vsel %vm2477, %v2445, 0.0
        %2479 = vadd.xlane.f32.xlu0 %v2478
        %v2480 = vpop.xlane.xlu0 %2479
        %v2481 = vsel %vm2477, %v2446, 0.0
        %2482 = vadd.xlane.f32.xlu0 %v2481
        %v2483 = vpop.xlane.xlu0 %2482
        %v2484 = vsel %vm2477, %v2447, 0.0
        %2485 = vadd.xlane.f32.xlu0 %v2484
        %v2486 = vpop.xlane.xlu0 %2485
        %v2487 = vsel %vm2477, %v2448, 0.0
        %2488 = vadd.xlane.f32.xlu0 %v2487
        %v2489 = vpop.xlane.xlu0 %2488
        %v2490 = vsel %vm2477, %v2449, 0.0
        %2491 = vadd.xlane.f32.xlu0 %v2490
        %v2492 = vpop.xlane.xlu0 %2491
        %v2493 = vsel %vm2477, %v2450, 0.0
        %2494 = vadd.xlane.f32.xlu0 %v2493
        %v2495 = vpop.xlane.xlu0 %2494
        %v2496 = vsel %vm2477, %v2451, 0.0
        %2497 = vadd.xlane.f32.xlu0 %v2496
        %v2498 = vpop.xlane.xlu0 %2497
        %v2499 = vsel %vm2477, %v2452, 0.0
        %2500 = vadd.xlane.f32.xlu0 %v2499
        %v2501 = vpop.xlane.xlu0 %2500
        %v2502 = vsel %vm2477, %v2453, 0.0
        %2503 = vadd.xlane.f32.xlu0 %v2502
        %v2504 = vpop.xlane.xlu0 %2503
        %v2505 = vsel %vm2477, %v2454, 0.0
        %2506 = vadd.xlane.f32.xlu0 %v2505
        %v2507 = vpop.xlane.xlu0 %2506
        %v2508 = vsel %vm2477, %v2455, 0.0
        %2509 = vadd.xlane.f32.xlu0 %v2508
        %v2510 = vpop.xlane.xlu0 %2509
        %v2511 = vsel %vm2477, %v2456, 0.0
        %2512 = vadd.xlane.f32.xlu0 %v2511
        %v2513 = vpop.xlane.xlu0 %2512
        %v2514 = vsel %vm2477, %v2457, 0.0
        %2515 = vadd.xlane.f32.xlu0 %v2514
        %v2516 = vpop.xlane.xlu0 %2515
        %v2517 = vsel %vm2477, %v2458, 0.0
        %2518 = vadd.xlane.f32.xlu0 %v2517
        %v2519 = vpop.xlane.xlu0 %2518
        %v2520 = vsel %vm2477, %v2459, 0.0
        %2521 = vadd.xlane.f32.xlu0 %v2520
        %v2522 = vpop.xlane.xlu0 %2521
        %v2523 = vsel %vm2477, %v2460, 0.0
        %2524 = vadd.xlane.f32.xlu0 %v2523
        %v2525 = vpop.xlane.xlu0 %2524
        %v2526 = vsel %vm2477, %v2461, 0.0
        %2527 = vadd.xlane.f32.xlu0 %v2526
        %v2528 = vpop.xlane.xlu0 %2527
        %v2529 = vsel %vm2477, %v2462, 0.0
        %2530 = vadd.xlane.f32.xlu0 %v2529
        %v2531 = vpop.xlane.xlu0 %2530
        %v2532 = vsel %vm2477, %v2463, 0.0
        %2533 = vadd.xlane.f32.xlu0 %v2532
        %v2534 = vpop.xlane.xlu0 %2533
        %v2535 = vsel %vm2477, %v2464, 0.0
        %2536 = vadd.xlane.f32.xlu0 %v2535
        %v2537 = vpop.xlane.xlu0 %2536
        %v2538 = vsel %vm2477, %v2465, 0.0
        %2539 = vadd.xlane.f32.xlu0 %v2538
        %v2540 = vpop.xlane.xlu0 %2539
        %v2541 = vsel %vm2477, %v2466, 0.0
        %2542 = vadd.xlane.f32.xlu0 %v2541
        %v2543 = vpop.xlane.xlu0 %2542
        %v2544 = vsel %vm2477, %v2467, 0.0
        %2545 = vadd.xlane.f32.xlu0 %v2544
        %v2546 = vpop.xlane.xlu0 %2545
        %v2547 = vsel %vm2477, %v2468, 0.0
        %2548 = vadd.xlane.f32.xlu0 %v2547
        %v2549 = vpop.xlane.xlu0 %2548
        %v2550 = vsel %vm2477, %v2469, 0.0
        %2551 = vadd.xlane.f32.xlu0 %v2550
        %v2552 = vpop.xlane.xlu0 %2551
        %v2553 = vsel %vm2477, %v2470, 0.0
        %2554 = vadd.xlane.f32.xlu0 %v2553
        %v2555 = vpop.xlane.xlu0 %2554
        %v2556 = vsel %vm2477, %v2471, 0.0
        %2557 = vadd.xlane.f32.xlu0 %v2556
        %v2558 = vpop.xlane.xlu0 %2557
        %v2559 = vsel %vm2477, %v2472, 0.0
        %2560 = vadd.xlane.f32.xlu0 %v2559
        %v2561 = vpop.xlane.xlu0 %2560
        %v2562 = vsel %vm2477, %v2473, 0.0
        %2563 = vadd.xlane.f32.xlu0 %v2562
        %v2564 = vpop.xlane.xlu0 %2563
        %v2565 = vsel %vm2477, %v2474, 0.0
        %2566 = vadd.xlane.f32.xlu0 %v2565
        %v2567 = vpop.xlane.xlu0 %2566
        %v2568 = vsel %vm2477, %v2475, 0.0
        %2569 = vadd.xlane.f32.xlu0 %v2568
        %v2570 = vpop.xlane.xlu0 %2569
        %v2571 = vsel %vm2477, %v2476, 0.0
        %2572 = vadd.xlane.f32.xlu0 %v2571
        %v2573 = vpop.xlane.xlu0 %2572
        %s2574 = sld [smem:[#allocation2]]
        %v2575 = vstv %s2574
        %v2576 = vadd.f32 %v2480, %v2575
        %v2577 = vadd.f32 %v2483, %v2575
        %v2578 = vadd.f32 %v2486, %v2575
        %v2579 = vadd.f32 %v2489, %v2575
        %v2580 = vadd.f32 %v2492, %v2575
        %v2581 = vadd.f32 %v2495, %v2575
        %v2582 = vadd.f32 %v2498, %v2575
        %v2583 = vadd.f32 %v2501, %v2575
        %v2584 = vadd.f32 %v2504, %v2575
        %v2585 = vadd.f32 %v2507, %v2575
        %v2586 = vadd.f32 %v2510, %v2575
        %v2587 = vadd.f32 %v2513, %v2575
        %v2588 = vadd.f32 %v2516, %v2575
        %v2589 = vadd.f32 %v2519, %v2575
        %v2590 = vadd.f32 %v2522, %v2575
        %v2591 = vadd.f32 %v2525, %v2575
        %v2592 = vadd.f32 %v2528, %v2575
        %v2593 = vadd.f32 %v2531, %v2575
        %v2594 = vadd.f32 %v2534, %v2575
        %v2595 = vadd.f32 %v2537, %v2575
        %v2596 = vadd.f32 %v2540, %v2575
        %v2597 = vadd.f32 %v2543, %v2575
        %v2598 = vadd.f32 %v2546, %v2575
        %v2599 = vadd.f32 %v2549, %v2575
        %v2600 = vadd.f32 %v2552, %v2575
        %v2601 = vadd.f32 %v2555, %v2575
        %v2602 = vadd.f32 %v2558, %v2575
        %v2603 = vadd.f32 %v2561, %v2575
        %v2604 = vadd.f32 %v2564, %v2575
        %v2605 = vadd.f32 %v2567, %v2575
        %v2606 = vadd.f32 %v2570, %v2575
        %v2607 = vadd.f32 %v2573, %v2575
        %v2640 = vlaneseq
        %v2641 = vshrl.u32 %v2640, 7
        %v2642 = vsub.s32 0, %v2641
        %v2643 = vrot.slane %v2576, %v2642
        %v2644 = vlaneseq
        %v2645 = vshrl.u32 %v2644, 7
        %v2646 = vsub.s32 1, %v2645
        %v2647 = vrot.slane %v2576, %v2646
        %v2648 = vlaneseq
        %v2649 = vshrl.u32 %v2648, 7
        %v2650 = vsub.s32 2, %v2649
        %v2651 = vrot.slane %v2576, %v2650
        %v2652 = vlaneseq
        %v2653 = vshrl.u32 %v2652, 7
        %v2654 = vsub.s32 3, %v2653
        %v2655 = vrot.slane %v2576, %v2654
        %v2656 = vlaneseq
        %v2657 = vshrl.u32 %v2656, 7
        %v2658 = vsub.s32 4, %v2657
        %v2659 = vrot.slane %v2576, %v2658
        %v2660 = vlaneseq
        %v2661 = vshrl.u32 %v2660, 7
        %v2662 = vsub.s32 5, %v2661
        %v2663 = vrot.slane %v2576, %v2662
        %v2664 = vlaneseq
        %v2665 = vshrl.u32 %v2664, 7
        %v2666 = vsub.s32 6, %v2665
        %v2667 = vrot.slane %v2576, %v2666
        %v2668 = vlaneseq
        %v2669 = vshrl.u32 %v2668, 7
        %v2670 = vsub.s32 7, %v2669
        %v2671 = vrot.slane %v2576, %v2670
        %v2672 = vlaneseq
        %v2673 = vshrl.u32 %v2672, 7
        %v2674 = vsub.s32 0, %v2673
        %v2675 = vrot.slane %v2577, %v2674
        %v2676 = vlaneseq
        %v2677 = vshrl.u32 %v2676, 7
        %v2678 = vsub.s32 1, %v2677
        %v2679 = vrot.slane %v2577, %v2678
        %v2680 = vlaneseq
        %v2681 = vshrl.u32 %v2680, 7
        %v2682 = vsub.s32 2, %v2681
        %v2683 = vrot.slane %v2577, %v2682
        %v2684 = vlaneseq
        %v2685 = vshrl.u32 %v2684, 7
        %v2686 = vsub.s32 3, %v2685
        %v2687 = vrot.slane %v2577, %v2686
        %v2688 = vlaneseq
        %v2689 = vshrl.u32 %v2688, 7
        %v2690 = vsub.s32 4, %v2689
        %v2691 = vrot.slane %v2577, %v2690
        %v2692 = vlaneseq
        %v2693 = vshrl.u32 %v2692, 7
        %v2694 = vsub.s32 5, %v2693
        %v2695 = vrot.slane %v2577, %v2694
        %v2696 = vlaneseq
        %v2697 = vshrl.u32 %v2696, 7
        %v2698 = vsub.s32 6, %v2697
        %v2699 = vrot.slane %v2577, %v2698
        %v2700 = vlaneseq
        %v2701 = vshrl.u32 %v2700, 7
        %v2702 = vsub.s32 7, %v2701
        %v2703 = vrot.slane %v2577, %v2702
        %v2704 = vlaneseq
        %v2705 = vshrl.u32 %v2704, 7
        %v2706 = vsub.s32 0, %v2705
        %v2707 = vrot.slane %v2578, %v2706
        %v2708 = vlaneseq
        %v2709 = vshrl.u32 %v2708, 7
        %v2710 = vsub.s32 1, %v2709
        %v2711 = vrot.slane %v2578, %v2710
        %v2712 = vlaneseq
        %v2713 = vshrl.u32 %v2712, 7
        %v2714 = vsub.s32 2, %v2713
        %v2715 = vrot.slane %v2578, %v2714
        %v2716 = vlaneseq
        %v2717 = vshrl.u32 %v2716, 7
        %v2718 = vsub.s32 3, %v2717
        %v2719 = vrot.slane %v2578, %v2718
        %v2720 = vlaneseq
        %v2721 = vshrl.u32 %v2720, 7
        %v2722 = vsub.s32 4, %v2721
        %v2723 = vrot.slane %v2578, %v2722
        %v2724 = vlaneseq
        %v2725 = vshrl.u32 %v2724, 7
        %v2726 = vsub.s32 5, %v2725
        %v2727 = vrot.slane %v2578, %v2726
        %v2728 = vlaneseq
        %v2729 = vshrl.u32 %v2728, 7
        %v2730 = vsub.s32 6, %v2729
        %v2731 = vrot.slane %v2578, %v2730
        %v2732 = vlaneseq
        %v2733 = vshrl.u32 %v2732, 7
        %v2734 = vsub.s32 7, %v2733
        %v2735 = vrot.slane %v2578, %v2734
        %v2736 = vlaneseq
        %v2737 = vshrl.u32 %v2736, 7
        %v2738 = vsub.s32 0, %v2737
        %v2739 = vrot.slane %v2579, %v2738
        %v2740 = vlaneseq
        %v2741 = vshrl.u32 %v2740, 7
        %v2742 = vsub.s32 1, %v2741
        %v2743 = vrot.slane %v2579, %v2742
        %v2744 = vlaneseq
        %v2745 = vshrl.u32 %v2744, 7
        %v2746 = vsub.s32 2, %v2745
        %v2747 = vrot.slane %v2579, %v2746
        %v2748 = vlaneseq
        %v2749 = vshrl.u32 %v2748, 7
        %v2750 = vsub.s32 3, %v2749
        %v2751 = vrot.slane %v2579, %v2750
        %v2752 = vlaneseq
        %v2753 = vshrl.u32 %v2752, 7
        %v2754 = vsub.s32 4, %v2753
        %v2755 = vrot.slane %v2579, %v2754
        %v2756 = vlaneseq
        %v2757 = vshrl.u32 %v2756, 7
        %v2758 = vsub.s32 5, %v2757
        %v2759 = vrot.slane %v2579, %v2758
        %v2760 = vlaneseq
        %v2761 = vshrl.u32 %v2760, 7
        %v2762 = vsub.s32 6, %v2761
        %v2763 = vrot.slane %v2579, %v2762
        %v2764 = vlaneseq
        %v2765 = vshrl.u32 %v2764, 7
        %v2766 = vsub.s32 7, %v2765
        %v2767 = vrot.slane %v2579, %v2766
        %v2768 = vlaneseq
        %v2769 = vshrl.u32 %v2768, 7
        %v2770 = vsub.s32 0, %v2769
        %v2771 = vrot.slane %v2580, %v2770
        %v2772 = vlaneseq
        %v2773 = vshrl.u32 %v2772, 7
        %v2774 = vsub.s32 1, %v2773
        %v2775 = vrot.slane %v2580, %v2774
        %v2776 = vlaneseq
        %v2777 = vshrl.u32 %v2776, 7
        %v2778 = vsub.s32 2, %v2777
        %v2779 = vrot.slane %v2580, %v2778
        %v2780 = vlaneseq
        %v2781 = vshrl.u32 %v2780, 7
        %v2782 = vsub.s32 3, %v2781
        %v2783 = vrot.slane %v2580, %v2782
        %v2784 = vlaneseq
        %v2785 = vshrl.u32 %v2784, 7
        %v2786 = vsub.s32 4, %v2785
        %v2787 = vrot.slane %v2580, %v2786
        %v2788 = vlaneseq
        %v2789 = vshrl.u32 %v2788, 7
        %v2790 = vsub.s32 5, %v2789
        %v2791 = vrot.slane %v2580, %v2790
        %v2792 = vlaneseq
        %v2793 = vshrl.u32 %v2792, 7
        %v2794 = vsub.s32 6, %v2793
        %v2795 = vrot.slane %v2580, %v2794
        %v2796 = vlaneseq
        %v2797 = vshrl.u32 %v2796, 7
        %v2798 = vsub.s32 7, %v2797
        %v2799 = vrot.slane %v2580, %v2798
        %v2800 = vlaneseq
        %v2801 = vshrl.u32 %v2800, 7
        %v2802 = vsub.s32 0, %v2801
        %v2803 = vrot.slane %v2581, %v2802
        %v2804 = vlaneseq
        %v2805 = vshrl.u32 %v2804, 7
        %v2806 = vsub.s32 1, %v2805
        %v2807 = vrot.slane %v2581, %v2806
        %v2808 = vlaneseq
        %v2809 = vshrl.u32 %v2808, 7
        %v2810 = vsub.s32 2, %v2809
        %v2811 = vrot.slane %v2581, %v2810
        %v2812 = vlaneseq
        %v2813 = vshrl.u32 %v2812, 7
        %v2814 = vsub.s32 3, %v2813
        %v2815 = vrot.slane %v2581, %v2814
        %v2816 = vlaneseq
        %v2817 = vshrl.u32 %v2816, 7
        %v2818 = vsub.s32 4, %v2817
        %v2819 = vrot.slane %v2581, %v2818
        %v2820 = vlaneseq
        %v2821 = vshrl.u32 %v2820, 7
        %v2822 = vsub.s32 5, %v2821
        %v2823 = vrot.slane %v2581, %v2822
        %v2824 = vlaneseq
        %v2825 = vshrl.u32 %v2824, 7
        %v2826 = vsub.s32 6, %v2825
        %v2827 = vrot.slane %v2581, %v2826
        %v2828 = vlaneseq
        %v2829 = vshrl.u32 %v2828, 7
        %v2830 = vsub.s32 7, %v2829
        %v2831 = vrot.slane %v2581, %v2830
        %v2832 = vlaneseq
        %v2833 = vshrl.u32 %v2832, 7
        %v2834 = vsub.s32 0, %v2833
        %v2835 = vrot.slane %v2582, %v2834
        %v2836 = vlaneseq
        %v2837 = vshrl.u32 %v2836, 7
        %v2838 = vsub.s32 1, %v2837
        %v2839 = vrot.slane %v2582, %v2838
        %v2840 = vlaneseq
        %v2841 = vshrl.u32 %v2840, 7
        %v2842 = vsub.s32 2, %v2841
        %v2843 = vrot.slane %v2582, %v2842
        %v2844 = vlaneseq
        %v2845 = vshrl.u32 %v2844, 7
        %v2846 = vsub.s32 3, %v2845
        %v2847 = vrot.slane %v2582, %v2846
        %v2848 = vlaneseq
        %v2849 = vshrl.u32 %v2848, 7
        %v2850 = vsub.s32 4, %v2849
        %v2851 = vrot.slane %v2582, %v2850
        %v2852 = vlaneseq
        %v2853 = vshrl.u32 %v2852, 7
        %v2854 = vsub.s32 5, %v2853
        %v2855 = vrot.slane %v2582, %v2854
        %v2856 = vlaneseq
        %v2857 = vshrl.u32 %v2856, 7
        %v2858 = vsub.s32 6, %v2857
        %v2859 = vrot.slane %v2582, %v2858
        %v2860 = vlaneseq
        %v2861 = vshrl.u32 %v2860, 7
        %v2862 = vsub.s32 7, %v2861
        %v2863 = vrot.slane %v2582, %v2862
        %v2864 = vlaneseq
        %v2865 = vshrl.u32 %v2864, 7
        %v2866 = vsub.s32 0, %v2865
        %v2867 = vrot.slane %v2583, %v2866
        %v2868 = vlaneseq
        %v2869 = vshrl.u32 %v2868, 7
        %v2870 = vsub.s32 1, %v2869
        %v2871 = vrot.slane %v2583, %v2870
        %v2872 = vlaneseq
        %v2873 = vshrl.u32 %v2872, 7
        %v2874 = vsub.s32 2, %v2873
        %v2875 = vrot.slane %v2583, %v2874
        %v2876 = vlaneseq
        %v2877 = vshrl.u32 %v2876, 7
        %v2878 = vsub.s32 3, %v2877
        %v2879 = vrot.slane %v2583, %v2878
        %v2880 = vlaneseq
        %v2881 = vshrl.u32 %v2880, 7
        %v2882 = vsub.s32 4, %v2881
        %v2883 = vrot.slane %v2583, %v2882
        %v2884 = vlaneseq
        %v2885 = vshrl.u32 %v2884, 7
        %v2886 = vsub.s32 5, %v2885
        %v2887 = vrot.slane %v2583, %v2886
        %v2888 = vlaneseq
        %v2889 = vshrl.u32 %v2888, 7
        %v2890 = vsub.s32 6, %v2889
        %v2891 = vrot.slane %v2583, %v2890
        %v2892 = vlaneseq
        %v2893 = vshrl.u32 %v2892, 7
        %v2894 = vsub.s32 7, %v2893
        %v2895 = vrot.slane %v2583, %v2894
        %v2896 = vlaneseq
        %v2897 = vshrl.u32 %v2896, 7
        %v2898 = vsub.s32 0, %v2897
        %v2899 = vrot.slane %v2584, %v2898
        %v2900 = vlaneseq
        %v2901 = vshrl.u32 %v2900, 7
        %v2902 = vsub.s32 1, %v2901
        %v2903 = vrot.slane %v2584, %v2902
        %v2904 = vlaneseq
        %v2905 = vshrl.u32 %v2904, 7
        %v2906 = vsub.s32 2, %v2905
        %v2907 = vrot.slane %v2584, %v2906
        %v2908 = vlaneseq
        %v2909 = vshrl.u32 %v2908, 7
        %v2910 = vsub.s32 3, %v2909
        %v2911 = vrot.slane %v2584, %v2910
        %v2912 = vlaneseq
        %v2913 = vshrl.u32 %v2912, 7
        %v2914 = vsub.s32 4, %v2913
        %v2915 = vrot.slane %v2584, %v2914
        %v2916 = vlaneseq
        %v2917 = vshrl.u32 %v2916, 7
        %v2918 = vsub.s32 5, %v2917
        %v2919 = vrot.slane %v2584, %v2918
        %v2920 = vlaneseq
        %v2921 = vshrl.u32 %v2920, 7
        %v2922 = vsub.s32 6, %v2921
        %v2923 = vrot.slane %v2584, %v2922
        %v2924 = vlaneseq
        %v2925 = vshrl.u32 %v2924, 7
        %v2926 = vsub.s32 7, %v2925
        %v2927 = vrot.slane %v2584, %v2926
        %v2928 = vlaneseq
        %v2929 = vshrl.u32 %v2928, 7
        %v2930 = vsub.s32 0, %v2929
        %v2931 = vrot.slane %v2585, %v2930
        %v2932 = vlaneseq
        %v2933 = vshrl.u32 %v2932, 7
        %v2934 = vsub.s32 1, %v2933
        %v2935 = vrot.slane %v2585, %v2934
        %v2936 = vlaneseq
        %v2937 = vshrl.u32 %v2936, 7
        %v2938 = vsub.s32 2, %v2937
        %v2939 = vrot.slane %v2585, %v2938
        %v2940 = vlaneseq
        %v2941 = vshrl.u32 %v2940, 7
        %v2942 = vsub.s32 3, %v2941
        %v2943 = vrot.slane %v2585, %v2942
        %v2944 = vlaneseq
        %v2945 = vshrl.u32 %v2944, 7
        %v2946 = vsub.s32 4, %v2945
        %v2947 = vrot.slane %v2585, %v2946
        %v2948 = vlaneseq
        %v2949 = vshrl.u32 %v2948, 7
        %v2950 = vsub.s32 5, %v2949
        %v2951 = vrot.slane %v2585, %v2950
        %v2952 = vlaneseq
        %v2953 = vshrl.u32 %v2952, 7
        %v2954 = vsub.s32 6, %v2953
        %v2955 = vrot.slane %v2585, %v2954
        %v2956 = vlaneseq
        %v2957 = vshrl.u32 %v2956, 7
        %v2958 = vsub.s32 7, %v2957
        %v2959 = vrot.slane %v2585, %v2958
        %v2960 = vlaneseq
        %v2961 = vshrl.u32 %v2960, 7
        %v2962 = vsub.s32 0, %v2961
        %v2963 = vrot.slane %v2586, %v2962
        %v2964 = vlaneseq
        %v2965 = vshrl.u32 %v2964, 7
        %v2966 = vsub.s32 1, %v2965
        %v2967 = vrot.slane %v2586, %v2966
        %v2968 = vlaneseq
        %v2969 = vshrl.u32 %v2968, 7
        %v2970 = vsub.s32 2, %v2969
        %v2971 = vrot.slane %v2586, %v2970
        %v2972 = vlaneseq
        %v2973 = vshrl.u32 %v2972, 7
        %v2974 = vsub.s32 3, %v2973
        %v2975 = vrot.slane %v2586, %v2974
        %v2976 = vlaneseq
        %v2977 = vshrl.u32 %v2976, 7
        %v2978 = vsub.s32 4, %v2977
        %v2979 = vrot.slane %v2586, %v2978
        %v2980 = vlaneseq
        %v2981 = vshrl.u32 %v2980, 7
        %v2982 = vsub.s32 5, %v2981
        %v2983 = vrot.slane %v2586, %v2982
        %v2984 = vlaneseq
        %v2985 = vshrl.u32 %v2984, 7
        %v2986 = vsub.s32 6, %v2985
        %v2987 = vrot.slane %v2586, %v2986
        %v2988 = vlaneseq
        %v2989 = vshrl.u32 %v2988, 7
        %v2990 = vsub.s32 7, %v2989
        %v2991 = vrot.slane %v2586, %v2990
        %v2992 = vlaneseq
        %v2993 = vshrl.u32 %v2992, 7
        %v2994 = vsub.s32 0, %v2993
        %v2995 = vrot.slane %v2587, %v2994
        %v2996 = vlaneseq
        %v2997 = vshrl.u32 %v2996, 7
        %v2998 = vsub.s32 1, %v2997
        %v2999 = vrot.slane %v2587, %v2998
        %v3000 = vlaneseq
        %v3001 = vshrl.u32 %v3000, 7
        %v3002 = vsub.s32 2, %v3001
        %v3003 = vrot.slane %v2587, %v3002
        %v3004 = vlaneseq
        %v3005 = vshrl.u32 %v3004, 7
        %v3006 = vsub.s32 3, %v3005
        %v3007 = vrot.slane %v2587, %v3006
        %v3008 = vlaneseq
        %v3009 = vshrl.u32 %v3008, 7
        %v3010 = vsub.s32 4, %v3009
        %v3011 = vrot.slane %v2587, %v3010
        %v3012 = vlaneseq
        %v3013 = vshrl.u32 %v3012, 7
        %v3014 = vsub.s32 5, %v3013
        %v3015 = vrot.slane %v2587, %v3014
        %v3016 = vlaneseq
        %v3017 = vshrl.u32 %v3016, 7
        %v3018 = vsub.s32 6, %v3017
        %v3019 = vrot.slane %v2587, %v3018
        %v3020 = vlaneseq
        %v3021 = vshrl.u32 %v3020, 7
        %v3022 = vsub.s32 7, %v3021
        %v3023 = vrot.slane %v2587, %v3022
        %v3024 = vlaneseq
        %v3025 = vshrl.u32 %v3024, 7
        %v3026 = vsub.s32 0, %v3025
        %v3027 = vrot.slane %v2588, %v3026
        %v3028 = vlaneseq
        %v3029 = vshrl.u32 %v3028, 7
        %v3030 = vsub.s32 1, %v3029
        %v3031 = vrot.slane %v2588, %v3030
        %v3032 = vlaneseq
        %v3033 = vshrl.u32 %v3032, 7
        %v3034 = vsub.s32 2, %v3033
        %v3035 = vrot.slane %v2588, %v3034
        %v3036 = vlaneseq
        %v3037 = vshrl.u32 %v3036, 7
        %v3038 = vsub.s32 3, %v3037
        %v3039 = vrot.slane %v2588, %v3038
        %v3040 = vlaneseq
        %v3041 = vshrl.u32 %v3040, 7
        %v3042 = vsub.s32 4, %v3041
        %v3043 = vrot.slane %v2588, %v3042
        %v3044 = vlaneseq
        %v3045 = vshrl.u32 %v3044, 7
        %v3046 = vsub.s32 5, %v3045
        %v3047 = vrot.slane %v2588, %v3046
        %v3048 = vlaneseq
        %v3049 = vshrl.u32 %v3048, 7
        %v3050 = vsub.s32 6, %v3049
        %v3051 = vrot.slane %v2588, %v3050
        %v3052 = vlaneseq
        %v3053 = vshrl.u32 %v3052, 7
        %v3054 = vsub.s32 7, %v3053
        %v3055 = vrot.slane %v2588, %v3054
        %v3056 = vlaneseq
        %v3057 = vshrl.u32 %v3056, 7
        %v3058 = vsub.s32 0, %v3057
        %v3059 = vrot.slane %v2589, %v3058
        %v3060 = vlaneseq
        %v3061 = vshrl.u32 %v3060, 7
        %v3062 = vsub.s32 1, %v3061
        %v3063 = vrot.slane %v2589, %v3062
        %v3064 = vlaneseq
        %v3065 = vshrl.u32 %v3064, 7
        %v3066 = vsub.s32 2, %v3065
        %v3067 = vrot.slane %v2589, %v3066
        %v3068 = vlaneseq
        %v3069 = vshrl.u32 %v3068, 7
        %v3070 = vsub.s32 3, %v3069
        %v3071 = vrot.slane %v2589, %v3070
        %v3072 = vlaneseq
        %v3073 = vshrl.u32 %v3072, 7
        %v3074 = vsub.s32 4, %v3073
        %v3075 = vrot.slane %v2589, %v3074
        %v3076 = vlaneseq
        %v3077 = vshrl.u32 %v3076, 7
        %v3078 = vsub.s32 5, %v3077
        %v3079 = vrot.slane %v2589, %v3078
        %v3080 = vlaneseq
        %v3081 = vshrl.u32 %v3080, 7
        %v3082 = vsub.s32 6, %v3081
        %v3083 = vrot.slane %v2589, %v3082
        %v3084 = vlaneseq
        %v3085 = vshrl.u32 %v3084, 7
        %v3086 = vsub.s32 7, %v3085
        %v3087 = vrot.slane %v2589, %v3086
        %v3088 = vlaneseq
        %v3089 = vshrl.u32 %v3088, 7
        %v3090 = vsub.s32 0, %v3089
        %v3091 = vrot.slane %v2590, %v3090
        %v3092 = vlaneseq
        %v3093 = vshrl.u32 %v3092, 7
        %v3094 = vsub.s32 1, %v3093
        %v3095 = vrot.slane %v2590, %v3094
        %v3096 = vlaneseq
        %v3097 = vshrl.u32 %v3096, 7
        %v3098 = vsub.s32 2, %v3097
        %v3099 = vrot.slane %v2590, %v3098
        %v3100 = vlaneseq
        %v3101 = vshrl.u32 %v3100, 7
        %v3102 = vsub.s32 3, %v3101
        %v3103 = vrot.slane %v2590, %v3102
        %v3104 = vlaneseq
        %v3105 = vshrl.u32 %v3104, 7
        %v3106 = vsub.s32 4, %v3105
        %v3107 = vrot.slane %v2590, %v3106
        %v3108 = vlaneseq
        %v3109 = vshrl.u32 %v3108, 7
        %v3110 = vsub.s32 5, %v3109
        %v3111 = vrot.slane %v2590, %v3110
        %v3112 = vlaneseq
        %v3113 = vshrl.u32 %v3112, 7
        %v3114 = vsub.s32 6, %v3113
        %v3115 = vrot.slane %v2590, %v3114
        %v3116 = vlaneseq
        %v3117 = vshrl.u32 %v3116, 7
        %v3118 = vsub.s32 7, %v3117
        %v3119 = vrot.slane %v2590, %v3118
        %v3120 = vlaneseq
        %v3121 = vshrl.u32 %v3120, 7
        %v3122 = vsub.s32 0, %v3121
        %v3123 = vrot.slane %v2591, %v3122
        %v3124 = vlaneseq
        %v3125 = vshrl.u32 %v3124, 7
        %v3126 = vsub.s32 1, %v3125
        %v3127 = vrot.slane %v2591, %v3126
        %v3128 = vlaneseq
        %v3129 = vshrl.u32 %v3128, 7
        %v3130 = vsub.s32 2, %v3129
        %v3131 = vrot.slane %v2591, %v3130
        %v3132 = vlaneseq
        %v3133 = vshrl.u32 %v3132, 7
        %v3134 = vsub.s32 3, %v3133
        %v3135 = vrot.slane %v2591, %v3134
        %v3136 = vlaneseq
        %v3137 = vshrl.u32 %v3136, 7
        %v3138 = vsub.s32 4, %v3137
        %v3139 = vrot.slane %v2591, %v3138
        %v3140 = vlaneseq
        %v3141 = vshrl.u32 %v3140, 7
        %v3142 = vsub.s32 5, %v3141
        %v3143 = vrot.slane %v2591, %v3142
        %v3144 = vlaneseq
        %v3145 = vshrl.u32 %v3144, 7
        %v3146 = vsub.s32 6, %v3145
        %v3147 = vrot.slane %v2591, %v3146
        %v3148 = vlaneseq
        %v3149 = vshrl.u32 %v3148, 7
        %v3150 = vsub.s32 7, %v3149
        %v3151 = vrot.slane %v2591, %v3150
        %v3152 = vlaneseq
        %v3153 = vshrl.u32 %v3152, 7
        %v3154 = vsub.s32 0, %v3153
        %v3155 = vrot.slane %v2592, %v3154
        %v3156 = vlaneseq
        %v3157 = vshrl.u32 %v3156, 7
        %v3158 = vsub.s32 1, %v3157
        %v3159 = vrot.slane %v2592, %v3158
        %v3160 = vlaneseq
        %v3161 = vshrl.u32 %v3160, 7
        %v3162 = vsub.s32 2, %v3161
        %v3163 = vrot.slane %v2592, %v3162
        %v3164 = vlaneseq
        %v3165 = vshrl.u32 %v3164, 7
        %v3166 = vsub.s32 3, %v3165
        %v3167 = vrot.slane %v2592, %v3166
        %v3168 = vlaneseq
        %v3169 = vshrl.u32 %v3168, 7
        %v3170 = vsub.s32 4, %v3169
        %v3171 = vrot.slane %v2592, %v3170
        %v3172 = vlaneseq
        %v3173 = vshrl.u32 %v3172, 7
        %v3174 = vsub.s32 5, %v3173
        %v3175 = vrot.slane %v2592, %v3174
        %v3176 = vlaneseq
        %v3177 = vshrl.u32 %v3176, 7
        %v3178 = vsub.s32 6, %v3177
        %v3179 = vrot.slane %v2592, %v3178
        %v3180 = vlaneseq
        %v3181 = vshrl.u32 %v3180, 7
        %v3182 = vsub.s32 7, %v3181
        %v3183 = vrot.slane %v2592, %v3182
        %v3184 = vlaneseq
        %v3185 = vshrl.u32 %v3184, 7
        %v3186 = vsub.s32 0, %v3185
        %v3187 = vrot.slane %v2593, %v3186
        %v3188 = vlaneseq
        %v3189 = vshrl.u32 %v3188, 7
        %v3190 = vsub.s32 1, %v3189
        %v3191 = vrot.slane %v2593, %v3190
        %v3192 = vlaneseq
        %v3193 = vshrl.u32 %v3192, 7
        %v3194 = vsub.s32 2, %v3193
        %v3195 = vrot.slane %v2593, %v3194
        %v3196 = vlaneseq
        %v3197 = vshrl.u32 %v3196, 7
        %v3198 = vsub.s32 3, %v3197
        %v3199 = vrot.slane %v2593, %v3198
        %v3200 = vlaneseq
        %v3201 = vshrl.u32 %v3200, 7
        %v3202 = vsub.s32 4, %v3201
        %v3203 = vrot.slane %v2593, %v3202
        %v3204 = vlaneseq
        %v3205 = vshrl.u32 %v3204, 7
        %v3206 = vsub.s32 5, %v3205
        %v3207 = vrot.slane %v2593, %v3206
        %v3208 = vlaneseq
        %v3209 = vshrl.u32 %v3208, 7
        %v3210 = vsub.s32 6, %v3209
        %v3211 = vrot.slane %v2593, %v3210
        %v3212 = vlaneseq
        %v3213 = vshrl.u32 %v3212, 7
        %v3214 = vsub.s32 7, %v3213
        %v3215 = vrot.slane %v2593, %v3214
        %v3216 = vlaneseq
        %v3217 = vshrl.u32 %v3216, 7
        %v3218 = vsub.s32 0, %v3217
        %v3219 = vrot.slane %v2594, %v3218
        %v3220 = vlaneseq
        %v3221 = vshrl.u32 %v3220, 7
        %v3222 = vsub.s32 1, %v3221
        %v3223 = vrot.slane %v2594, %v3222
        %v3224 = vlaneseq
        %v3225 = vshrl.u32 %v3224, 7
        %v3226 = vsub.s32 2, %v3225
        %v3227 = vrot.slane %v2594, %v3226
        %v3228 = vlaneseq
        %v3229 = vshrl.u32 %v3228, 7
        %v3230 = vsub.s32 3, %v3229
        %v3231 = vrot.slane %v2594, %v3230
        %v3232 = vlaneseq
        %v3233 = vshrl.u32 %v3232, 7
        %v3234 = vsub.s32 4, %v3233
        %v3235 = vrot.slane %v2594, %v3234
        %v3236 = vlaneseq
        %v3237 = vshrl.u32 %v3236, 7
        %v3238 = vsub.s32 5, %v3237
        %v3239 = vrot.slane %v2594, %v3238
        %v3240 = vlaneseq
        %v3241 = vshrl.u32 %v3240, 7
        %v3242 = vsub.s32 6, %v3241
        %v3243 = vrot.slane %v2594, %v3242
        %v3244 = vlaneseq
        %v3245 = vshrl.u32 %v3244, 7
        %v3246 = vsub.s32 7, %v3245
        %v3247 = vrot.slane %v2594, %v3246
        %v3248 = vlaneseq
        %v3249 = vshrl.u32 %v3248, 7
        %v3250 = vsub.s32 0, %v3249
        %v3251 = vrot.slane %v2595, %v3250
        %v3252 = vlaneseq
        %v3253 = vshrl.u32 %v3252, 7
        %v3254 = vsub.s32 1, %v3253
        %v3255 = vrot.slane %v2595, %v3254
        %v3256 = vlaneseq
        %v3257 = vshrl.u32 %v3256, 7
        %v3258 = vsub.s32 2, %v3257
        %v3259 = vrot.slane %v2595, %v3258
        %v3260 = vlaneseq
        %v3261 = vshrl.u32 %v3260, 7
        %v3262 = vsub.s32 3, %v3261
        %v3263 = vrot.slane %v2595, %v3262
        %v3264 = vlaneseq
        %v3265 = vshrl.u32 %v3264, 7
        %v3266 = vsub.s32 4, %v3265
        %v3267 = vrot.slane %v2595, %v3266
        %v3268 = vlaneseq
        %v3269 = vshrl.u32 %v3268, 7
        %v3270 = vsub.s32 5, %v3269
        %v3271 = vrot.slane %v2595, %v3270
        %v3272 = vlaneseq
        %v3273 = vshrl.u32 %v3272, 7
        %v3274 = vsub.s32 6, %v3273
        %v3275 = vrot.slane %v2595, %v3274
        %v3276 = vlaneseq
        %v3277 = vshrl.u32 %v3276, 7
        %v3278 = vsub.s32 7, %v3277
        %v3279 = vrot.slane %v2595, %v3278
        %v3280 = vlaneseq
        %v3281 = vshrl.u32 %v3280, 7
        %v3282 = vsub.s32 0, %v3281
        %v3283 = vrot.slane %v2596, %v3282
        %v3284 = vlaneseq
        %v3285 = vshrl.u32 %v3284, 7
        %v3286 = vsub.s32 1, %v3285
        %v3287 = vrot.slane %v2596, %v3286
        %v3288 = vlaneseq
        %v3289 = vshrl.u32 %v3288, 7
        %v3290 = vsub.s32 2, %v3289
        %v3291 = vrot.slane %v2596, %v3290
        %v3292 = vlaneseq
        %v3293 = vshrl.u32 %v3292, 7
        %v3294 = vsub.s32 3, %v3293
        %v3295 = vrot.slane %v2596, %v3294
        %v3296 = vlaneseq
        %v3297 = vshrl.u32 %v3296, 7
        %v3298 = vsub.s32 4, %v3297
        %v3299 = vrot.slane %v2596, %v3298
        %v3300 = vlaneseq
        %v3301 = vshrl.u32 %v3300, 7
        %v3302 = vsub.s32 5, %v3301
        %v3303 = vrot.slane %v2596, %v3302
        %v3304 = vlaneseq
        %v3305 = vshrl.u32 %v3304, 7
        %v3306 = vsub.s32 6, %v3305
        %v3307 = vrot.slane %v2596, %v3306
        %v3308 = vlaneseq
        %v3309 = vshrl.u32 %v3308, 7
        %v3310 = vsub.s32 7, %v3309
        %v3311 = vrot.slane %v2596, %v3310
        %v3312 = vlaneseq
        %v3313 = vshrl.u32 %v3312, 7
        %v3314 = vsub.s32 0, %v3313
        %v3315 = vrot.slane %v2597, %v3314
        %v3316 = vlaneseq
        %v3317 = vshrl.u32 %v3316, 7
        %v3318 = vsub.s32 1, %v3317
        %v3319 = vrot.slane %v2597, %v3318
        %v3320 = vlaneseq
        %v3321 = vshrl.u32 %v3320, 7
        %v3322 = vsub.s32 2, %v3321
        %v3323 = vrot.slane %v2597, %v3322
        %v3324 = vlaneseq
        %v3325 = vshrl.u32 %v3324, 7
        %v3326 = vsub.s32 3, %v3325
        %v3327 = vrot.slane %v2597, %v3326
        %v3328 = vlaneseq
        %v3329 = vshrl.u32 %v3328, 7
        %v3330 = vsub.s32 4, %v3329
        %v3331 = vrot.slane %v2597, %v3330
        %v3332 = vlaneseq
        %v3333 = vshrl.u32 %v3332, 7
        %v3334 = vsub.s32 5, %v3333
        %v3335 = vrot.slane %v2597, %v3334
        %v3336 = vlaneseq
        %v3337 = vshrl.u32 %v3336, 7
        %v3338 = vsub.s32 6, %v3337
        %v3339 = vrot.slane %v2597, %v3338
        %v3340 = vlaneseq
        %v3341 = vshrl.u32 %v3340, 7
        %v3342 = vsub.s32 7, %v3341
        %v3343 = vrot.slane %v2597, %v3342
        %v3344 = vlaneseq
        %v3345 = vshrl.u32 %v3344, 7
        %v3346 = vsub.s32 0, %v3345
        %v3347 = vrot.slane %v2598, %v3346
        %v3348 = vlaneseq
        %v3349 = vshrl.u32 %v3348, 7
        %v3350 = vsub.s32 1, %v3349
        %v3351 = vrot.slane %v2598, %v3350
        %v3352 = vlaneseq
        %v3353 = vshrl.u32 %v3352, 7
        %v3354 = vsub.s32 2, %v3353
        %v3355 = vrot.slane %v2598, %v3354
        %v3356 = vlaneseq
        %v3357 = vshrl.u32 %v3356, 7
        %v3358 = vsub.s32 3, %v3357
        %v3359 = vrot.slane %v2598, %v3358
        %v3360 = vlaneseq
        %v3361 = vshrl.u32 %v3360, 7
        %v3362 = vsub.s32 4, %v3361
        %v3363 = vrot.slane %v2598, %v3362
        %v3364 = vlaneseq
        %v3365 = vshrl.u32 %v3364, 7
        %v3366 = vsub.s32 5, %v3365
        %v3367 = vrot.slane %v2598, %v3366
        %v3368 = vlaneseq
        %v3369 = vshrl.u32 %v3368, 7
        %v3370 = vsub.s32 6, %v3369
        %v3371 = vrot.slane %v2598, %v3370
        %v3372 = vlaneseq
        %v3373 = vshrl.u32 %v3372, 7
        %v3374 = vsub.s32 7, %v3373
        %v3375 = vrot.slane %v2598, %v3374
        %v3376 = vlaneseq
        %v3377 = vshrl.u32 %v3376, 7
        %v3378 = vsub.s32 0, %v3377
        %v3379 = vrot.slane %v2599, %v3378
        %v3380 = vlaneseq
        %v3381 = vshrl.u32 %v3380, 7
        %v3382 = vsub.s32 1, %v3381
        %v3383 = vrot.slane %v2599, %v3382
        %v3384 = vlaneseq
        %v3385 = vshrl.u32 %v3384, 7
        %v3386 = vsub.s32 2, %v3385
        %v3387 = vrot.slane %v2599, %v3386
        %v3388 = vlaneseq
        %v3389 = vshrl.u32 %v3388, 7
        %v3390 = vsub.s32 3, %v3389
        %v3391 = vrot.slane %v2599, %v3390
        %v3392 = vlaneseq
        %v3393 = vshrl.u32 %v3392, 7
        %v3394 = vsub.s32 4, %v3393
        %v3395 = vrot.slane %v2599, %v3394
        %v3396 = vlaneseq
        %v3397 = vshrl.u32 %v3396, 7
        %v3398 = vsub.s32 5, %v3397
        %v3399 = vrot.slane %v2599, %v3398
        %v3400 = vlaneseq
        %v3401 = vshrl.u32 %v3400, 7
        %v3402 = vsub.s32 6, %v3401
        %v3403 = vrot.slane %v2599, %v3402
        %v3404 = vlaneseq
        %v3405 = vshrl.u32 %v3404, 7
        %v3406 = vsub.s32 7, %v3405
        %v3407 = vrot.slane %v2599, %v3406
        %v3408 = vlaneseq
        %v3409 = vshrl.u32 %v3408, 7
        %v3410 = vsub.s32 0, %v3409
        %v3411 = vrot.slane %v2600, %v3410
        %v3412 = vlaneseq
        %v3413 = vshrl.u32 %v3412, 7
        %v3414 = vsub.s32 1, %v3413
        %v3415 = vrot.slane %v2600, %v3414
        %v3416 = vlaneseq
        %v3417 = vshrl.u32 %v3416, 7
        %v3418 = vsub.s32 2, %v3417
        %v3419 = vrot.slane %v2600, %v3418
        %v3420 = vlaneseq
        %v3421 = vshrl.u32 %v3420, 7
        %v3422 = vsub.s32 3, %v3421
        %v3423 = vrot.slane %v2600, %v3422
        %v3424 = vlaneseq
        %v3425 = vshrl.u32 %v3424, 7
        %v3426 = vsub.s32 4, %v3425
        %v3427 = vrot.slane %v2600, %v3426
        %v3428 = vlaneseq
        %v3429 = vshrl.u32 %v3428, 7
        %v3430 = vsub.s32 5, %v3429
        %v3431 = vrot.slane %v2600, %v3430
        %v3432 = vlaneseq
        %v3433 = vshrl.u32 %v3432, 7
        %v3434 = vsub.s32 6, %v3433
        %v3435 = vrot.slane %v2600, %v3434
        %v3436 = vlaneseq
        %v3437 = vshrl.u32 %v3436, 7
        %v3438 = vsub.s32 7, %v3437
        %v3439 = vrot.slane %v2600, %v3438
        %v3440 = vlaneseq
        %v3441 = vshrl.u32 %v3440, 7
        %v3442 = vsub.s32 0, %v3441
        %v3443 = vrot.slane %v2601, %v3442
        %v3444 = vlaneseq
        %v3445 = vshrl.u32 %v3444, 7
        %v3446 = vsub.s32 1, %v3445
        %v3447 = vrot.slane %v2601, %v3446
        %v3448 = vlaneseq
        %v3449 = vshrl.u32 %v3448, 7
        %v3450 = vsub.s32 2, %v3449
        %v3451 = vrot.slane %v2601, %v3450
        %v3452 = vlaneseq
        %v3453 = vshrl.u32 %v3452, 7
        %v3454 = vsub.s32 3, %v3453
        %v3455 = vrot.slane %v2601, %v3454
        %v3456 = vlaneseq
        %v3457 = vshrl.u32 %v3456, 7
        %v3458 = vsub.s32 4, %v3457
        %v3459 = vrot.slane %v2601, %v3458
        %v3460 = vlaneseq
        %v3461 = vshrl.u32 %v3460, 7
        %v3462 = vsub.s32 5, %v3461
        %v3463 = vrot.slane %v2601, %v3462
        %v3464 = vlaneseq
        %v3465 = vshrl.u32 %v3464, 7
        %v3466 = vsub.s32 6, %v3465
        %v3467 = vrot.slane %v2601, %v3466
        %v3468 = vlaneseq
        %v3469 = vshrl.u32 %v3468, 7
        %v3470 = vsub.s32 7, %v3469
        %v3471 = vrot.slane %v2601, %v3470
        %v3472 = vlaneseq
        %v3473 = vshrl.u32 %v3472, 7
        %v3474 = vsub.s32 0, %v3473
        %v3475 = vrot.slane %v2602, %v3474
        %v3476 = vlaneseq
        %v3477 = vshrl.u32 %v3476, 7
        %v3478 = vsub.s32 1, %v3477
        %v3479 = vrot.slane %v2602, %v3478
        %v3480 = vlaneseq
        %v3481 = vshrl.u32 %v3480, 7
        %v3482 = vsub.s32 2, %v3481
        %v3483 = vrot.slane %v2602, %v3482
        %v3484 = vlaneseq
        %v3485 = vshrl.u32 %v3484, 7
        %v3486 = vsub.s32 3, %v3485
        %v3487 = vrot.slane %v2602, %v3486
        %v3488 = vlaneseq
        %v3489 = vshrl.u32 %v3488, 7
        %v3490 = vsub.s32 4, %v3489
        %v3491 = vrot.slane %v2602, %v3490
        %v3492 = vlaneseq
        %v3493 = vshrl.u32 %v3492, 7
        %v3494 = vsub.s32 5, %v3493
        %v3495 = vrot.slane %v2602, %v3494
        %v3496 = vlaneseq
        %v3497 = vshrl.u32 %v3496, 7
        %v3498 = vsub.s32 6, %v3497
        %v3499 = vrot.slane %v2602, %v3498
        %v3500 = vlaneseq
        %v3501 = vshrl.u32 %v3500, 7
        %v3502 = vsub.s32 7, %v3501
        %v3503 = vrot.slane %v2602, %v3502
        %v3504 = vlaneseq
        %v3505 = vshrl.u32 %v3504, 7
        %v3506 = vsub.s32 0, %v3505
        %v3507 = vrot.slane %v2603, %v3506
        %v3508 = vlaneseq
        %v3509 = vshrl.u32 %v3508, 7
        %v3510 = vsub.s32 1, %v3509
        %v3511 = vrot.slane %v2603, %v3510
        %v3512 = vlaneseq
        %v3513 = vshrl.u32 %v3512, 7
        %v3514 = vsub.s32 2, %v3513
        %v3515 = vrot.slane %v2603, %v3514
        %v3516 = vlaneseq
        %v3517 = vshrl.u32 %v3516, 7
        %v3518 = vsub.s32 3, %v3517
        %v3519 = vrot.slane %v2603, %v3518
        %v3520 = vlaneseq
        %v3521 = vshrl.u32 %v3520, 7
        %v3522 = vsub.s32 4, %v3521
        %v3523 = vrot.slane %v2603, %v3522
        %v3524 = vlaneseq
        %v3525 = vshrl.u32 %v3524, 7
        %v3526 = vsub.s32 5, %v3525
        %v3527 = vrot.slane %v2603, %v3526
        %v3528 = vlaneseq
        %v3529 = vshrl.u32 %v3528, 7
        %v3530 = vsub.s32 6, %v3529
        %v3531 = vrot.slane %v2603, %v3530
        %v3532 = vlaneseq
        %v3533 = vshrl.u32 %v3532, 7
        %v3534 = vsub.s32 7, %v3533
        %v3535 = vrot.slane %v2603, %v3534
        %v3536 = vlaneseq
        %v3537 = vshrl.u32 %v3536, 7
        %v3538 = vsub.s32 0, %v3537
        %v3539 = vrot.slane %v2604, %v3538
        %v3540 = vlaneseq
        %v3541 = vshrl.u32 %v3540, 7
        %v3542 = vsub.s32 1, %v3541
        %v3543 = vrot.slane %v2604, %v3542
        %v3544 = vlaneseq
        %v3545 = vshrl.u32 %v3544, 7
        %v3546 = vsub.s32 2, %v3545
        %v3547 = vrot.slane %v2604, %v3546
        %v3548 = vlaneseq
        %v3549 = vshrl.u32 %v3548, 7
        %v3550 = vsub.s32 3, %v3549
        %v3551 = vrot.slane %v2604, %v3550
        %v3552 = vlaneseq
        %v3553 = vshrl.u32 %v3552, 7
        %v3554 = vsub.s32 4, %v3553
        %v3555 = vrot.slane %v2604, %v3554
        %v3556 = vlaneseq
        %v3557 = vshrl.u32 %v3556, 7
        %v3558 = vsub.s32 5, %v3557
        %v3559 = vrot.slane %v2604, %v3558
        %v3560 = vlaneseq
        %v3561 = vshrl.u32 %v3560, 7
        %v3562 = vsub.s32 6, %v3561
        %v3563 = vrot.slane %v2604, %v3562
        %v3564 = vlaneseq
        %v3565 = vshrl.u32 %v3564, 7
        %v3566 = vsub.s32 7, %v3565
        %v3567 = vrot.slane %v2604, %v3566
        %v3568 = vlaneseq
        %v3569 = vshrl.u32 %v3568, 7
        %v3570 = vsub.s32 0, %v3569
        %v3571 = vrot.slane %v2605, %v3570
        %v3572 = vlaneseq
        %v3573 = vshrl.u32 %v3572, 7
        %v3574 = vsub.s32 1, %v3573
        %v3575 = vrot.slane %v2605, %v3574
        %v3576 = vlaneseq
        %v3577 = vshrl.u32 %v3576, 7
        %v3578 = vsub.s32 2, %v3577
        %v3579 = vrot.slane %v2605, %v3578
        %v3580 = vlaneseq
        %v3581 = vshrl.u32 %v3580, 7
        %v3582 = vsub.s32 3, %v3581
        %v3583 = vrot.slane %v2605, %v3582
        %v3584 = vlaneseq
        %v3585 = vshrl.u32 %v3584, 7
        %v3586 = vsub.s32 4, %v3585
        %v3587 = vrot.slane %v2605, %v3586
        %v3588 = vlaneseq
        %v3589 = vshrl.u32 %v3588, 7
        %v3590 = vsub.s32 5, %v3589
        %v3591 = vrot.slane %v2605, %v3590
        %v3592 = vlaneseq
        %v3593 = vshrl.u32 %v3592, 7
        %v3594 = vsub.s32 6, %v3593
        %v3595 = vrot.slane %v2605, %v3594
        %v3596 = vlaneseq
        %v3597 = vshrl.u32 %v3596, 7
        %v3598 = vsub.s32 7, %v3597
        %v3599 = vrot.slane %v2605, %v3598
        %v3600 = vlaneseq
        %v3601 = vshrl.u32 %v3600, 7
        %v3602 = vsub.s32 0, %v3601
        %v3603 = vrot.slane %v2606, %v3602
        %v3604 = vlaneseq
        %v3605 = vshrl.u32 %v3604, 7
        %v3606 = vsub.s32 1, %v3605
        %v3607 = vrot.slane %v2606, %v3606
        %v3608 = vlaneseq
        %v3609 = vshrl.u32 %v3608, 7
        %v3610 = vsub.s32 2, %v3609
        %v3611 = vrot.slane %v2606, %v3610
        %v3612 = vlaneseq
        %v3613 = vshrl.u32 %v3612, 7
        %v3614 = vsub.s32 3, %v3613
        %v3615 = vrot.slane %v2606, %v3614
        %v3616 = vlaneseq
        %v3617 = vshrl.u32 %v3616, 7
        %v3618 = vsub.s32 4, %v3617
        %v3619 = vrot.slane %v2606, %v3618
        %v3620 = vlaneseq
        %v3621 = vshrl.u32 %v3620, 7
        %v3622 = vsub.s32 5, %v3621
        %v3623 = vrot.slane %v2606, %v3622
        %v3624 = vlaneseq
        %v3625 = vshrl.u32 %v3624, 7
        %v3626 = vsub.s32 6, %v3625
        %v3627 = vrot.slane %v2606, %v3626
        %v3628 = vlaneseq
        %v3629 = vshrl.u32 %v3628, 7
        %v3630 = vsub.s32 7, %v3629
        %v3631 = vrot.slane %v2606, %v3630
        %v3632 = vlaneseq
        %v3633 = vshrl.u32 %v3632, 7
        %v3634 = vsub.s32 0, %v3633
        %v3635 = vrot.slane %v2607, %v3634
        %v3636 = vlaneseq
        %v3637 = vshrl.u32 %v3636, 7
        %v3638 = vsub.s32 1, %v3637
        %v3639 = vrot.slane %v2607, %v3638
        %v3640 = vlaneseq
        %v3641 = vshrl.u32 %v3640, 7
        %v3642 = vsub.s32 2, %v3641
        %v3643 = vrot.slane %v2607, %v3642
        %v3644 = vlaneseq
        %v3645 = vshrl.u32 %v3644, 7
        %v3646 = vsub.s32 3, %v3645
        %v3647 = vrot.slane %v2607, %v3646
        %v3648 = vlaneseq
        %v3649 = vshrl.u32 %v3648, 7
        %v3650 = vsub.s32 4, %v3649
        %v3651 = vrot.slane %v2607, %v3650
        %v3652 = vlaneseq
        %v3653 = vshrl.u32 %v3652, 7
        %v3654 = vsub.s32 5, %v3653
        %v3655 = vrot.slane %v2607, %v3654
        %v3656 = vlaneseq
        %v3657 = vshrl.u32 %v3656, 7
        %v3658 = vsub.s32 6, %v3657
        %v3659 = vrot.slane %v2607, %v3658
        %v3660 = vlaneseq
        %v3661 = vshrl.u32 %v3660, 7
        %v3662 = vsub.s32 7, %v3661
        %v3663 = vrot.slane %v2607, %v3662
        %v3664 = vcombine.low %v2643, %v2647
        %v3665 = vcombine.low %v2651, %v2655
        %v3666 = vcombine.low %v2659, %v2663
        %v3667 = vcombine.low %v2667, %v2671
        %v3669 = vunpack.c.l.s4 1966171168
        %v3670 = vunpack.c.0.s8 %v3669
        %v3671 = vlaneseq
        %v3672 = vshrl.u32 %v3671, 7
        %v3673 = vsub.s32 %v3670, %v3672
        %v3674 = vrot.slane %v3664, %v3673
        %v3676 = vunpack.c.l.s4 1966171168
        %v3677 = vunpack.c.0.s8 %v3676
        %v3678 = vlaneseq
        %v3679 = vshrl.u32 %v3678, 7
        %v3680 = vsub.s32 %v3677, %v3679
        %v3681 = vrot.slane %v3665, %v3680
        %v3683 = vunpack.c.l.s4 1966171168
        %v3684 = vunpack.c.0.s8 %v3683
        %v3685 = vlaneseq
        %v3686 = vshrl.u32 %v3685, 7
        %v3687 = vsub.s32 %v3684, %v3686
        %v3688 = vrot.slane %v3666, %v3687
        %v3690 = vunpack.c.l.s4 1966171168
        %v3691 = vunpack.c.0.s8 %v3690
        %v3692 = vlaneseq
        %v3693 = vshrl.u32 %v3692, 7
        %v3694 = vsub.s32 %v3691, %v3693
        %v3695 = vrot.slane %v3667, %v3694
        %v3696 = vcombine.low %v3674, %v3681
        %v3697 = vcombine.low %v3688, %v3695
        %v3699 = vunpack.c.l.s4 1966171168
        %v3700 = vunpack.c.0.s8 %v3699
        %v3701 = vlaneseq
        %v3702 = vshrl.u32 %v3701, 7
        %v3703 = vsub.s32 %v3700, %v3702
        %v3704 = vrot.slane %v3696, %v3703
        %v3706 = vunpack.c.l.s4 1966171168
        %v3707 = vunpack.c.0.s8 %v3706
        %v3708 = vlaneseq
        %v3709 = vshrl.u32 %v3708, 7
        %v3710 = vsub.s32 %v3707, %v3709
        %v3711 = vrot.slane %v3697, %v3710
        %v3712 = vcombine.low %v3704, %v3711
        %v3713 = vcombine.low %v2675, %v2679
        %v3714 = vcombine.low %v2683, %v2687
        %v3715 = vcombine.low %v2691, %v2695
        %v3716 = vcombine.low %v2699, %v2703
        %v3718 = vunpack.c.l.s4 1966171168
        %v3719 = vunpack.c.0.s8 %v3718
        %v3720 = vlaneseq
        %v3721 = vshrl.u32 %v3720, 7
        %v3722 = vsub.s32 %v3719, %v3721
        %v3723 = vrot.slane %v3713, %v3722
        %v3725 = vunpack.c.l.s4 1966171168
        %v3726 = vunpack.c.0.s8 %v3725
        %v3727 = vlaneseq
        %v3728 = vshrl.u32 %v3727, 7
        %v3729 = vsub.s32 %v3726, %v3728
        %v3730 = vrot.slane %v3714, %v3729
        %v3732 = vunpack.c.l.s4 1966171168
        %v3733 = vunpack.c.0.s8 %v3732
        %v3734 = vlaneseq
        %v3735 = vshrl.u32 %v3734, 7
        %v3736 = vsub.s32 %v3733, %v3735
        %v3737 = vrot.slane %v3715, %v3736
        %v3739 = vunpack.c.l.s4 1966171168
        %v3740 = vunpack.c.0.s8 %v3739
        %v3741 = vlaneseq
        %v3742 = vshrl.u32 %v3741, 7
        %v3743 = vsub.s32 %v3740, %v3742
        %v3744 = vrot.slane %v3716, %v3743
        %v3745 = vcombine.low %v3723, %v3730
        %v3746 = vcombine.low %v3737, %v3744
        %v3748 = vunpack.c.l.s4 1966171168
        %v3749 = vunpack.c.0.s8 %v3748
        %v3750 = vlaneseq
        %v3751 = vshrl.u32 %v3750, 7
        %v3752 = vsub.s32 %v3749, %v3751
        %v3753 = vrot.slane %v3745, %v3752
        %v3755 = vunpack.c.l.s4 1966171168
        %v3756 = vunpack.c.0.s8 %v3755
        %v3757 = vlaneseq
        %v3758 = vshrl.u32 %v3757, 7
        %v3759 = vsub.s32 %v3756, %v3758
        %v3760 = vrot.slane %v3746, %v3759
        %v3761 = vcombine.low %v3753, %v3760
        %v3762 = vcombine.low %v2707, %v2711
        %v3763 = vcombine.low %v2715, %v2719
        %v3764 = vcombine.low %v2723, %v2727
        %v3765 = vcombine.low %v2731, %v2735
        %v3767 = vunpack.c.l.s4 1966171168
        %v3768 = vunpack.c.0.s8 %v3767
        %v3769 = vlaneseq
        %v3770 = vshrl.u32 %v3769, 7
        %v3771 = vsub.s32 %v3768, %v3770
        %v3772 = vrot.slane %v3762, %v3771
        %v3774 = vunpack.c.l.s4 1966171168
        %v3775 = vunpack.c.0.s8 %v3774
        %v3776 = vlaneseq
        %v3777 = vshrl.u32 %v3776, 7
        %v3778 = vsub.s32 %v3775, %v3777
        %v3779 = vrot.slane %v3763, %v3778
        %v3781 = vunpack.c.l.s4 1966171168
        %v3782 = vunpack.c.0.s8 %v3781
        %v3783 = vlaneseq
        %v3784 = vshrl.u32 %v3783, 7
        %v3785 = vsub.s32 %v3782, %v3784
        %v3786 = vrot.slane %v3764, %v3785
        %v3788 = vunpack.c.l.s4 1966171168
        %v3789 = vunpack.c.0.s8 %v3788
        %v3790 = vlaneseq
        %v3791 = vshrl.u32 %v3790, 7
        %v3792 = vsub.s32 %v3789, %v3791
        %v3793 = vrot.slane %v3765, %v3792
        %v3794 = vcombine.low %v3772, %v3779
        %v3795 = vcombine.low %v3786, %v3793
        %v3797 = vunpack.c.l.s4 1966171168
        %v3798 = vunpack.c.0.s8 %v3797
        %v3799 = vlaneseq
        %v3800 = vshrl.u32 %v3799, 7
        %v3801 = vsub.s32 %v3798, %v3800
        %v3802 = vrot.slane %v3794, %v3801
        %v3804 = vunpack.c.l.s4 1966171168
        %v3805 = vunpack.c.0.s8 %v3804
        %v3806 = vlaneseq
        %v3807 = vshrl.u32 %v3806, 7
        %v3808 = vsub.s32 %v3805, %v3807
        %v3809 = vrot.slane %v3795, %v3808
        %v3810 = vcombine.low %v3802, %v3809
        %v3811 = vcombine.low %v2739, %v2743
        %v3812 = vcombine.low %v2747, %v2751
        %v3813 = vcombine.low %v2755, %v2759
        %v3814 = vcombine.low %v2763, %v2767
        %v3816 = vunpack.c.l.s4 1966171168
        %v3817 = vunpack.c.0.s8 %v3816
        %v3818 = vlaneseq
        %v3819 = vshrl.u32 %v3818, 7
        %v3820 = vsub.s32 %v3817, %v3819
        %v3821 = vrot.slane %v3811, %v3820
        %v3823 = vunpack.c.l.s4 1966171168
        %v3824 = vunpack.c.0.s8 %v3823
        %v3825 = vlaneseq
        %v3826 = vshrl.u32 %v3825, 7
        %v3827 = vsub.s32 %v3824, %v3826
        %v3828 = vrot.slane %v3812, %v3827
        %v3830 = vunpack.c.l.s4 1966171168
        %v3831 = vunpack.c.0.s8 %v3830
        %v3832 = vlaneseq
        %v3833 = vshrl.u32 %v3832, 7
        %v3834 = vsub.s32 %v3831, %v3833
        %v3835 = vrot.slane %v3813, %v3834
        %v3837 = vunpack.c.l.s4 1966171168
        %v3838 = vunpack.c.0.s8 %v3837
        %v3839 = vlaneseq
        %v3840 = vshrl.u32 %v3839, 7
        %v3841 = vsub.s32 %v3838, %v3840
        %v3842 = vrot.slane %v3814, %v3841
        %v3843 = vcombine.low %v3821, %v3828
        %v3844 = vcombine.low %v3835, %v3842
        %v3846 = vunpack.c.l.s4 1966171168
        %v3847 = vunpack.c.0.s8 %v3846
        %v3848 = vlaneseq
        %v3849 = vshrl.u32 %v3848, 7
        %v3850 = vsub.s32 %v3847, %v3849
        %v3851 = vrot.slane %v3843, %v3850
        %v3853 = vunpack.c.l.s4 1966171168
        %v3854 = vunpack.c.0.s8 %v3853
        %v3855 = vlaneseq
        %v3856 = vshrl.u32 %v3855, 7
        %v3857 = vsub.s32 %v3854, %v3856
        %v3858 = vrot.slane %v3844, %v3857
        %v3859 = vcombine.low %v3851, %v3858
        %v3860 = vcombine.low %v2771, %v2775
        %v3861 = vcombine.low %v2779, %v2783
        %v3862 = vcombine.low %v2787, %v2791
        %v3863 = vcombine.low %v2795, %v2799
        %v3865 = vunpack.c.l.s4 1966171168
        %v3866 = vunpack.c.0.s8 %v3865
        %v3867 = vlaneseq
        %v3868 = vshrl.u32 %v3867, 7
        %v3869 = vsub.s32 %v3866, %v3868
        %v3870 = vrot.slane %v3860, %v3869
        %v3872 = vunpack.c.l.s4 1966171168
        %v3873 = vunpack.c.0.s8 %v3872
        %v3874 = vlaneseq
        %v3875 = vshrl.u32 %v3874, 7
        %v3876 = vsub.s32 %v3873, %v3875
        %v3877 = vrot.slane %v3861, %v3876
        %v3879 = vunpack.c.l.s4 1966171168
        %v3880 = vunpack.c.0.s8 %v3879
        %v3881 = vlaneseq
        %v3882 = vshrl.u32 %v3881, 7
        %v3883 = vsub.s32 %v3880, %v3882
        %v3884 = vrot.slane %v3862, %v3883
        %v3886 = vunpack.c.l.s4 1966171168
        %v3887 = vunpack.c.0.s8 %v3886
        %v3888 = vlaneseq
        %v3889 = vshrl.u32 %v3888, 7
        %v3890 = vsub.s32 %v3887, %v3889
        %v3891 = vrot.slane %v3863, %v3890
        %v3892 = vcombine.low %v3870, %v3877
        %v3893 = vcombine.low %v3884, %v3891
        %v3895 = vunpack.c.l.s4 1966171168
        %v3896 = vunpack.c.0.s8 %v3895
        %v3897 = vlaneseq
        %v3898 = vshrl.u32 %v3897, 7
        %v3899 = vsub.s32 %v3896, %v3898
        %v3900 = vrot.slane %v3892, %v3899
        %v3902 = vunpack.c.l.s4 1966171168
        %v3903 = vunpack.c.0.s8 %v3902
        %v3904 = vlaneseq
        %v3905 = vshrl.u32 %v3904, 7
        %v3906 = vsub.s32 %v3903, %v3905
        %v3907 = vrot.slane %v3893, %v3906
        %v3908 = vcombine.low %v3900, %v3907
        %v3909 = vcombine.low %v2803, %v2807
        %v3910 = vcombine.low %v2811, %v2815
        %v3911 = vcombine.low %v2819, %v2823
        %v3912 = vcombine.low %v2827, %v2831
        %v3914 = vunpack.c.l.s4 1966171168
        %v3915 = vunpack.c.0.s8 %v3914
        %v3916 = vlaneseq
        %v3917 = vshrl.u32 %v3916, 7
        %v3918 = vsub.s32 %v3915, %v3917
        %v3919 = vrot.slane %v3909, %v3918
        %v3921 = vunpack.c.l.s4 1966171168
        %v3922 = vunpack.c.0.s8 %v3921
        %v3923 = vlaneseq
        %v3924 = vshrl.u32 %v3923, 7
        %v3925 = vsub.s32 %v3922, %v3924
        %v3926 = vrot.slane %v3910, %v3925
        %v3928 = vunpack.c.l.s4 1966171168
        %v3929 = vunpack.c.0.s8 %v3928
        %v3930 = vlaneseq
        %v3931 = vshrl.u32 %v3930, 7
        %v3932 = vsub.s32 %v3929, %v3931
        %v3933 = vrot.slane %v3911, %v3932
        %v3935 = vunpack.c.l.s4 1966171168
        %v3936 = vunpack.c.0.s8 %v3935
        %v3937 = vlaneseq
        %v3938 = vshrl.u32 %v3937, 7
        %v3939 = vsub.s32 %v3936, %v3938
        %v3940 = vrot.slane %v3912, %v3939
        %v3941 = vcombine.low %v3919, %v3926
        %v3942 = vcombine.low %v3933, %v3940
        %v3944 = vunpack.c.l.s4 1966171168
        %v3945 = vunpack.c.0.s8 %v3944
        %v3946 = vlaneseq
        %v3947 = vshrl.u32 %v3946, 7
        %v3948 = vsub.s32 %v3945, %v3947
        %v3949 = vrot.slane %v3941, %v3948
        %v3951 = vunpack.c.l.s4 1966171168
        %v3952 = vunpack.c.0.s8 %v3951
        %v3953 = vlaneseq
        %v3954 = vshrl.u32 %v3953, 7
        %v3955 = vsub.s32 %v3952, %v3954
        %v3956 = vrot.slane %v3942, %v3955
        %v3957 = vcombine.low %v3949, %v3956
        %v3958 = vcombine.low %v2835, %v2839
        %v3959 = vcombine.low %v2843, %v2847
        %v3960 = vcombine.low %v2851, %v2855
        %v3961 = vcombine.low %v2859, %v2863
        %v3963 = vunpack.c.l.s4 1966171168
        %v3964 = vunpack.c.0.s8 %v3963
        %v3965 = vlaneseq
        %v3966 = vshrl.u32 %v3965, 7
        %v3967 = vsub.s32 %v3964, %v3966
        %v3968 = vrot.slane %v3958, %v3967
        %v3970 = vunpack.c.l.s4 1966171168
        %v3971 = vunpack.c.0.s8 %v3970
        %v3972 = vlaneseq
        %v3973 = vshrl.u32 %v3972, 7
        %v3974 = vsub.s32 %v3971, %v3973
        %v3975 = vrot.slane %v3959, %v3974
        %v3977 = vunpack.c.l.s4 1966171168
        %v3978 = vunpack.c.0.s8 %v3977
        %v3979 = vlaneseq
        %v3980 = vshrl.u32 %v3979, 7
        %v3981 = vsub.s32 %v3978, %v3980
        %v3982 = vrot.slane %v3960, %v3981
        %v3984 = vunpack.c.l.s4 1966171168
        %v3985 = vunpack.c.0.s8 %v3984
        %v3986 = vlaneseq
        %v3987 = vshrl.u32 %v3986, 7
        %v3988 = vsub.s32 %v3985, %v3987
        %v3989 = vrot.slane %v3961, %v3988
        %v3990 = vcombine.low %v3968, %v3975
        %v3991 = vcombine.low %v3982, %v3989
        %v3993 = vunpack.c.l.s4 1966171168
        %v3994 = vunpack.c.0.s8 %v3993
        %v3995 = vlaneseq
        %v3996 = vshrl.u32 %v3995, 7
        %v3997 = vsub.s32 %v3994, %v3996
        %v3998 = vrot.slane %v3990, %v3997
        %v4000 = vunpack.c.l.s4 1966171168
        %v4001 = vunpack.c.0.s8 %v4000
        %v4002 = vlaneseq
        %v4003 = vshrl.u32 %v4002, 7
        %v4004 = vsub.s32 %v4001, %v4003
        %v4005 = vrot.slane %v3991, %v4004
        %v4006 = vcombine.low %v3998, %v4005
        %v4007 = vcombine.low %v2867, %v2871
        %v4008 = vcombine.low %v2875, %v2879
        %v4009 = vcombine.low %v2883, %v2887
        %v4010 = vcombine.low %v2891, %v2895
        %v4012 = vunpack.c.l.s4 1966171168
        %v4013 = vunpack.c.0.s8 %v4012
        %v4014 = vlaneseq
        %v4015 = vshrl.u32 %v4014, 7
        %v4016 = vsub.s32 %v4013, %v4015
        %v4017 = vrot.slane %v4007, %v4016
        %v4019 = vunpack.c.l.s4 1966171168
        %v4020 = vunpack.c.0.s8 %v4019
        %v4021 = vlaneseq
        %v4022 = vshrl.u32 %v4021, 7
        %v4023 = vsub.s32 %v4020, %v4022
        %v4024 = vrot.slane %v4008, %v4023
        %v4026 = vunpack.c.l.s4 1966171168
        %v4027 = vunpack.c.0.s8 %v4026
        %v4028 = vlaneseq
        %v4029 = vshrl.u32 %v4028, 7
        %v4030 = vsub.s32 %v4027, %v4029
        %v4031 = vrot.slane %v4009, %v4030
        %v4033 = vunpack.c.l.s4 1966171168
        %v4034 = vunpack.c.0.s8 %v4033
        %v4035 = vlaneseq
        %v4036 = vshrl.u32 %v4035, 7
        %v4037 = vsub.s32 %v4034, %v4036
        %v4038 = vrot.slane %v4010, %v4037
        %v4039 = vcombine.low %v4017, %v4024
        %v4040 = vcombine.low %v4031, %v4038
        %v4042 = vunpack.c.l.s4 1966171168
        %v4043 = vunpack.c.0.s8 %v4042
        %v4044 = vlaneseq
        %v4045 = vshrl.u32 %v4044, 7
        %v4046 = vsub.s32 %v4043, %v4045
        %v4047 = vrot.slane %v4039, %v4046
        %v4049 = vunpack.c.l.s4 1966171168
        %v4050 = vunpack.c.0.s8 %v4049
        %v4051 = vlaneseq
        %v4052 = vshrl.u32 %v4051, 7
        %v4053 = vsub.s32 %v4050, %v4052
        %v4054 = vrot.slane %v4040, %v4053
        %v4055 = vcombine.low %v4047, %v4054
        %v4056 = vcombine.low %v2899, %v2903
        %v4057 = vcombine.low %v2907, %v2911
        %v4058 = vcombine.low %v2915, %v2919
        %v4059 = vcombine.low %v2923, %v2927
        %v4061 = vunpack.c.l.s4 1966171168
        %v4062 = vunpack.c.0.s8 %v4061
        %v4063 = vlaneseq
        %v4064 = vshrl.u32 %v4063, 7
        %v4065 = vsub.s32 %v4062, %v4064
        %v4066 = vrot.slane %v4056, %v4065
        %v4068 = vunpack.c.l.s4 1966171168
        %v4069 = vunpack.c.0.s8 %v4068
        %v4070 = vlaneseq
        %v4071 = vshrl.u32 %v4070, 7
        %v4072 = vsub.s32 %v4069, %v4071
        %v4073 = vrot.slane %v4057, %v4072
        %v4075 = vunpack.c.l.s4 1966171168
        %v4076 = vunpack.c.0.s8 %v4075
        %v4077 = vlaneseq
        %v4078 = vshrl.u32 %v4077, 7
        %v4079 = vsub.s32 %v4076, %v4078
        %v4080 = vrot.slane %v4058, %v4079
        %v4082 = vunpack.c.l.s4 1966171168
        %v4083 = vunpack.c.0.s8 %v4082
        %v4084 = vlaneseq
        %v4085 = vshrl.u32 %v4084, 7
        %v4086 = vsub.s32 %v4083, %v4085
        %v4087 = vrot.slane %v4059, %v4086
        %v4088 = vcombine.low %v4066, %v4073
        %v4089 = vcombine.low %v4080, %v4087
        %v4091 = vunpack.c.l.s4 1966171168
        %v4092 = vunpack.c.0.s8 %v4091
        %v4093 = vlaneseq
        %v4094 = vshrl.u32 %v4093, 7
        %v4095 = vsub.s32 %v4092, %v4094
        %v4096 = vrot.slane %v4088, %v4095
        %v4098 = vunpack.c.l.s4 1966171168
        %v4099 = vunpack.c.0.s8 %v4098
        %v4100 = vlaneseq
        %v4101 = vshrl.u32 %v4100, 7
        %v4102 = vsub.s32 %v4099, %v4101
        %v4103 = vrot.slane %v4089, %v4102
        %v4104 = vcombine.low %v4096, %v4103
        %v4105 = vcombine.low %v2931, %v2935
        %v4106 = vcombine.low %v2939, %v2943
        %v4107 = vcombine.low %v2947, %v2951
        %v4108 = vcombine.low %v2955, %v2959
        %v4110 = vunpack.c.l.s4 1966171168
        %v4111 = vunpack.c.0.s8 %v4110
        %v4112 = vlaneseq
        %v4113 = vshrl.u32 %v4112, 7
        %v4114 = vsub.s32 %v4111, %v4113
        %v4115 = vrot.slane %v4105, %v4114
        %v4117 = vunpack.c.l.s4 1966171168
        %v4118 = vunpack.c.0.s8 %v4117
        %v4119 = vlaneseq
        %v4120 = vshrl.u32 %v4119, 7
        %v4121 = vsub.s32 %v4118, %v4120
        %v4122 = vrot.slane %v4106, %v4121
        %v4124 = vunpack.c.l.s4 1966171168
        %v4125 = vunpack.c.0.s8 %v4124
        %v4126 = vlaneseq
        %v4127 = vshrl.u32 %v4126, 7
        %v4128 = vsub.s32 %v4125, %v4127
        %v4129 = vrot.slane %v4107, %v4128
        %v4131 = vunpack.c.l.s4 1966171168
        %v4132 = vunpack.c.0.s8 %v4131
        %v4133 = vlaneseq
        %v4134 = vshrl.u32 %v4133, 7
        %v4135 = vsub.s32 %v4132, %v4134
        %v4136 = vrot.slane %v4108, %v4135
        %v4137 = vcombine.low %v4115, %v4122
        %v4138 = vcombine.low %v4129, %v4136
        %v4140 = vunpack.c.l.s4 1966171168
        %v4141 = vunpack.c.0.s8 %v4140
        %v4142 = vlaneseq
        %v4143 = vshrl.u32 %v4142, 7
        %v4144 = vsub.s32 %v4141, %v4143
        %v4145 = vrot.slane %v4137, %v4144
        %v4147 = vunpack.c.l.s4 1966171168
        %v4148 = vunpack.c.0.s8 %v4147
        %v4149 = vlaneseq
        %v4150 = vshrl.u32 %v4149, 7
        %v4151 = vsub.s32 %v4148, %v4150
        %v4152 = vrot.slane %v4138, %v4151
        %v4153 = vcombine.low %v4145, %v4152
        %v4154 = vcombine.low %v2963, %v2967
        %v4155 = vcombine.low %v2971, %v2975
        %v4156 = vcombine.low %v2979, %v2983
        %v4157 = vcombine.low %v2987, %v2991
        %v4159 = vunpack.c.l.s4 1966171168
        %v4160 = vunpack.c.0.s8 %v4159
        %v4161 = vlaneseq
        %v4162 = vshrl.u32 %v4161, 7
        %v4163 = vsub.s32 %v4160, %v4162
        %v4164 = vrot.slane %v4154, %v4163
        %v4166 = vunpack.c.l.s4 1966171168
        %v4167 = vunpack.c.0.s8 %v4166
        %v4168 = vlaneseq
        %v4169 = vshrl.u32 %v4168, 7
        %v4170 = vsub.s32 %v4167, %v4169
        %v4171 = vrot.slane %v4155, %v4170
        %v4173 = vunpack.c.l.s4 1966171168
        %v4174 = vunpack.c.0.s8 %v4173
        %v4175 = vlaneseq
        %v4176 = vshrl.u32 %v4175, 7
        %v4177 = vsub.s32 %v4174, %v4176
        %v4178 = vrot.slane %v4156, %v4177
        %v4180 = vunpack.c.l.s4 1966171168
        %v4181 = vunpack.c.0.s8 %v4180
        %v4182 = vlaneseq
        %v4183 = vshrl.u32 %v4182, 7
        %v4184 = vsub.s32 %v4181, %v4183
        %v4185 = vrot.slane %v4157, %v4184
        %v4186 = vcombine.low %v4164, %v4171
        %v4187 = vcombine.low %v4178, %v4185
        %v4189 = vunpack.c.l.s4 1966171168
        %v4190 = vunpack.c.0.s8 %v4189
        %v4191 = vlaneseq
        %v4192 = vshrl.u32 %v4191, 7
        %v4193 = vsub.s32 %v4190, %v4192
        %v4194 = vrot.slane %v4186, %v4193
        %v4196 = vunpack.c.l.s4 1966171168
        %v4197 = vunpack.c.0.s8 %v4196
        %v4198 = vlaneseq
        %v4199 = vshrl.u32 %v4198, 7
        %v4200 = vsub.s32 %v4197, %v4199
        %v4201 = vrot.slane %v4187, %v4200
        %v4202 = vcombine.low %v4194, %v4201
        %v4203 = vcombine.low %v2995, %v2999
        %v4204 = vcombine.low %v3003, %v3007
        %v4205 = vcombine.low %v3011, %v3015
        %v4206 = vcombine.low %v3019, %v3023
        %v4208 = vunpack.c.l.s4 1966171168
        %v4209 = vunpack.c.0.s8 %v4208
        %v4210 = vlaneseq
        %v4211 = vshrl.u32 %v4210, 7
        %v4212 = vsub.s32 %v4209, %v4211
        %v4213 = vrot.slane %v4203, %v4212
        %v4215 = vunpack.c.l.s4 1966171168
        %v4216 = vunpack.c.0.s8 %v4215
        %v4217 = vlaneseq
        %v4218 = vshrl.u32 %v4217, 7
        %v4219 = vsub.s32 %v4216, %v4218
        %v4220 = vrot.slane %v4204, %v4219
        %v4222 = vunpack.c.l.s4 1966171168
        %v4223 = vunpack.c.0.s8 %v4222
        %v4224 = vlaneseq
        %v4225 = vshrl.u32 %v4224, 7
        %v4226 = vsub.s32 %v4223, %v4225
        %v4227 = vrot.slane %v4205, %v4226
        %v4229 = vunpack.c.l.s4 1966171168
        %v4230 = vunpack.c.0.s8 %v4229
        %v4231 = vlaneseq
        %v4232 = vshrl.u32 %v4231, 7
        %v4233 = vsub.s32 %v4230, %v4232
        %v4234 = vrot.slane %v4206, %v4233
        %v4235 = vcombine.low %v4213, %v4220
        %v4236 = vcombine.low %v4227, %v4234
        %v4238 = vunpack.c.l.s4 1966171168
        %v4239 = vunpack.c.0.s8 %v4238
        %v4240 = vlaneseq
        %v4241 = vshrl.u32 %v4240, 7
        %v4242 = vsub.s32 %v4239, %v4241
        %v4243 = vrot.slane %v4235, %v4242
        %v4245 = vunpack.c.l.s4 1966171168
        %v4246 = vunpack.c.0.s8 %v4245
        %v4247 = vlaneseq
        %v4248 = vshrl.u32 %v4247, 7
        %v4249 = vsub.s32 %v4246, %v4248
        %v4250 = vrot.slane %v4236, %v4249
        %v4251 = vcombine.low %v4243, %v4250
        %v4252 = vcombine.low %v3027, %v3031
        %v4253 = vcombine.low %v3035, %v3039
        %v4254 = vcombine.low %v3043, %v3047
        %v4255 = vcombine.low %v3051, %v3055
        %v4257 = vunpack.c.l.s4 1966171168
        %v4258 = vunpack.c.0.s8 %v4257
        %v4259 = vlaneseq
        %v4260 = vshrl.u32 %v4259, 7
        %v4261 = vsub.s32 %v4258, %v4260
        %v4262 = vrot.slane %v4252, %v4261
        %v4264 = vunpack.c.l.s4 1966171168
        %v4265 = vunpack.c.0.s8 %v4264
        %v4266 = vlaneseq
        %v4267 = vshrl.u32 %v4266, 7
        %v4268 = vsub.s32 %v4265, %v4267
        %v4269 = vrot.slane %v4253, %v4268
        %v4271 = vunpack.c.l.s4 1966171168
        %v4272 = vunpack.c.0.s8 %v4271
        %v4273 = vlaneseq
        %v4274 = vshrl.u32 %v4273, 7
        %v4275 = vsub.s32 %v4272, %v4274
        %v4276 = vrot.slane %v4254, %v4275
        %v4278 = vunpack.c.l.s4 1966171168
        %v4279 = vunpack.c.0.s8 %v4278
        %v4280 = vlaneseq
        %v4281 = vshrl.u32 %v4280, 7
        %v4282 = vsub.s32 %v4279, %v4281
        %v4283 = vrot.slane %v4255, %v4282
        %v4284 = vcombine.low %v4262, %v4269
        %v4285 = vcombine.low %v4276, %v4283
        %v4287 = vunpack.c.l.s4 1966171168
        %v4288 = vunpack.c.0.s8 %v4287
        %v4289 = vlaneseq
        %v4290 = vshrl.u32 %v4289, 7
        %v4291 = vsub.s32 %v4288, %v4290
        %v4292 = vrot.slane %v4284, %v4291
        %v4294 = vunpack.c.l.s4 1966171168
        %v4295 = vunpack.c.0.s8 %v4294
        %v4296 = vlaneseq
        %v4297 = vshrl.u32 %v4296, 7
        %v4298 = vsub.s32 %v4295, %v4297
        %v4299 = vrot.slane %v4285, %v4298
        %v4300 = vcombine.low %v4292, %v4299
        %v4301 = vcombine.low %v3059, %v3063
        %v4302 = vcombine.low %v3067, %v3071
        %v4303 = vcombine.low %v3075, %v3079
        %v4304 = vcombine.low %v3083, %v3087
        %v4306 = vunpack.c.l.s4 1966171168
        %v4307 = vunpack.c.0.s8 %v4306
        %v4308 = vlaneseq
        %v4309 = vshrl.u32 %v4308, 7
        %v4310 = vsub.s32 %v4307, %v4309
        %v4311 = vrot.slane %v4301, %v4310
        %v4313 = vunpack.c.l.s4 1966171168
        %v4314 = vunpack.c.0.s8 %v4313
        %v4315 = vlaneseq
        %v4316 = vshrl.u32 %v4315, 7
        %v4317 = vsub.s32 %v4314, %v4316
        %v4318 = vrot.slane %v4302, %v4317
        %v4320 = vunpack.c.l.s4 1966171168
        %v4321 = vunpack.c.0.s8 %v4320
        %v4322 = vlaneseq
        %v4323 = vshrl.u32 %v4322, 7
        %v4324 = vsub.s32 %v4321, %v4323
        %v4325 = vrot.slane %v4303, %v4324
        %v4327 = vunpack.c.l.s4 1966171168
        %v4328 = vunpack.c.0.s8 %v4327
        %v4329 = vlaneseq
        %v4330 = vshrl.u32 %v4329, 7
        %v4331 = vsub.s32 %v4328, %v4330
        %v4332 = vrot.slane %v4304, %v4331
        %v4333 = vcombine.low %v4311, %v4318
        %v4334 = vcombine.low %v4325, %v4332
        %v4336 = vunpack.c.l.s4 1966171168
        %v4337 = vunpack.c.0.s8 %v4336
        %v4338 = vlaneseq
        %v4339 = vshrl.u32 %v4338, 7
        %v4340 = vsub.s32 %v4337, %v4339
        %v4341 = vrot.slane %v4333, %v4340
        %v4343 = vunpack.c.l.s4 1966171168
        %v4344 = vunpack.c.0.s8 %v4343
        %v4345 = vlaneseq
        %v4346 = vshrl.u32 %v4345, 7
        %v4347 = vsub.s32 %v4344, %v4346
        %v4348 = vrot.slane %v4334, %v4347
        %v4349 = vcombine.low %v4341, %v4348
        %v4350 = vcombine.low %v3091, %v3095
        %v4351 = vcombine.low %v3099, %v3103
        %v4352 = vcombine.low %v3107, %v3111
        %v4353 = vcombine.low %v3115, %v3119
        %v4355 = vunpack.c.l.s4 1966171168
        %v4356 = vunpack.c.0.s8 %v4355
        %v4357 = vlaneseq
        %v4358 = vshrl.u32 %v4357, 7
        %v4359 = vsub.s32 %v4356, %v4358
        %v4360 = vrot.slane %v4350, %v4359
        %v4362 = vunpack.c.l.s4 1966171168
        %v4363 = vunpack.c.0.s8 %v4362
        %v4364 = vlaneseq
        %v4365 = vshrl.u32 %v4364, 7
        %v4366 = vsub.s32 %v4363, %v4365
        %v4367 = vrot.slane %v4351, %v4366
        %v4369 = vunpack.c.l.s4 1966171168
        %v4370 = vunpack.c.0.s8 %v4369
        %v4371 = vlaneseq
        %v4372 = vshrl.u32 %v4371, 7
        %v4373 = vsub.s32 %v4370, %v4372
        %v4374 = vrot.slane %v4352, %v4373
        %v4376 = vunpack.c.l.s4 1966171168
        %v4377 = vunpack.c.0.s8 %v4376
        %v4378 = vlaneseq
        %v4379 = vshrl.u32 %v4378, 7
        %v4380 = vsub.s32 %v4377, %v4379
        %v4381 = vrot.slane %v4353, %v4380
        %v4382 = vcombine.low %v4360, %v4367
        %v4383 = vcombine.low %v4374, %v4381
        %v4385 = vunpack.c.l.s4 1966171168
        %v4386 = vunpack.c.0.s8 %v4385
        %v4387 = vlaneseq
        %v4388 = vshrl.u32 %v4387, 7
        %v4389 = vsub.s32 %v4386, %v4388
        %v4390 = vrot.slane %v4382, %v4389
        %v4392 = vunpack.c.l.s4 1966171168
        %v4393 = vunpack.c.0.s8 %v4392
        %v4394 = vlaneseq
        %v4395 = vshrl.u32 %v4394, 7
        %v4396 = vsub.s32 %v4393, %v4395
        %v4397 = vrot.slane %v4383, %v4396
        %v4398 = vcombine.low %v4390, %v4397
        %v4399 = vcombine.low %v3123, %v3127
        %v4400 = vcombine.low %v3131, %v3135
        %v4401 = vcombine.low %v3139, %v3143
        %v4402 = vcombine.low %v3147, %v3151
        %v4404 = vunpack.c.l.s4 1966171168
        %v4405 = vunpack.c.0.s8 %v4404
        %v4406 = vlaneseq
        %v4407 = vshrl.u32 %v4406, 7
        %v4408 = vsub.s32 %v4405, %v4407
        %v4409 = vrot.slane %v4399, %v4408
        %v4411 = vunpack.c.l.s4 1966171168
        %v4412 = vunpack.c.0.s8 %v4411
        %v4413 = vlaneseq
        %v4414 = vshrl.u32 %v4413, 7
        %v4415 = vsub.s32 %v4412, %v4414
        %v4416 = vrot.slane %v4400, %v4415
        %v4418 = vunpack.c.l.s4 1966171168
        %v4419 = vunpack.c.0.s8 %v4418
        %v4420 = vlaneseq
        %v4421 = vshrl.u32 %v4420, 7
        %v4422 = vsub.s32 %v4419, %v4421
        %v4423 = vrot.slane %v4401, %v4422
        %v4425 = vunpack.c.l.s4 1966171168
        %v4426 = vunpack.c.0.s8 %v4425
        %v4427 = vlaneseq
        %v4428 = vshrl.u32 %v4427, 7
        %v4429 = vsub.s32 %v4426, %v4428
        %v4430 = vrot.slane %v4402, %v4429
        %v4431 = vcombine.low %v4409, %v4416
        %v4432 = vcombine.low %v4423, %v4430
        %v4434 = vunpack.c.l.s4 1966171168
        %v4435 = vunpack.c.0.s8 %v4434
        %v4436 = vlaneseq
        %v4437 = vshrl.u32 %v4436, 7
        %v4438 = vsub.s32 %v4435, %v4437
        %v4439 = vrot.slane %v4431, %v4438
        %v4441 = vunpack.c.l.s4 1966171168
        %v4442 = vunpack.c.0.s8 %v4441
        %v4443 = vlaneseq
        %v4444 = vshrl.u32 %v4443, 7
        %v4445 = vsub.s32 %v4442, %v4444
        %v4446 = vrot.slane %v4432, %v4445
        %v4447 = vcombine.low %v4439, %v4446
        %v4448 = vcombine.low %v3155, %v3159
        %v4449 = vcombine.low %v3163, %v3167
        %v4450 = vcombine.low %v3171, %v3175
        %v4451 = vcombine.low %v3179, %v3183
        %v4453 = vunpack.c.l.s4 1966171168
        %v4454 = vunpack.c.0.s8 %v4453
        %v4455 = vlaneseq
        %v4456 = vshrl.u32 %v4455, 7
        %v4457 = vsub.s32 %v4454, %v4456
        %v4458 = vrot.slane %v4448, %v4457
        %v4460 = vunpack.c.l.s4 1966171168
        %v4461 = vunpack.c.0.s8 %v4460
        %v4462 = vlaneseq
        %v4463 = vshrl.u32 %v4462, 7
        %v4464 = vsub.s32 %v4461, %v4463
        %v4465 = vrot.slane %v4449, %v4464
        %v4467 = vunpack.c.l.s4 1966171168
        %v4468 = vunpack.c.0.s8 %v4467
        %v4469 = vlaneseq
        %v4470 = vshrl.u32 %v4469, 7
        %v4471 = vsub.s32 %v4468, %v4470
        %v4472 = vrot.slane %v4450, %v4471
        %v4474 = vunpack.c.l.s4 1966171168
        %v4475 = vunpack.c.0.s8 %v4474
        %v4476 = vlaneseq
        %v4477 = vshrl.u32 %v4476, 7
        %v4478 = vsub.s32 %v4475, %v4477
        %v4479 = vrot.slane %v4451, %v4478
        %v4480 = vcombine.low %v4458, %v4465
        %v4481 = vcombine.low %v4472, %v4479
        %v4483 = vunpack.c.l.s4 1966171168
        %v4484 = vunpack.c.0.s8 %v4483
        %v4485 = vlaneseq
        %v4486 = vshrl.u32 %v4485, 7
        %v4487 = vsub.s32 %v4484, %v4486
        %v4488 = vrot.slane %v4480, %v4487
        %v4490 = vunpack.c.l.s4 1966171168
        %v4491 = vunpack.c.0.s8 %v4490
        %v4492 = vlaneseq
        %v4493 = vshrl.u32 %v4492, 7
        %v4494 = vsub.s32 %v4491, %v4493
        %v4495 = vrot.slane %v4481, %v4494
        %v4496 = vcombine.low %v4488, %v4495
        %v4497 = vcombine.low %v3187, %v3191
        %v4498 = vcombine.low %v3195, %v3199
        %v4499 = vcombine.low %v3203, %v3207
        %v4500 = vcombine.low %v3211, %v3215
        %v4502 = vunpack.c.l.s4 1966171168
        %v4503 = vunpack.c.0.s8 %v4502
        %v4504 = vlaneseq
        %v4505 = vshrl.u32 %v4504, 7
        %v4506 = vsub.s32 %v4503, %v4505
        %v4507 = vrot.slane %v4497, %v4506
        %v4509 = vunpack.c.l.s4 1966171168
        %v4510 = vunpack.c.0.s8 %v4509
        %v4511 = vlaneseq
        %v4512 = vshrl.u32 %v4511, 7
        %v4513 = vsub.s32 %v4510, %v4512
        %v4514 = vrot.slane %v4498, %v4513
        %v4516 = vunpack.c.l.s4 1966171168
        %v4517 = vunpack.c.0.s8 %v4516
        %v4518 = vlaneseq
        %v4519 = vshrl.u32 %v4518, 7
        %v4520 = vsub.s32 %v4517, %v4519
        %v4521 = vrot.slane %v4499, %v4520
        %v4523 = vunpack.c.l.s4 1966171168
        %v4524 = vunpack.c.0.s8 %v4523
        %v4525 = vlaneseq
        %v4526 = vshrl.u32 %v4525, 7
        %v4527 = vsub.s32 %v4524, %v4526
        %v4528 = vrot.slane %v4500, %v4527
        %v4529 = vcombine.low %v4507, %v4514
        %v4530 = vcombine.low %v4521, %v4528
        %v4532 = vunpack.c.l.s4 1966171168
        %v4533 = vunpack.c.0.s8 %v4532
        %v4534 = vlaneseq
        %v4535 = vshrl.u32 %v4534, 7
        %v4536 = vsub.s32 %v4533, %v4535
        %v4537 = vrot.slane %v4529, %v4536
        %v4539 = vunpack.c.l.s4 1966171168
        %v4540 = vunpack.c.0.s8 %v4539
        %v4541 = vlaneseq
        %v4542 = vshrl.u32 %v4541, 7
        %v4543 = vsub.s32 %v4540, %v4542
        %v4544 = vrot.slane %v4530, %v4543
        %v4545 = vcombine.low %v4537, %v4544
        %v4546 = vcombine.low %v3219, %v3223
        %v4547 = vcombine.low %v3227, %v3231
        %v4548 = vcombine.low %v3235, %v3239
        %v4549 = vcombine.low %v3243, %v3247
        %v4551 = vunpack.c.l.s4 1966171168
        %v4552 = vunpack.c.0.s8 %v4551
        %v4553 = vlaneseq
        %v4554 = vshrl.u32 %v4553, 7
        %v4555 = vsub.s32 %v4552, %v4554
        %v4556 = vrot.slane %v4546, %v4555
        %v4558 = vunpack.c.l.s4 1966171168
        %v4559 = vunpack.c.0.s8 %v4558
        %v4560 = vlaneseq
        %v4561 = vshrl.u32 %v4560, 7
        %v4562 = vsub.s32 %v4559, %v4561
        %v4563 = vrot.slane %v4547, %v4562
        %v4565 = vunpack.c.l.s4 1966171168
        %v4566 = vunpack.c.0.s8 %v4565
        %v4567 = vlaneseq
        %v4568 = vshrl.u32 %v4567, 7
        %v4569 = vsub.s32 %v4566, %v4568
        %v4570 = vrot.slane %v4548, %v4569
        %v4572 = vunpack.c.l.s4 1966171168
        %v4573 = vunpack.c.0.s8 %v4572
        %v4574 = vlaneseq
        %v4575 = vshrl.u32 %v4574, 7
        %v4576 = vsub.s32 %v4573, %v4575
        %v4577 = vrot.slane %v4549, %v4576
        %v4578 = vcombine.low %v4556, %v4563
        %v4579 = vcombine.low %v4570, %v4577
        %v4581 = vunpack.c.l.s4 1966171168
        %v4582 = vunpack.c.0.s8 %v4581
        %v4583 = vlaneseq
        %v4584 = vshrl.u32 %v4583, 7
        %v4585 = vsub.s32 %v4582, %v4584
        %v4586 = vrot.slane %v4578, %v4585
        %v4588 = vunpack.c.l.s4 1966171168
        %v4589 = vunpack.c.0.s8 %v4588
        %v4590 = vlaneseq
        %v4591 = vshrl.u32 %v4590, 7
        %v4592 = vsub.s32 %v4589, %v4591
        %v4593 = vrot.slane %v4579, %v4592
        %v4594 = vcombine.low %v4586, %v4593
        %v4595 = vcombine.low %v3251, %v3255
        %v4596 = vcombine.low %v3259, %v3263
        %v4597 = vcombine.low %v3267, %v3271
        %v4598 = vcombine.low %v3275, %v3279
        %v4600 = vunpack.c.l.s4 1966171168
        %v4601 = vunpack.c.0.s8 %v4600
        %v4602 = vlaneseq
        %v4603 = vshrl.u32 %v4602, 7
        %v4604 = vsub.s32 %v4601, %v4603
        %v4605 = vrot.slane %v4595, %v4604
        %v4607 = vunpack.c.l.s4 1966171168
        %v4608 = vunpack.c.0.s8 %v4607
        %v4609 = vlaneseq
        %v4610 = vshrl.u32 %v4609, 7
        %v4611 = vsub.s32 %v4608, %v4610
        %v4612 = vrot.slane %v4596, %v4611
        %v4614 = vunpack.c.l.s4 1966171168
        %v4615 = vunpack.c.0.s8 %v4614
        %v4616 = vlaneseq
        %v4617 = vshrl.u32 %v4616, 7
        %v4618 = vsub.s32 %v4615, %v4617
        %v4619 = vrot.slane %v4597, %v4618
        %v4621 = vunpack.c.l.s4 1966171168
        %v4622 = vunpack.c.0.s8 %v4621
        %v4623 = vlaneseq
        %v4624 = vshrl.u32 %v4623, 7
        %v4625 = vsub.s32 %v4622, %v4624
        %v4626 = vrot.slane %v4598, %v4625
        %v4627 = vcombine.low %v4605, %v4612
        %v4628 = vcombine.low %v4619, %v4626
        %v4630 = vunpack.c.l.s4 1966171168
        %v4631 = vunpack.c.0.s8 %v4630
        %v4632 = vlaneseq
        %v4633 = vshrl.u32 %v4632, 7
        %v4634 = vsub.s32 %v4631, %v4633
        %v4635 = vrot.slane %v4627, %v4634
        %v4637 = vunpack.c.l.s4 1966171168
        %v4638 = vunpack.c.0.s8 %v4637
        %v4639 = vlaneseq
        %v4640 = vshrl.u32 %v4639, 7
        %v4641 = vsub.s32 %v4638, %v4640
        %v4642 = vrot.slane %v4628, %v4641
        %v4643 = vcombine.low %v4635, %v4642
        %v4644 = vcombine.low %v3283, %v3287
        %v4645 = vcombine.low %v3291, %v3295
        %v4646 = vcombine.low %v3299, %v3303
        %v4647 = vcombine.low %v3307, %v3311
        %v4649 = vunpack.c.l.s4 1966171168
        %v4650 = vunpack.c.0.s8 %v4649
        %v4651 = vlaneseq
        %v4652 = vshrl.u32 %v4651, 7
        %v4653 = vsub.s32 %v4650, %v4652
        %v4654 = vrot.slane %v4644, %v4653
        %v4656 = vunpack.c.l.s4 1966171168
        %v4657 = vunpack.c.0.s8 %v4656
        %v4658 = vlaneseq
        %v4659 = vshrl.u32 %v4658, 7
        %v4660 = vsub.s32 %v4657, %v4659
        %v4661 = vrot.slane %v4645, %v4660
        %v4663 = vunpack.c.l.s4 1966171168
        %v4664 = vunpack.c.0.s8 %v4663
        %v4665 = vlaneseq
        %v4666 = vshrl.u32 %v4665, 7
        %v4667 = vsub.s32 %v4664, %v4666
        %v4668 = vrot.slane %v4646, %v4667
        %v4670 = vunpack.c.l.s4 1966171168
        %v4671 = vunpack.c.0.s8 %v4670
        %v4672 = vlaneseq
        %v4673 = vshrl.u32 %v4672, 7
        %v4674 = vsub.s32 %v4671, %v4673
        %v4675 = vrot.slane %v4647, %v4674
        %v4676 = vcombine.low %v4654, %v4661
        %v4677 = vcombine.low %v4668, %v4675
        %v4679 = vunpack.c.l.s4 1966171168
        %v4680 = vunpack.c.0.s8 %v4679
        %v4681 = vlaneseq
        %v4682 = vshrl.u32 %v4681, 7
        %v4683 = vsub.s32 %v4680, %v4682
        %v4684 = vrot.slane %v4676, %v4683
        %v4686 = vunpack.c.l.s4 1966171168
        %v4687 = vunpack.c.0.s8 %v4686
        %v4688 = vlaneseq
        %v4689 = vshrl.u32 %v4688, 7
        %v4690 = vsub.s32 %v4687, %v4689
        %v4691 = vrot.slane %v4677, %v4690
        %v4692 = vcombine.low %v4684, %v4691
        %v4693 = vcombine.low %v3315, %v3319
        %v4694 = vcombine.low %v3323, %v3327
        %v4695 = vcombine.low %v3331, %v3335
        %v4696 = vcombine.low %v3339, %v3343
        %v4698 = vunpack.c.l.s4 1966171168
        %v4699 = vunpack.c.0.s8 %v4698
        %v4700 = vlaneseq
        %v4701 = vshrl.u32 %v4700, 7
        %v4702 = vsub.s32 %v4699, %v4701
        %v4703 = vrot.slane %v4693, %v4702
        %v4705 = vunpack.c.l.s4 1966171168
        %v4706 = vunpack.c.0.s8 %v4705
        %v4707 = vlaneseq
        %v4708 = vshrl.u32 %v4707, 7
        %v4709 = vsub.s32 %v4706, %v4708
        %v4710 = vrot.slane %v4694, %v4709
        %v4712 = vunpack.c.l.s4 1966171168
        %v4713 = vunpack.c.0.s8 %v4712
        %v4714 = vlaneseq
        %v4715 = vshrl.u32 %v4714, 7
        %v4716 = vsub.s32 %v4713, %v4715
        %v4717 = vrot.slane %v4695, %v4716
        %v4719 = vunpack.c.l.s4 1966171168
        %v4720 = vunpack.c.0.s8 %v4719
        %v4721 = vlaneseq
        %v4722 = vshrl.u32 %v4721, 7
        %v4723 = vsub.s32 %v4720, %v4722
        %v4724 = vrot.slane %v4696, %v4723
        %v4725 = vcombine.low %v4703, %v4710
        %v4726 = vcombine.low %v4717, %v4724
        %v4728 = vunpack.c.l.s4 1966171168
        %v4729 = vunpack.c.0.s8 %v4728
        %v4730 = vlaneseq
        %v4731 = vshrl.u32 %v4730, 7
        %v4732 = vsub.s32 %v4729, %v4731
        %v4733 = vrot.slane %v4725, %v4732
        %v4735 = vunpack.c.l.s4 1966171168
        %v4736 = vunpack.c.0.s8 %v4735
        %v4737 = vlaneseq
        %v4738 = vshrl.u32 %v4737, 7
        %v4739 = vsub.s32 %v4736, %v4738
        %v4740 = vrot.slane %v4726, %v4739
        %v4741 = vcombine.low %v4733, %v4740
        %v4742 = vcombine.low %v3347, %v3351
        %v4743 = vcombine.low %v3355, %v3359
        %v4744 = vcombine.low %v3363, %v3367
        %v4745 = vcombine.low %v3371, %v3375
        %v4747 = vunpack.c.l.s4 1966171168
        %v4748 = vunpack.c.0.s8 %v4747
        %v4749 = vlaneseq
        %v4750 = vshrl.u32 %v4749, 7
        %v4751 = vsub.s32 %v4748, %v4750
        %v4752 = vrot.slane %v4742, %v4751
        %v4754 = vunpack.c.l.s4 1966171168
        %v4755 = vunpack.c.0.s8 %v4754
        %v4756 = vlaneseq
        %v4757 = vshrl.u32 %v4756, 7
        %v4758 = vsub.s32 %v4755, %v4757
        %v4759 = vrot.slane %v4743, %v4758
        %v4761 = vunpack.c.l.s4 1966171168
        %v4762 = vunpack.c.0.s8 %v4761
        %v4763 = vlaneseq
        %v4764 = vshrl.u32 %v4763, 7
        %v4765 = vsub.s32 %v4762, %v4764
        %v4766 = vrot.slane %v4744, %v4765
        %v4768 = vunpack.c.l.s4 1966171168
        %v4769 = vunpack.c.0.s8 %v4768
        %v4770 = vlaneseq
        %v4771 = vshrl.u32 %v4770, 7
        %v4772 = vsub.s32 %v4769, %v4771
        %v4773 = vrot.slane %v4745, %v4772
        %v4774 = vcombine.low %v4752, %v4759
        %v4775 = vcombine.low %v4766, %v4773
        %v4777 = vunpack.c.l.s4 1966171168
        %v4778 = vunpack.c.0.s8 %v4777
        %v4779 = vlaneseq
        %v4780 = vshrl.u32 %v4779, 7
        %v4781 = vsub.s32 %v4778, %v4780
        %v4782 = vrot.slane %v4774, %v4781
        %v4784 = vunpack.c.l.s4 1966171168
        %v4785 = vunpack.c.0.s8 %v4784
        %v4786 = vlaneseq
        %v4787 = vshrl.u32 %v4786, 7
        %v4788 = vsub.s32 %v4785, %v4787
        %v4789 = vrot.slane %v4775, %v4788
        %v4790 = vcombine.low %v4782, %v4789
        %v4791 = vcombine.low %v3379, %v3383
        %v4792 = vcombine.low %v3387, %v3391
        %v4793 = vcombine.low %v3395, %v3399
        %v4794 = vcombine.low %v3403, %v3407
        %v4796 = vunpack.c.l.s4 1966171168
        %v4797 = vunpack.c.0.s8 %v4796
        %v4798 = vlaneseq
        %v4799 = vshrl.u32 %v4798, 7
        %v4800 = vsub.s32 %v4797, %v4799
        %v4801 = vrot.slane %v4791, %v4800
        %v4803 = vunpack.c.l.s4 1966171168
        %v4804 = vunpack.c.0.s8 %v4803
        %v4805 = vlaneseq
        %v4806 = vshrl.u32 %v4805, 7
        %v4807 = vsub.s32 %v4804, %v4806
        %v4808 = vrot.slane %v4792, %v4807
        %v4810 = vunpack.c.l.s4 1966171168
        %v4811 = vunpack.c.0.s8 %v4810
        %v4812 = vlaneseq
        %v4813 = vshrl.u32 %v4812, 7
        %v4814 = vsub.s32 %v4811, %v4813
        %v4815 = vrot.slane %v4793, %v4814
        %v4817 = vunpack.c.l.s4 1966171168
        %v4818 = vunpack.c.0.s8 %v4817
        %v4819 = vlaneseq
        %v4820 = vshrl.u32 %v4819, 7
        %v4821 = vsub.s32 %v4818, %v4820
        %v4822 = vrot.slane %v4794, %v4821
        %v4823 = vcombine.low %v4801, %v4808
        %v4824 = vcombine.low %v4815, %v4822
        %v4826 = vunpack.c.l.s4 1966171168
        %v4827 = vunpack.c.0.s8 %v4826
        %v4828 = vlaneseq
        %v4829 = vshrl.u32 %v4828, 7
        %v4830 = vsub.s32 %v4827, %v4829
        %v4831 = vrot.slane %v4823, %v4830
        %v4833 = vunpack.c.l.s4 1966171168
        %v4834 = vunpack.c.0.s8 %v4833
        %v4835 = vlaneseq
        %v4836 = vshrl.u32 %v4835, 7
        %v4837 = vsub.s32 %v4834, %v4836
        %v4838 = vrot.slane %v4824, %v4837
        %v4839 = vcombine.low %v4831, %v4838
        %v4840 = vcombine.low %v3411, %v3415
        %v4841 = vcombine.low %v3419, %v3423
        %v4842 = vcombine.low %v3427, %v3431
        %v4843 = vcombine.low %v3435, %v3439
        %v4845 = vunpack.c.l.s4 1966171168
        %v4846 = vunpack.c.0.s8 %v4845
        %v4847 = vlaneseq
        %v4848 = vshrl.u32 %v4847, 7
        %v4849 = vsub.s32 %v4846, %v4848
        %v4850 = vrot.slane %v4840, %v4849
        %v4852 = vunpack.c.l.s4 1966171168
        %v4853 = vunpack.c.0.s8 %v4852
        %v4854 = vlaneseq
        %v4855 = vshrl.u32 %v4854, 7
        %v4856 = vsub.s32 %v4853, %v4855
        %v4857 = vrot.slane %v4841, %v4856
        %v4859 = vunpack.c.l.s4 1966171168
        %v4860 = vunpack.c.0.s8 %v4859
        %v4861 = vlaneseq
        %v4862 = vshrl.u32 %v4861, 7
        %v4863 = vsub.s32 %v4860, %v4862
        %v4864 = vrot.slane %v4842, %v4863
        %v4866 = vunpack.c.l.s4 1966171168
        %v4867 = vunpack.c.0.s8 %v4866
        %v4868 = vlaneseq
        %v4869 = vshrl.u32 %v4868, 7
        %v4870 = vsub.s32 %v4867, %v4869
        %v4871 = vrot.slane %v4843, %v4870
        %v4872 = vcombine.low %v4850, %v4857
        %v4873 = vcombine.low %v4864, %v4871
        %v4875 = vunpack.c.l.s4 1966171168
        %v4876 = vunpack.c.0.s8 %v4875
        %v4877 = vlaneseq
        %v4878 = vshrl.u32 %v4877, 7
        %v4879 = vsub.s32 %v4876, %v4878
        %v4880 = vrot.slane %v4872, %v4879
        %v4882 = vunpack.c.l.s4 1966171168
        %v4883 = vunpack.c.0.s8 %v4882
        %v4884 = vlaneseq
        %v4885 = vshrl.u32 %v4884, 7
        %v4886 = vsub.s32 %v4883, %v4885
        %v4887 = vrot.slane %v4873, %v4886
        %v4888 = vcombine.low %v4880, %v4887
        %v4889 = vcombine.low %v3443, %v3447
        %v4890 = vcombine.low %v3451, %v3455
        %v4891 = vcombine.low %v3459, %v3463
        %v4892 = vcombine.low %v3467, %v3471
        %v4894 = vunpack.c.l.s4 1966171168
        %v4895 = vunpack.c.0.s8 %v4894
        %v4896 = vlaneseq
        %v4897 = vshrl.u32 %v4896, 7
        %v4898 = vsub.s32 %v4895, %v4897
        %v4899 = vrot.slane %v4889, %v4898
        %v4901 = vunpack.c.l.s4 1966171168
        %v4902 = vunpack.c.0.s8 %v4901
        %v4903 = vlaneseq
        %v4904 = vshrl.u32 %v4903, 7
        %v4905 = vsub.s32 %v4902, %v4904
        %v4906 = vrot.slane %v4890, %v4905
        %v4908 = vunpack.c.l.s4 1966171168
        %v4909 = vunpack.c.0.s8 %v4908
        %v4910 = vlaneseq
        %v4911 = vshrl.u32 %v4910, 7
        %v4912 = vsub.s32 %v4909, %v4911
        %v4913 = vrot.slane %v4891, %v4912
        %v4915 = vunpack.c.l.s4 1966171168
        %v4916 = vunpack.c.0.s8 %v4915
        %v4917 = vlaneseq
        %v4918 = vshrl.u32 %v4917, 7
        %v4919 = vsub.s32 %v4916, %v4918
        %v4920 = vrot.slane %v4892, %v4919
        %v4921 = vcombine.low %v4899, %v4906
        %v4922 = vcombine.low %v4913, %v4920
        %v4924 = vunpack.c.l.s4 1966171168
        %v4925 = vunpack.c.0.s8 %v4924
        %v4926 = vlaneseq
        %v4927 = vshrl.u32 %v4926, 7
        %v4928 = vsub.s32 %v4925, %v4927
        %v4929 = vrot.slane %v4921, %v4928
        %v4931 = vunpack.c.l.s4 1966171168
        %v4932 = vunpack.c.0.s8 %v4931
        %v4933 = vlaneseq
        %v4934 = vshrl.u32 %v4933, 7
        %v4935 = vsub.s32 %v4932, %v4934
        %v4936 = vrot.slane %v4922, %v4935
        %v4937 = vcombine.low %v4929, %v4936
        %v4938 = vcombine.low %v3475, %v3479
        %v4939 = vcombine.low %v3483, %v3487
        %v4940 = vcombine.low %v3491, %v3495
        %v4941 = vcombine.low %v3499, %v3503
        %v4943 = vunpack.c.l.s4 1966171168
        %v4944 = vunpack.c.0.s8 %v4943
        %v4945 = vlaneseq
        %v4946 = vshrl.u32 %v4945, 7
        %v4947 = vsub.s32 %v4944, %v4946
        %v4948 = vrot.slane %v4938, %v4947
        %v4950 = vunpack.c.l.s4 1966171168
        %v4951 = vunpack.c.0.s8 %v4950
        %v4952 = vlaneseq
        %v4953 = vshrl.u32 %v4952, 7
        %v4954 = vsub.s32 %v4951, %v4953
        %v4955 = vrot.slane %v4939, %v4954
        %v4957 = vunpack.c.l.s4 1966171168
        %v4958 = vunpack.c.0.s8 %v4957
        %v4959 = vlaneseq
        %v4960 = vshrl.u32 %v4959, 7
        %v4961 = vsub.s32 %v4958, %v4960
        %v4962 = vrot.slane %v4940, %v4961
        %v4964 = vunpack.c.l.s4 1966171168
        %v4965 = vunpack.c.0.s8 %v4964
        %v4966 = vlaneseq
        %v4967 = vshrl.u32 %v4966, 7
        %v4968 = vsub.s32 %v4965, %v4967
        %v4969 = vrot.slane %v4941, %v4968
        %v4970 = vcombine.low %v4948, %v4955
        %v4971 = vcombine.low %v4962, %v4969
        %v4973 = vunpack.c.l.s4 1966171168
        %v4974 = vunpack.c.0.s8 %v4973
        %v4975 = vlaneseq
        %v4976 = vshrl.u32 %v4975, 7
        %v4977 = vsub.s32 %v4974, %v4976
        %v4978 = vrot.slane %v4970, %v4977
        %v4980 = vunpack.c.l.s4 1966171168
        %v4981 = vunpack.c.0.s8 %v4980
        %v4982 = vlaneseq
        %v4983 = vshrl.u32 %v4982, 7
        %v4984 = vsub.s32 %v4981, %v4983
        %v4985 = vrot.slane %v4971, %v4984
        %v4986 = vcombine.low %v4978, %v4985
        %v4987 = vcombine.low %v3507, %v3511
        %v4988 = vcombine.low %v3515, %v3519
        %v4989 = vcombine.low %v3523, %v3527
        %v4990 = vcombine.low %v3531, %v3535
        %v4992 = vunpack.c.l.s4 1966171168
        %v4993 = vunpack.c.0.s8 %v4992
        %v4994 = vlaneseq
        %v4995 = vshrl.u32 %v4994, 7
        %v4996 = vsub.s32 %v4993, %v4995
        %v4997 = vrot.slane %v4987, %v4996
        %v4999 = vunpack.c.l.s4 1966171168
        %v5000 = vunpack.c.0.s8 %v4999
        %v5001 = vlaneseq
        %v5002 = vshrl.u32 %v5001, 7
        %v5003 = vsub.s32 %v5000, %v5002
        %v5004 = vrot.slane %v4988, %v5003
        %v5006 = vunpack.c.l.s4 1966171168
        %v5007 = vunpack.c.0.s8 %v5006
        %v5008 = vlaneseq
        %v5009 = vshrl.u32 %v5008, 7
        %v5010 = vsub.s32 %v5007, %v5009
        %v5011 = vrot.slane %v4989, %v5010
        %v5013 = vunpack.c.l.s4 1966171168
        %v5014 = vunpack.c.0.s8 %v5013
        %v5015 = vlaneseq
        %v5016 = vshrl.u32 %v5015, 7
        %v5017 = vsub.s32 %v5014, %v5016
        %v5018 = vrot.slane %v4990, %v5017
        %v5019 = vcombine.low %v4997, %v5004
        %v5020 = vcombine.low %v5011, %v5018
        %v5022 = vunpack.c.l.s4 1966171168
        %v5023 = vunpack.c.0.s8 %v5022
        %v5024 = vlaneseq
        %v5025 = vshrl.u32 %v5024, 7
        %v5026 = vsub.s32 %v5023, %v5025
        %v5027 = vrot.slane %v5019, %v5026
        %v5029 = vunpack.c.l.s4 1966171168
        %v5030 = vunpack.c.0.s8 %v5029
        %v5031 = vlaneseq
        %v5032 = vshrl.u32 %v5031, 7
        %v5033 = vsub.s32 %v5030, %v5032
        %v5034 = vrot.slane %v5020, %v5033
        %v5035 = vcombine.low %v5027, %v5034
        %v5036 = vcombine.low %v3539, %v3543
        %v5037 = vcombine.low %v3547, %v3551
        %v5038 = vcombine.low %v3555, %v3559
        %v5039 = vcombine.low %v3563, %v3567
        %v5041 = vunpack.c.l.s4 1966171168
        %v5042 = vunpack.c.0.s8 %v5041
        %v5043 = vlaneseq
        %v5044 = vshrl.u32 %v5043, 7
        %v5045 = vsub.s32 %v5042, %v5044
        %v5046 = vrot.slane %v5036, %v5045
        %v5048 = vunpack.c.l.s4 1966171168
        %v5049 = vunpack.c.0.s8 %v5048
        %v5050 = vlaneseq
        %v5051 = vshrl.u32 %v5050, 7
        %v5052 = vsub.s32 %v5049, %v5051
        %v5053 = vrot.slane %v5037, %v5052
        %v5055 = vunpack.c.l.s4 1966171168
        %v5056 = vunpack.c.0.s8 %v5055
        %v5057 = vlaneseq
        %v5058 = vshrl.u32 %v5057, 7
        %v5059 = vsub.s32 %v5056, %v5058
        %v5060 = vrot.slane %v5038, %v5059
        %v5062 = vunpack.c.l.s4 1966171168
        %v5063 = vunpack.c.0.s8 %v5062
        %v5064 = vlaneseq
        %v5065 = vshrl.u32 %v5064, 7
        %v5066 = vsub.s32 %v5063, %v5065
        %v5067 = vrot.slane %v5039, %v5066
        %v5068 = vcombine.low %v5046, %v5053
        %v5069 = vcombine.low %v5060, %v5067
        %v5071 = vunpack.c.l.s4 1966171168
        %v5072 = vunpack.c.0.s8 %v5071
        %v5073 = vlaneseq
        %v5074 = vshrl.u32 %v5073, 7
        %v5075 = vsub.s32 %v5072, %v5074
        %v5076 = vrot.slane %v5068, %v5075
        %v5078 = vunpack.c.l.s4 1966171168
        %v5079 = vunpack.c.0.s8 %v5078
        %v5080 = vlaneseq
        %v5081 = vshrl.u32 %v5080, 7
        %v5082 = vsub.s32 %v5079, %v5081
        %v5083 = vrot.slane %v5069, %v5082
        %v5084 = vcombine.low %v5076, %v5083
        %v5085 = vcombine.low %v3571, %v3575
        %v5086 = vcombine.low %v3579, %v3583
        %v5087 = vcombine.low %v3587, %v3591
        %v5088 = vcombine.low %v3595, %v3599
        %v5090 = vunpack.c.l.s4 1966171168
        %v5091 = vunpack.c.0.s8 %v5090
        %v5092 = vlaneseq
        %v5093 = vshrl.u32 %v5092, 7
        %v5094 = vsub.s32 %v5091, %v5093
        %v5095 = vrot.slane %v5085, %v5094
        %v5097 = vunpack.c.l.s4 1966171168
        %v5098 = vunpack.c.0.s8 %v5097
        %v5099 = vlaneseq
        %v5100 = vshrl.u32 %v5099, 7
        %v5101 = vsub.s32 %v5098, %v5100
        %v5102 = vrot.slane %v5086, %v5101
        %v5104 = vunpack.c.l.s4 1966171168
        %v5105 = vunpack.c.0.s8 %v5104
        %v5106 = vlaneseq
        %v5107 = vshrl.u32 %v5106, 7
        %v5108 = vsub.s32 %v5105, %v5107
        %v5109 = vrot.slane %v5087, %v5108
        %v5111 = vunpack.c.l.s4 1966171168
        %v5112 = vunpack.c.0.s8 %v5111
        %v5113 = vlaneseq
        %v5114 = vshrl.u32 %v5113, 7
        %v5115 = vsub.s32 %v5112, %v5114
        %v5116 = vrot.slane %v5088, %v5115
        %v5117 = vcombine.low %v5095, %v5102
        %v5118 = vcombine.low %v5109, %v5116
        %v5120 = vunpack.c.l.s4 1966171168
        %v5121 = vunpack.c.0.s8 %v5120
        %v5122 = vlaneseq
        %v5123 = vshrl.u32 %v5122, 7
        %v5124 = vsub.s32 %v5121, %v5123
        %v5125 = vrot.slane %v5117, %v5124
        %v5127 = vunpack.c.l.s4 1966171168
        %v5128 = vunpack.c.0.s8 %v5127
        %v5129 = vlaneseq
        %v5130 = vshrl.u32 %v5129, 7
        %v5131 = vsub.s32 %v5128, %v5130
        %v5132 = vrot.slane %v5118, %v5131
        %v5133 = vcombine.low %v5125, %v5132
        %v5134 = vcombine.low %v3603, %v3607
        %v5135 = vcombine.low %v3611, %v3615
        %v5136 = vcombine.low %v3619, %v3623
        %v5137 = vcombine.low %v3627, %v3631
        %v5139 = vunpack.c.l.s4 1966171168
        %v5140 = vunpack.c.0.s8 %v5139
        %v5141 = vlaneseq
        %v5142 = vshrl.u32 %v5141, 7
        %v5143 = vsub.s32 %v5140, %v5142
        %v5144 = vrot.slane %v5134, %v5143
        %v5146 = vunpack.c.l.s4 1966171168
        %v5147 = vunpack.c.0.s8 %v5146
        %v5148 = vlaneseq
        %v5149 = vshrl.u32 %v5148, 7
        %v5150 = vsub.s32 %v5147, %v5149
        %v5151 = vrot.slane %v5135, %v5150
        %v5153 = vunpack.c.l.s4 1966171168
        %v5154 = vunpack.c.0.s8 %v5153
        %v5155 = vlaneseq
        %v5156 = vshrl.u32 %v5155, 7
        %v5157 = vsub.s32 %v5154, %v5156
        %v5158 = vrot.slane %v5136, %v5157
        %v5160 = vunpack.c.l.s4 1966171168
        %v5161 = vunpack.c.0.s8 %v5160
        %v5162 = vlaneseq
        %v5163 = vshrl.u32 %v5162, 7
        %v5164 = vsub.s32 %v5161, %v5163
        %v5165 = vrot.slane %v5137, %v5164
        %v5166 = vcombine.low %v5144, %v5151
        %v5167 = vcombine.low %v5158, %v5165
        %v5169 = vunpack.c.l.s4 1966171168
        %v5170 = vunpack.c.0.s8 %v5169
        %v5171 = vlaneseq
        %v5172 = vshrl.u32 %v5171, 7
        %v5173 = vsub.s32 %v5170, %v5172
        %v5174 = vrot.slane %v5166, %v5173
        %v5176 = vunpack.c.l.s4 1966171168
        %v5177 = vunpack.c.0.s8 %v5176
        %v5178 = vlaneseq
        %v5179 = vshrl.u32 %v5178, 7
        %v5180 = vsub.s32 %v5177, %v5179
        %v5181 = vrot.slane %v5167, %v5180
        %v5182 = vcombine.low %v5174, %v5181
        %v5183 = vcombine.low %v3635, %v3639
        %v5184 = vcombine.low %v3643, %v3647
        %v5185 = vcombine.low %v3651, %v3655
        %v5186 = vcombine.low %v3659, %v3663
        %v5188 = vunpack.c.l.s4 1966171168
        %v5189 = vunpack.c.0.s8 %v5188
        %v5190 = vlaneseq
        %v5191 = vshrl.u32 %v5190, 7
        %v5192 = vsub.s32 %v5189, %v5191
        %v5193 = vrot.slane %v5183, %v5192
        %v5195 = vunpack.c.l.s4 1966171168
        %v5196 = vunpack.c.0.s8 %v5195
        %v5197 = vlaneseq
        %v5198 = vshrl.u32 %v5197, 7
        %v5199 = vsub.s32 %v5196, %v5198
        %v5200 = vrot.slane %v5184, %v5199
        %v5202 = vunpack.c.l.s4 1966171168
        %v5203 = vunpack.c.0.s8 %v5202
        %v5204 = vlaneseq
        %v5205 = vshrl.u32 %v5204, 7
        %v5206 = vsub.s32 %v5203, %v5205
        %v5207 = vrot.slane %v5185, %v5206
        %v5209 = vunpack.c.l.s4 1966171168
        %v5210 = vunpack.c.0.s8 %v5209
        %v5211 = vlaneseq
        %v5212 = vshrl.u32 %v5211, 7
        %v5213 = vsub.s32 %v5210, %v5212
        %v5214 = vrot.slane %v5186, %v5213
        %v5215 = vcombine.low %v5193, %v5200
        %v5216 = vcombine.low %v5207, %v5214
        %v5218 = vunpack.c.l.s4 1966171168
        %v5219 = vunpack.c.0.s8 %v5218
        %v5220 = vlaneseq
        %v5221 = vshrl.u32 %v5220, 7
        %v5222 = vsub.s32 %v5219, %v5221
        %v5223 = vrot.slane %v5215, %v5222
        %v5225 = vunpack.c.l.s4 1966171168
        %v5226 = vunpack.c.0.s8 %v5225
        %v5227 = vlaneseq
        %v5228 = vshrl.u32 %v5227, 7
        %v5229 = vsub.s32 %v5226, %v5228
        %v5230 = vrot.slane %v5216, %v5229
        %v5231 = vcombine.low %v5223, %v5230
        %5232 = vset.pattern.permute.xlu0 0
        %5233 = vperm.xlu0 %5232, %v3712
        %v5234 = vpop.permute.xlu0 %5233
        %5235 = vset.pattern.permute.xlu0 0
        %5236 = vperm.xlu0 %5235, %v3761
        %v5237 = vpop.permute.xlu0 %5236
        %5238 = vset.pattern.permute.xlu0 0
        %5239 = vperm.xlu0 %5238, %v3810
        %v5240 = vpop.permute.xlu0 %5239
        %5241 = vset.pattern.permute.xlu0 0
        %5242 = vperm.xlu0 %5241, %v3859
        %v5243 = vpop.permute.xlu0 %5242
        %5244 = vset.pattern.permute.xlu0 0
        %5245 = vperm.xlu0 %5244, %v3908
        %v5246 = vpop.permute.xlu0 %5245
        %5247 = vset.pattern.permute.xlu0 0
        %5248 = vperm.xlu0 %5247, %v3957
        %v5249 = vpop.permute.xlu0 %5248
        %5250 = vset.pattern.permute.xlu0 0
        %5251 = vperm.xlu0 %5250, %v4006
        %v5252 = vpop.permute.xlu0 %5251
        %5253 = vset.pattern.permute.xlu0 0
        %5254 = vperm.xlu0 %5253, %v4055
        %v5255 = vpop.permute.xlu0 %5254
        %5256 = vset.pattern.permute.xlu0 0
        %5257 = vperm.xlu0 %5256, %v4104
        %v5258 = vpop.permute.xlu0 %5257
        %5259 = vset.pattern.permute.xlu0 0
        %5260 = vperm.xlu0 %5259, %v4153
        %v5261 = vpop.permute.xlu0 %5260
        %5262 = vset.pattern.permute.xlu0 0
        %5263 = vperm.xlu0 %5262, %v4202
        %v5264 = vpop.permute.xlu0 %5263
        %5265 = vset.pattern.permute.xlu0 0
        %5266 = vperm.xlu0 %5265, %v4251
        %v5267 = vpop.permute.xlu0 %5266
        %5268 = vset.pattern.permute.xlu0 0
        %5269 = vperm.xlu0 %5268, %v4300
        %v5270 = vpop.permute.xlu0 %5269
        %5271 = vset.pattern.permute.xlu0 0
        %5272 = vperm.xlu0 %5271, %v4349
        %v5273 = vpop.permute.xlu0 %5272
        %5274 = vset.pattern.permute.xlu0 0
        %5275 = vperm.xlu0 %5274, %v4398
        %v5276 = vpop.permute.xlu0 %5275
        %5277 = vset.pattern.permute.xlu0 0
        %5278 = vperm.xlu0 %5277, %v4447
        %v5279 = vpop.permute.xlu0 %5278
        %5280 = vset.pattern.permute.xlu0 0
        %5281 = vperm.xlu0 %5280, %v4496
        %v5282 = vpop.permute.xlu0 %5281
        %5283 = vset.pattern.permute.xlu0 0
        %5284 = vperm.xlu0 %5283, %v4545
        %v5285 = vpop.permute.xlu0 %5284
        %5286 = vset.pattern.permute.xlu0 0
        %5287 = vperm.xlu0 %5286, %v4594
        %v5288 = vpop.permute.xlu0 %5287
        %5289 = vset.pattern.permute.xlu0 0
        %5290 = vperm.xlu0 %5289, %v4643
        %v5291 = vpop.permute.xlu0 %5290
        %5292 = vset.pattern.permute.xlu0 0
        %5293 = vperm.xlu0 %5292, %v4692
        %v5294 = vpop.permute.xlu0 %5293
        %5295 = vset.pattern.permute.xlu0 0
        %5296 = vperm.xlu0 %5295, %v4741
        %v5297 = vpop.permute.xlu0 %5296
        %5298 = vset.pattern.permute.xlu0 0
        %5299 = vperm.xlu0 %5298, %v4790
        %v5300 = vpop.permute.xlu0 %5299
        %5301 = vset.pattern.permute.xlu0 0
        %5302 = vperm.xlu0 %5301, %v4839
        %v5303 = vpop.permute.xlu0 %5302
        %5304 = vset.pattern.permute.xlu0 0
        %5305 = vperm.xlu0 %5304, %v4888
        %v5306 = vpop.permute.xlu0 %5305
        %5307 = vset.pattern.permute.xlu0 0
        %5308 = vperm.xlu0 %5307, %v4937
        %v5309 = vpop.permute.xlu0 %5308
        %5310 = vset.pattern.permute.xlu0 0
        %5311 = vperm.xlu0 %5310, %v4986
        %v5312 = vpop.permute.xlu0 %5311
        %5313 = vset.pattern.permute.xlu0 0
        %5314 = vperm.xlu0 %5313, %v5035
        %v5315 = vpop.permute.xlu0 %5314
        %5316 = vset.pattern.permute.xlu0 0
        %5317 = vperm.xlu0 %5316, %v5084
        %v5318 = vpop.permute.xlu0 %5317
        %5319 = vset.pattern.permute.xlu0 0
        %5320 = vperm.xlu0 %5319, %v5133
        %v5321 = vpop.permute.xlu0 %5320
        %5322 = vset.pattern.permute.xlu0 0
        %5323 = vperm.xlu0 %5322, %v5182
        %v5324 = vpop.permute.xlu0 %5323
        %5325 = vset.pattern.permute.xlu0 0
        %5326 = vperm.xlu0 %5325, %v5231
        %v5327 = vpop.permute.xlu0 %5326
        %v5328 = vlaneseq
        %v5329 = vand.u32 %v5328, 127
        %v5330 = vlaneseq
        %v5331 = vshrl.u32 %v5330, 7
        %v5332 = vsub.s32 %v5329, %v5331
        %v5333 = vrot.slane %v5234, %v5332
        %v5334 = vadd.s32 %v5329, 4294967288
        %v5335 = vlaneseq
        %v5336 = vshrl.u32 %v5335, 7
        %v5337 = vsub.s32 %v5334, %v5336
        %v5338 = vrot.slane %v5237, %v5337
        %vm5339 = vcmask 130112
        %v5340 = vsel %vm5339, %v5338, %v5333
        %v5341 = vadd.s32 %v5329, 4294967280
        %v5342 = vlaneseq
        %v5343 = vshrl.u32 %v5342, 7
        %v5344 = vsub.s32 %v5341, %v5343
        %v5345 = vrot.slane %v5240, %v5344
        %vm5346 = vcmask 195712
        %v5347 = vsel %vm5346, %v5345, %v5340
        %v5348 = vadd.s32 %v5329, 4294967272
        %v5349 = vlaneseq
        %v5350 = vshrl.u32 %v5349, 7
        %v5351 = vsub.s32 %v5348, %v5350
        %v5352 = vrot.slane %v5243, %v5351
        %vm5353 = vcmask 261312
        %v5354 = vsel %vm5353, %v5352, %v5347
        %v5355 = vadd.s32 %v5329, 4294967264
        %v5356 = vlaneseq
        %v5357 = vshrl.u32 %v5356, 7
        %v5358 = vsub.s32 %v5355, %v5357
        %v5359 = vrot.slane %v5246, %v5358
        %vm5360 = vcmask 326912
        %v5361 = vsel %vm5360, %v5359, %v5354
        %v5362 = vadd.s32 %v5329, 4294967256
        %v5363 = vlaneseq
        %v5364 = vshrl.u32 %v5363, 7
        %v5365 = vsub.s32 %v5362, %v5364
        %v5366 = vrot.slane %v5249, %v5365
        %vm5367 = vcmask 392512
        %v5368 = vsel %vm5367, %v5366, %v5361
        %v5369 = vadd.s32 %v5329, 4294967248
        %v5370 = vlaneseq
        %v5371 = vshrl.u32 %v5370, 7
        %v5372 = vsub.s32 %v5369, %v5371
        %v5373 = vrot.slane %v5252, %v5372
        %vm5374 = vcmask 458112
        %v5375 = vsel %vm5374, %v5373, %v5368
        %v5376 = vadd.s32 %v5329, 4294967240
        %v5377 = vlaneseq
        %v5378 = vshrl.u32 %v5377, 7
        %v5379 = vsub.s32 %v5376, %v5378
        %v5380 = vrot.slane %v5255, %v5379
        %vm5381 = vcmask 523712
        %v5382 = vsel %vm5381, %v5380, %v5375
        %v5383 = vadd.s32 %v5329, 4294967232
        %v5384 = vlaneseq
        %v5385 = vshrl.u32 %v5384, 7
        %v5386 = vsub.s32 %v5383, %v5385
        %v5387 = vrot.slane %v5258, %v5386
        %vm5388 = vcmask 589312
        %v5389 = vsel %vm5388, %v5387, %v5382
        %v5390 = vadd.s32 %v5329, 4294967224
        %v5391 = vlaneseq
        %v5392 = vshrl.u32 %v5391, 7
        %v5393 = vsub.s32 %v5390, %v5392
        %v5394 = vrot.slane %v5261, %v5393
        %vm5395 = vcmask 654912
        %v5396 = vsel %vm5395, %v5394, %v5389
        %v5397 = vadd.s32 %v5329, 4294967216
        %v5398 = vlaneseq
        %v5399 = vshrl.u32 %v5398, 7
        %v5400 = vsub.s32 %v5397, %v5399
        %v5401 = vrot.slane %v5264, %v5400
        %vm5402 = vcmask 720512
        %v5403 = vsel %vm5402, %v5401, %v5396
        %v5404 = vadd.s32 %v5329, 4294967208
        %v5405 = vlaneseq
        %v5406 = vshrl.u32 %v5405, 7
        %v5407 = vsub.s32 %v5404, %v5406
        %v5408 = vrot.slane %v5267, %v5407
        %vm5409 = vcmask 786112
        %v5410 = vsel %vm5409, %v5408, %v5403
        %v5411 = vadd.s32 %v5329, 4294967200
        %v5412 = vlaneseq
        %v5413 = vshrl.u32 %v5412, 7
        %v5414 = vsub.s32 %v5411, %v5413
        %v5415 = vrot.slane %v5270, %v5414
        %vm5416 = vcmask 851712
        %v5417 = vsel %vm5416, %v5415, %v5410
        %v5418 = vadd.s32 %v5329, 4294967192
        %v5419 = vlaneseq
        %v5420 = vshrl.u32 %v5419, 7
        %v5421 = vsub.s32 %v5418, %v5420
        %v5422 = vrot.slane %v5273, %v5421
        %vm5423 = vcmask 917312
        %v5424 = vsel %vm5423, %v5422, %v5417
        %v5425 = vadd.s32 %v5329, 4294967184
        %v5426 = vlaneseq
        %v5427 = vshrl.u32 %v5426, 7
        %v5428 = vsub.s32 %v5425, %v5427
        %v5429 = vrot.slane %v5276, %v5428
        %vm5430 = vcmask 982912
        %v5431 = vsel %vm5430, %v5429, %v5424
        %v5432 = vadd.s32 %v5329, 4294967176
        %v5433 = vlaneseq
        %v5434 = vshrl.u32 %v5433, 7
        %v5435 = vsub.s32 %v5432, %v5434
        %v5436 = vrot.slane %v5279, %v5435
        %vm5437 = vcmask 1048512
        %v5438 = vsel %vm5437, %v5436, %v5431
        %v5439 = vlaneseq
        %v5440 = vshrl.u32 %v5439, 7
        %v5441 = vsub.s32 %v5329, %v5440
        %v5442 = vrot.slane %v5282, %v5441
        %v5443 = vlaneseq
        %v5444 = vshrl.u32 %v5443, 7
        %v5445 = vsub.s32 %v5334, %v5444
        %v5446 = vrot.slane %v5285, %v5445
        %v5447 = vsel %vm5339, %v5446, %v5442
        %v5448 = vlaneseq
        %v5449 = vshrl.u32 %v5448, 7
        %v5450 = vsub.s32 %v5341, %v5449
        %v5451 = vrot.slane %v5288, %v5450
        %v5452 = vsel %vm5346, %v5451, %v5447
        %v5453 = vlaneseq
        %v5454 = vshrl.u32 %v5453, 7
        %v5455 = vsub.s32 %v5348, %v5454
        %v5456 = vrot.slane %v5291, %v5455
        %v5457 = vsel %vm5353, %v5456, %v5452
        %v5458 = vlaneseq
        %v5459 = vshrl.u32 %v5458, 7
        %v5460 = vsub.s32 %v5355, %v5459
        %v5461 = vrot.slane %v5294, %v5460
        %v5462 = vsel %vm5360, %v5461, %v5457
        %v5463 = vlaneseq
        %v5464 = vshrl.u32 %v5463, 7
        %v5465 = vsub.s32 %v5362, %v5464
        %v5466 = vrot.slane %v5297, %v5465
        %v5467 = vsel %vm5367, %v5466, %v5462
        %v5468 = vlaneseq
        %v5469 = vshrl.u32 %v5468, 7
        %v5470 = vsub.s32 %v5369, %v5469
        %v5471 = vrot.slane %v5300, %v5470
        %v5472 = vsel %vm5374, %v5471, %v5467
        %v5473 = vlaneseq
        %v5474 = vshrl.u32 %v5473, 7
        %v5475 = vsub.s32 %v5376, %v5474
        %v5476 = vrot.slane %v5303, %v5475
        %v5477 = vsel %vm5381, %v5476, %v5472
        %v5478 = vlaneseq
        %v5479 = vshrl.u32 %v5478, 7
        %v5480 = vsub.s32 %v5383, %v5479
        %v5481 = vrot.slane %v5306, %v5480
        %v5482 = vsel %vm5388, %v5481, %v5477
        %v5483 = vlaneseq
        %v5484 = vshrl.u32 %v5483, 7
        %v5485 = vsub.s32 %v5390, %v5484
        %v5486 = vrot.slane %v5309, %v5485
        %v5487 = vsel %vm5395, %v5486, %v5482
        %v5488 = vlaneseq
        %v5489 = vshrl.u32 %v5488, 7
        %v5490 = vsub.s32 %v5397, %v5489
        %v5491 = vrot.slane %v5312, %v5490
        %v5492 = vsel %vm5402, %v5491, %v5487
        %v5493 = vlaneseq
        %v5494 = vshrl.u32 %v5493, 7
        %v5495 = vsub.s32 %v5404, %v5494
        %v5496 = vrot.slane %v5315, %v5495
        %v5497 = vsel %vm5409, %v5496, %v5492
        %v5498 = vlaneseq
        %v5499 = vshrl.u32 %v5498, 7
        %v5500 = vsub.s32 %v5411, %v5499
        %v5501 = vrot.slane %v5318, %v5500
        %v5502 = vsel %vm5416, %v5501, %v5497
        %v5503 = vlaneseq
        %v5504 = vshrl.u32 %v5503, 7
        %v5505 = vsub.s32 %v5418, %v5504
        %v5506 = vrot.slane %v5321, %v5505
        %v5507 = vsel %vm5423, %v5506, %v5502
        %v5508 = vlaneseq
        %v5509 = vshrl.u32 %v5508, 7
        %v5510 = vsub.s32 %v5425, %v5509
        %v5511 = vrot.slane %v5324, %v5510
        %v5512 = vsel %vm5430, %v5511, %v5507
        %v5513 = vlaneseq
        %v5514 = vshrl.u32 %v5513, 7
        %v5515 = vsub.s32 %v5432, %v5514
        %v5516 = vrot.slane %v5327, %v5515
        %v5517 = vsel %vm5437, %v5516, %v5512
        %v5518 = vcombine.low %v5438, %v5517
        %v5520 = vunpack.c.l.s4 1966171168
        %v5521 = vunpack.c.0.s8 %v5520
        %v5522 = vlaneseq
        %v5523 = vshrl.u32 %v5522, 7
        %v5524 = vsub.s32 %v5521, %v5523
        %v5525 = vrot.slane %v5518, %v5524
        %v5527 = vunpack.c.l.s4 1966171168
        %v5528 = vunpack.c.0.s8 %v5527
        %v5529 = vlaneseq
        %v5530 = vshrl.u32 %v5529, 7
        %v5531 = vsub.s32 %v5528, %v5530
        %v5532 = vrot.slane %v5525, %v5531
        %v5534 = vlaneseq
        %vm5535 = vcmp.ge.s32.totalorder %v5534, 0
        %vm5536 = vcmp.lt.s32.totalorder %v5534, 256
        %vm5537 = vmand %vm5535, %vm5536
        %5538 = vst.msk [vmem:[%s275] sm:$0x3] %vm5537, %v5532
        %s5539 = sand.u32 %s182, 1
        %s5540 = scalar_lea.sflag [#allocation4], %s5539
        %s5541 = sand.u32 %s182, 1
        %s5542 = smul.addr %s5541, 2
        %s5543 = scalar_lea.vmem [#allocation3], %s5542
        // Predicated region
        $region49: #{_kpnnue_forward.1} parent=47 // pred_check
          %p5544 = pneg %p192
        $region50: #{_kpnnue_forward.1} parent=47 // pred_check_branch
          %5546 = sbr.rel (%p5544) target = $region52
        $region51: #{_kpnnue_forward.1} parent=47 // pred_region
          %s5547 = smul.u32 2, %s22
          %s5549 = ssub.s32 32, 32
          %5550 = vsyncadd %s5540, %s5549
          %s5551 = smul.addr %s5547, 16
          %s5552 = scalar_lea.hbm %s7, %s5551
          %s5554 = sshll.u32 %s5543, 4
          %s5555 = int_to_ptr.vmem [resolvable:$true] %s5554
          %5557 = dma.vmem_to_hbm [thread:$0]  %s5555, 32, %s5552, %s5540
        $region52: #{_kpnnue_forward.1} parent=47 // pred_fallthru
          _
      $region48: #{_kpnnue_forward.1} parent=5 // pred_fallthru
        _
      %p5558 = scmp.le.s32.totalorder 2, %s17
      // Predicated region
      $region53: #{_kpnnue_forward.1} parent=5 // pred_check
        %p5559 = pneg %p5558
      $region54: #{_kpnnue_forward.1} parent=5 // pred_check_branch
        %5561 = sbr.rel (%p5559) target = $region56
      $region55: #{_kpnnue_forward.1} parent=5 // pred_region
        %s5562 = ssub.s32 %s17, 2
        // Predicated region
        $region57: #{_kpnnue_forward.1} parent=55 // pred_check
          %p5563 = pneg %p198
        $region58: #{_kpnnue_forward.1} parent=55 // pred_check_branch
          %5565 = sbr.rel (%p5563) target = $region60
        $region59: #{_kpnnue_forward.1} parent=55 // pred_region
          %s5566 = sand.u32 %s183, 1
          %s5567 = scalar_lea.sflag [#allocation4], %s5566
          %s5568 = sand.u32 %s183, 1
          %s5569 = smul.addr %s5568, 2
          %s5570 = scalar_lea.vmem [#allocation3], %s5569
          %5571 = dma.done %s5567, 32
        $region60: #{_kpnnue_forward.1} parent=55 // pred_fallthru
          _
      $region56: #{_kpnnue_forward.1} parent=5 // pred_fallthru
        _
    $region6: #{_kpnnue_forward.1} parent=1 // loop_footer
      %s21 = sadd.s32 1, %s17
    $region7: #{_kpnnue_forward.1} parent=1 // loop_footer_branch
      %16 = sbr.rel target = $region3
    $region8: #{_kpnnue_forward.1} parent=1 // loop_exit
      _
    %5572 = vsyncpa [#allocation4], 1
    %s5573 = scalar_lea.sflag [#allocation4], 1
    %5574 = vsyncpa %s5573, 1

</llo_original>
